<compile_context>
chip_gen: v5e
topology: v5e:2x2
jax: 0.10.0
libtpu: 0.0.40
codegen_flags: <defaults>
</compile_context>

<pallas_src>
import numpy as np

import jax
import jax.numpy as jnp
from jax.experimental import pallas as pl
from jax.experimental.pallas import tpu as pltpu


# ---------------------------------------------------------------------------
# Fused Pallas kernel: conv stack + GRU + head, all activations in VMEM.
# ---------------------------------------------------------------------------

def _fused_kernel(a1_ref, w1_ref, b1_ref,
                  g2_ref, w2_ref, b2_ref,
                  g3_ref, w3_ref, b3_ref,
                  g4_ref, w4_ref, b4_ref,
                  x_ref, wi_ref, wh_ref, bi_ref, bh_ref,
                  wimg_ref, wsent_ref, o_ref):
  f32 = jnp.float32
  bf16 = jnp.bfloat16
  slope = 0.2

  def lrelu(y):
    return jnp.where(y >= 0.0, y, slope * y)

  # ---- DownsampleNetwork --------------------------------------------------
  # Layer 1: im2col (built in glue, already bf16) x bf16 weight, f32 acc.
  y = lrelu(jnp.dot(a1_ref[...], w1_ref[...], preferred_element_type=f32)
            + b1_ref[...])                                       # (B*64, 16)

  def conv_block(y_prev, g_ref, w_ref, b_ref):
    # Gather the 16 kernel-offset taps with constant 0/1 selection matrices
    # (16 independent MXU ops, exact copies of rows), lane-concat into the
    # patch matrix (d, 16*cin), then ONE K=16*cin matmul against the
    # (i, j, ci)-major weight.
    yb = y_prev.astype(bf16)
    sels = [jnp.dot(g_ref[p], yb, preferred_element_type=f32)
            for p in range(16)]                                  # 16x (d, cin)
    patch = jnp.concatenate(sels, axis=1).astype(bf16)           # (d, 16*cin)
    return lrelu(jnp.dot(patch, w_ref[...], preferred_element_type=f32)
                 + b_ref[...])

  y = conv_block(y, g2_ref, w2_ref, b2_ref)                      # (B*16, 32)
  y = conv_block(y, g3_ref, w3_ref, b3_ref)                      # (B*4, 32)
  image_feature = conv_block(y, g4_ref, w4_ref, b4_ref)          # (B, Cimg)

  # ---- SentenceEncoder: single-layer GRU (PyTorch gate order r, z, n) ------
  # Each gate lives in its own 128-lane group (padded), so every gate slice is
  # a whole-vreg select.  h is kept padded to Hp lanes (padding stays 0).
  B = o_ref.shape[0]
  Hp = wh_ref.shape[0]                                           # 128
  T = x_ref.shape[0] // B
  wh = wh_ref[...]                                               # bf16, loaded once
  bh = bh_ref[...]                                               # f32,  loaded once
  # Input projection for all T steps hoisted out of the recurrence.
  xg = jnp.dot(x_ref[...], wi_ref[...], preferred_element_type=f32) + bi_ref[...]
  h = jnp.zeros((B, Hp), f32)
  for t in range(T):                                             # static unroll
    gi = xg[t * B:(t + 1) * B, :]                                # (B, 3*Hp)
    gh = jnp.dot(h.astype(bf16), wh, preferred_element_type=f32) + bh
    r = jax.nn.sigmoid(gi[:, 0:Hp] + gh[:, 0:Hp])
    z = jax.nn.sigmoid(gi[:, Hp:2 * Hp] + gh[:, Hp:2 * Hp])
    n = jnp.tanh(gi[:, 2 * Hp:3 * Hp] + r * gh[:, 2 * Hp:3 * Hp])
    h = (1.0 - z) * n + z * h

  # ---- concat -> Conv2d(C, 1, 1, 1, 0, bias=False) -> Sigmoid --------------
  # 1-wide head on the VPU/XLU: elementwise multiply + lane reduce (no MXU).
  logit = (jnp.sum(image_feature * wimg_ref[...], axis=-1, keepdims=True)
           + jnp.sum(h * wsent_ref[...], axis=-1, keepdims=True))
  o_ref[...] = jax.nn.sigmoid(logit)                             # (B, 1)


# ---------------------------------------------------------------------------
# pallas_call wrapper helpers
# ---------------------------------------------------------------------------

def _spec(shape):
  nd = len(shape)
  return pl.BlockSpec(shape, lambda i, _nd=nd: (0,) * _nd)


def _im2col(x, kh, kw, stride, pad):
  """x:(B,C,H,W) -> (B*Ho*Wo, C*kh*kw), PyTorch (C, kh, kw) column order."""
  B, C, H, W = x.shape
  xp = jnp.pad(x, ((0, 0), (0, 0), (pad, pad), (pad, pad)))
  Ho = (H + 2 * pad - kh) // stride + 1
  Wo = (W + 2 * pad - kw) // stride + 1
  patches = []
  for i in range(kh):
    for j in range(kw):
      patches.append(xp[:, :, i:i + stride * Ho:stride, j:j + stride * Wo:stride])
  p = jnp.stack(patches, axis=2).reshape(B, C * kh * kw, Ho, Wo)
  return p.transpose(0, 2, 3, 1).reshape(B * Ho * Wo, C * kh * kw)


def _selection_matrices(B, h_in, w_in):
  """(16, B*Ho*Wo, B*H*W) 0/1 matrices, one per 4x4 kernel offset (stride 2,
  pad 1).  G[p, dst, src] = 1 iff flattened input row `src` feeds output row
  `dst` for offset p; out-of-bounds (padding) taps stay all-zero."""
  ho, wo = h_in // 2, w_in // 2
  g = np.zeros((16, B * ho * wo, B * h_in * w_in), np.float32)
  for i in range(4):
    for j in range(4):
      p = i * 4 + j
      for b in range(B):
        for oh in range(ho):
          for ow in range(wo):
            ih = 2 * oh + i - 1
            iw = 2 * ow + j - 1
            if 0 <= ih < h_in and 0 <= iw < w_in:
              g[p, (b * ho + oh) * wo + ow, (b * h_in + ih) * w_in + iw] = 1.0
  return g


def make_params(key, *, in_channels, image_feature_size,
                sentence_embedding_size, vocab_size, embed_size):
  ks = jax.random.split(key, 16)
  s = 0.1
  chans = [in_channels, 16, 32, 32, image_feature_size]
  conv_ws = [s * jax.random.normal(ks[l], (chans[l + 1], chans[l], 4, 4), jnp.float32)
             for l in range(4)]
  conv_bs = [s * jax.random.normal(ks[4 + l], (chans[l + 1],), jnp.float32)
             for l in range(4)]
  H = sentence_embedding_size
  return {
      "conv_ws": conv_ws,
      "conv_bs": conv_bs,
      "embed": s * jax.random.normal(ks[8], (vocab_size, embed_size), jnp.float32),
      # Fused GRU gate weights, gate order (r, z, n) as in PyTorch.
      "gru_wi": s * jax.random.normal(ks[9], (embed_size, 3 * H), jnp.float32),
      "gru_wh": s * jax.random.normal(ks[10], (H, 3 * H), jnp.float32),
      "gru_bi": s * jax.random.normal(ks[11], (1, 3 * H), jnp.float32),
      "gru_bh": s * jax.random.normal(ks[12], (1, 3 * H), jnp.float32),
      "head_w": s * jax.random.normal(
          ks[13], (image_feature_size + sentence_embedding_size, 1), jnp.float32),
  }


def fake_sentence_discriminator(params, image, sentence_tokens):
  """image: (B, C, H, W) float32 NCHW; sentence_tokens: (B, T) int32."""
  bf16 = jnp.bfloat16
  B, _, Himg, Wimg = image.shape
  conv_ws, conv_bs = params["conv_ws"], params["conv_bs"]

  # Layer 1: im2col of the raw HBM input (one-time XLA glue), pre-cast bf16.
  a1 = _im2col(image, 4, 4, 2, 1).astype(bf16)                    # (B*Ho*Wo, C*16)
  c1_out = conv_ws[0].shape[0]
  w1 = conv_ws[0].reshape(c1_out, -1).T.astype(bf16)              # (C*16, c1_out)
  b1 = conv_bs[0].reshape(1, -1)

  # Layers 2-4: constant 0/1 patch-selection matrices (bf16, exact) and
  # (i, j, ci)-major bf16 weights.
  gs, ws, bs = [], [], []
  h_cur, w_cur = Himg // 2, Wimg // 2
  for l in range(1, 4):
    gs.append(jnp.asarray(_selection_matrices(B, h_cur, w_cur), dtype=bf16))
    cout, cin = conv_ws[l].shape[0], conv_ws[l].shape[1]
    ws.append(conv_ws[l].transpose(2, 3, 1, 0).reshape(16 * cin, cout).astype(bf16))
    bs.append(conv_bs[l].reshape(1, -1))
    h_cur, w_cur = h_cur // 2, w_cur // 2

  # Sentence encoder glue: embedding lookup, time-major flatten, bf16 cast.
  emb = jnp.take(params["embed"], sentence_tokens, axis=0)        # (B, T, E)
  x_tb = jnp.transpose(emb, (1, 0, 2)).reshape(-1, emb.shape[-1]).astype(bf16)

  # GRU gate weights: pad each gate (r, z, n) to its own 128-lane group so the
  # in-kernel gate slices are whole-vreg; recurrent weight rows padded to 128.
  H = params["gru_wh"].shape[0]
  Hp = 128

  def pad_gate_cols(w):                                           # (R, 3H)->(R, 3*Hp)
    out = jnp.zeros((w.shape[0], 3 * Hp), jnp.float32)
    for g in range(3):
      out = out.at[:, g * Hp:g * Hp + H].set(w[:, g * H:(g + 1) * H])
    return out

  wi_pad = pad_ate = pad_gate_cols(params["gru_wi"]).astype(bf16)  # (E, 3*Hp)
  wh_pad = jnp.zeros((Hp, 3 * Hp), jnp.float32)
  wh_pad = wh_pad.at[:H, :].set(pad_gate_cols(params["gru_wh"])).astype(bf16)
  bi_pad = pad_gate_cols(params["gru_bi"])                         # f32 (1, 3*Hp)
  bh_pad = pad_gate_cols(params["gru_bh"])                         # f32 (1, 3*Hp)

  # Head weight split: image part (1, Cimg) and sentence part padded to Hp.
  Ci = params["head_w"].shape[0] - H
  w_img = params["head_w"][:Ci, 0].reshape(1, Ci)
  w_sent = jnp.zeros((1, Hp), jnp.float32).at[0, :H].set(params["head_w"][Ci:, 0])

  inputs = (a1, w1, b1,
            gs[0], ws[0], bs[0],
            gs[1], ws[1], bs[1],
            gs[2], ws[2], bs[2],
            x_tb, wi_pad, wh_pad, bi_pad, bh_pad,
            w_img, w_sent)

  out = pl.pallas_call(
      _fused_kernel,
      grid=(1,),
      in_specs=[_spec(x.shape) for x in inputs],
      out_specs=_spec((B, 1)),
      out_shape=jax.ShapeDtypeStruct((B, 1), jnp.float32),
      compiler_params=pltpu.CompilerParams(dimension_semantics=("arbitrary",)),
  )(*inputs)
  return out[:, 0]                                                 # (B,)


if __name__ == "__main__":
  B, C_in, HW = 2, 3, 16
  T, vocab, embed = 8, 50, 16
  image_feature_size = 32
  sentence_embedding_size = 32

  key = jax.random.PRNGKey(0)
  k_img, k_tok, k_par = jax.random.split(key, 3)

  image = jax.random.normal(k_img, (B, C_in, HW, HW), jnp.float32)
  sentence = jax.random.randint(k_tok, (B, T), 0, vocab, jnp.int32)

  params = make_params(
      k_par, in_channels=C_in, image_feature_size=image_feature_size,
      sentence_embedding_size=sentence_embedding_size,
      vocab_size=vocab, embed_size=embed)

  fwd = jax.jit(fake_sentence_discriminator)
  out = jax.block_until_ready(fwd(params, image, sentence))
  assert out.shape == (B,), out.shape
  assert bool(jnp.all((out >= 0.0) & (out <= 1.0)))
  print("KERNEL_OK")
</pallas_src>

<mosaic_0001>
module attributes {stable_mosaic.version = 11 : i64} {
  func.func @_fused_kernel(%arg0: i32, %arg1: memref<128x48xbf16, #tpu.memory_space<vmem>>, %arg2: memref<48x16xbf16, #tpu.memory_space<vmem>>, %arg3: memref<1x16xf32, #tpu.memory_space<vmem>>, %arg4: memref<16x32x128xbf16, #tpu.memory_space<vmem>>, %arg5: memref<256x32xbf16, #tpu.memory_space<vmem>>, %arg6: memref<1x32xf32, #tpu.memory_space<vmem>>, %arg7: memref<16x8x32xbf16, #tpu.memory_space<vmem>>, %arg8: memref<512x32xbf16, #tpu.memory_space<vmem>>, %arg9: memref<1x32xf32, #tpu.memory_space<vmem>>, %arg10: memref<16x2x8xbf16, #tpu.memory_space<vmem>>, %arg11: memref<512x32xbf16, #tpu.memory_space<vmem>>, %arg12: memref<1x32xf32, #tpu.memory_space<vmem>>, %arg13: memref<16x16xbf16, #tpu.memory_space<vmem>>, %arg14: memref<16x384xbf16, #tpu.memory_space<vmem>>, %arg15: memref<128x384xbf16, #tpu.memory_space<vmem>>, %arg16: memref<1x384xf32, #tpu.memory_space<vmem>>, %arg17: memref<1x384xf32, #tpu.memory_space<vmem>>, %arg18: memref<1x32xf32, #tpu.memory_space<vmem>>, %arg19: memref<1x128xf32, #tpu.memory_space<vmem>>, %arg20: memref<2x1xf32, #tpu.memory_space<vmem>>) attributes {dimension_semantics = [#tpu.dimension_semantics<arbitrary>], iteration_bounds = array<i64: 1>, scalar_prefetch = 0 : i64, scratch_operands = 0 : i64, tpu.core_type = #tpu.core_type<tc>, window_params = [{pipeline_mode = #tpu.pipeline_mode<synchronous>, transform_indices = @transform_0, window_bounds = array<i64: 128, 48>}, {pipeline_mode = #tpu.pipeline_mode<synchronous>, transform_indices = @transform_1, window_bounds = array<i64: 48, 16>}, {pipeline_mode = #tpu.pipeline_mode<synchronous>, transform_indices = @transform_2, window_bounds = array<i64: 1, 16>}, {pipeline_mode = #tpu.pipeline_mode<synchronous>, transform_indices = @transform_3, window_bounds = array<i64: 16, 32, 128>}, {pipeline_mode = #tpu.pipeline_mode<synchronous>, transform_indices = @transform_4, window_bounds = array<i64: 256, 32>}, {pipeline_mode = #tpu.pipeline_mode<synchronous>, transform_indices = @transform_5, window_bounds = array<i64: 1, 32>}, {pipeline_mode = #tpu.pipeline_mode<synchronous>, transform_indices = @transform_6, window_bounds = array<i64: 16, 8, 32>}, {pipeline_mode = #tpu.pipeline_mode<synchronous>, transform_indices = @transform_7, window_bounds = array<i64: 512, 32>}, {pipeline_mode = #tpu.pipeline_mode<synchronous>, transform_indices = @transform_8, window_bounds = array<i64: 1, 32>}, {pipeline_mode = #tpu.pipeline_mode<synchronous>, transform_indices = @transform_9, window_bounds = array<i64: 16, 2, 8>}, {pipeline_mode = #tpu.pipeline_mode<synchronous>, transform_indices = @transform_10, window_bounds = array<i64: 512, 32>}, {pipeline_mode = #tpu.pipeline_mode<synchronous>, transform_indices = @transform_11, window_bounds = array<i64: 1, 32>}, {pipeline_mode = #tpu.pipeline_mode<synchronous>, transform_indices = @transform_12, window_bounds = array<i64: 16, 16>}, {pipeline_mode = #tpu.pipeline_mode<synchronous>, transform_indices = @transform_13, window_bounds = array<i64: 16, 384>}, {pipeline_mode = #tpu.pipeline_mode<synchronous>, transform_indices = @transform_14, window_bounds = array<i64: 128, 384>}, {pipeline_mode = #tpu.pipeline_mode<synchronous>, transform_indices = @transform_15, window_bounds = array<i64: 1, 384>}, {pipeline_mode = #tpu.pipeline_mode<synchronous>, transform_indices = @transform_16, window_bounds = array<i64: 1, 384>}, {pipeline_mode = #tpu.pipeline_mode<synchronous>, transform_indices = @transform_17, window_bounds = array<i64: 1, 32>}, {pipeline_mode = #tpu.pipeline_mode<synchronous>, transform_indices = @transform_18, window_bounds = array<i64: 1, 128>}, {pipeline_mode = #tpu.pipeline_mode<synchronous>, transform_indices = @transform_19, window_bounds = array<i64: 2, 1>}]} {
    %c0 = arith.constant 0 : index
    %c0_0 = arith.constant 0 : index
    %0 = vector.load %arg1[%c0, %c0_0] : memref<128x48xbf16, #tpu.memory_space<vmem>>, vector<128x48xbf16>
    %c0_1 = arith.constant 0 : index
    %c0_2 = arith.constant 0 : index
    %1 = vector.load %arg2[%c0_1, %c0_2] : memref<48x16xbf16, #tpu.memory_space<vmem>>, vector<48x16xbf16>
    %cst = arith.constant dense<0.000000e+00> : vector<128x16xf32>
    %2 = tpu.matmul %0, %1, %cst {dimension_numbers = #tpu.dot_dimension_numbers<[1], [0], [0], [1], [0, 0, 1, 1], [], []>} : vector<128x48xbf16>, vector<48x16xbf16>, vector<128x16xf32> -> vector<128x16xf32>
    %c0_3 = arith.constant 0 : index
    %c0_4 = arith.constant 0 : index
    %3 = vector.load %arg3[%c0_3, %c0_4] : memref<1x16xf32, #tpu.memory_space<vmem>>, vector<1x16xf32>
    %4 = vector.broadcast %3 : vector<1x16xf32> to vector<128x16xf32>
    %5 = arith.addf %2, %4 : vector<128x16xf32>
    %cst_5 = arith.constant 0.000000e+00 : f32
    %6 = vector.broadcast %cst_5 : f32 to vector<128x16xf32>
    %7 = arith.cmpf oge, %5, %6 : vector<128x16xf32>
    %cst_6 = arith.constant 2.000000e-01 : f32
    %8 = vector.broadcast %cst_6 : f32 to vector<128x16xf32>
    %9 = arith.mulf %8, %5 : vector<128x16xf32>
    %10 = arith.select %7, %5, %9 : vector<128x16xi1>, vector<128x16xf32>
    %11 = arith.truncf %10 : vector<128x16xf32> to vector<128x16xbf16>
    %c0_7 = arith.constant 0 : index
    %c0_8 = arith.constant 0 : index
    %c0_9 = arith.constant 0 : index
    %12 = vector.load %arg4[%c0_7, %c0_8, %c0_9] : memref<16x32x128xbf16, #tpu.memory_space<vmem>>, vector<1x32x128xbf16>
    %13 = vector.shape_cast %12 : vector<1x32x128xbf16> to vector<32x128xbf16>
    %cst_10 = arith.constant dense<0.000000e+00> : vector<32x16xf32>
    %14 = tpu.matmul %13, %11, %cst_10 {dimension_numbers = #tpu.dot_dimension_numbers<[1], [0], [0], [1], [0, 0, 1, 1], [], []>} : vector<32x128xbf16>, vector<128x16xbf16>, vector<32x16xf32> -> vector<32x16xf32>
    %c1 = arith.constant 1 : index
    %c0_11 = arith.constant 0 : index
    %c0_12 = arith.constant 0 : index
    %15 = vector.load %arg4[%c1, %c0_11, %c0_12] : memref<16x32x128xbf16, #tpu.memory_space<vmem>>, vector<1x32x128xbf16>
    %16 = vector.shape_cast %15 : vector<1x32x128xbf16> to vector<32x128xbf16>
    %cst_13 = arith.constant dense<0.000000e+00> : vector<32x16xf32>
    %17 = tpu.matmul %16, %11, %cst_13 {dimension_numbers = #tpu.dot_dimension_numbers<[1], [0], [0], [1], [0, 0, 1, 1], [], []>} : vector<32x128xbf16>, vector<128x16xbf16>, vector<32x16xf32> -> vector<32x16xf32>
    %c2 = arith.constant 2 : index
    %c0_14 = arith.constant 0 : index
    %c0_15 = arith.constant 0 : index
    %18 = vector.load %arg4[%c2, %c0_14, %c0_15] : memref<16x32x128xbf16, #tpu.memory_space<vmem>>, vector<1x32x128xbf16>
    %19 = vector.shape_cast %18 : vector<1x32x128xbf16> to vector<32x128xbf16>
    %cst_16 = arith.constant dense<0.000000e+00> : vector<32x16xf32>
    %20 = tpu.matmul %19, %11, %cst_16 {dimension_numbers = #tpu.dot_dimension_numbers<[1], [0], [0], [1], [0, 0, 1, 1], [], []>} : vector<32x128xbf16>, vector<128x16xbf16>, vector<32x16xf32> -> vector<32x16xf32>
    %c3 = arith.constant 3 : index
    %c0_17 = arith.constant 0 : index
    %c0_18 = arith.constant 0 : index
    %21 = vector.load %arg4[%c3, %c0_17, %c0_18] : memref<16x32x128xbf16, #tpu.memory_space<vmem>>, vector<1x32x128xbf16>
    %22 = vector.shape_cast %21 : vector<1x32x128xbf16> to vector<32x128xbf16>
    %cst_19 = arith.constant dense<0.000000e+00> : vector<32x16xf32>
    %23 = tpu.matmul %22, %11, %cst_19 {dimension_numbers = #tpu.dot_dimension_numbers<[1], [0], [0], [1], [0, 0, 1, 1], [], []>} : vector<32x128xbf16>, vector<128x16xbf16>, vector<32x16xf32> -> vector<32x16xf32>
    %c4 = arith.constant 4 : index
    %c0_20 = arith.constant 0 : index
    %c0_21 = arith.constant 0 : index
    %24 = vector.load %arg4[%c4, %c0_20, %c0_21] : memref<16x32x128xbf16, #tpu.memory_space<vmem>>, vector<1x32x128xbf16>
    %25 = vector.shape_cast %24 : vector<1x32x128xbf16> to vector<32x128xbf16>
    %cst_22 = arith.constant dense<0.000000e+00> : vector<32x16xf32>
    %26 = tpu.matmul %25, %11, %cst_22 {dimension_numbers = #tpu.dot_dimension_numbers<[1], [0], [0], [1], [0, 0, 1, 1], [], []>} : vector<32x128xbf16>, vector<128x16xbf16>, vector<32x16xf32> -> vector<32x16xf32>
    %c5 = arith.constant 5 : index
    %c0_23 = arith.constant 0 : index
    %c0_24 = arith.constant 0 : index
    %27 = vector.load %arg4[%c5, %c0_23, %c0_24] : memref<16x32x128xbf16, #tpu.memory_space<vmem>>, vector<1x32x128xbf16>
    %28 = vector.shape_cast %27 : vector<1x32x128xbf16> to vector<32x128xbf16>
    %cst_25 = arith.constant dense<0.000000e+00> : vector<32x16xf32>
    %29 = tpu.matmul %28, %11, %cst_25 {dimension_numbers = #tpu.dot_dimension_numbers<[1], [0], [0], [1], [0, 0, 1, 1], [], []>} : vector<32x128xbf16>, vector<128x16xbf16>, vector<32x16xf32> -> vector<32x16xf32>
    %c6 = arith.constant 6 : index
    %c0_26 = arith.constant 0 : index
    %c0_27 = arith.constant 0 : index
    %30 = vector.load %arg4[%c6, %c0_26, %c0_27] : memref<16x32x128xbf16, #tpu.memory_space<vmem>>, vector<1x32x128xbf16>
    %31 = vector.shape_cast %30 : vector<1x32x128xbf16> to vector<32x128xbf16>
    %cst_28 = arith.constant dense<0.000000e+00> : vector<32x16xf32>
    %32 = tpu.matmul %31, %11, %cst_28 {dimension_numbers = #tpu.dot_dimension_numbers<[1], [0], [0], [1], [0, 0, 1, 1], [], []>} : vector<32x128xbf16>, vector<128x16xbf16>, vector<32x16xf32> -> vector<32x16xf32>
    %c7 = arith.constant 7 : index
    %c0_29 = arith.constant 0 : index
    %c0_30 = arith.constant 0 : index
    %33 = vector.load %arg4[%c7, %c0_29, %c0_30] : memref<16x32x128xbf16, #tpu.memory_space<vmem>>, vector<1x32x128xbf16>
    %34 = vector.shape_cast %33 : vector<1x32x128xbf16> to vector<32x128xbf16>
    %cst_31 = arith.constant dense<0.000000e+00> : vector<32x16xf32>
    %35 = tpu.matmul %34, %11, %cst_31 {dimension_numbers = #tpu.dot_dimension_numbers<[1], [0], [0], [1], [0, 0, 1, 1], [], []>} : vector<32x128xbf16>, vector<128x16xbf16>, vector<32x16xf32> -> vector<32x16xf32>
    %c8 = arith.constant 8 : index
    %c0_32 = arith.constant 0 : index
    %c0_33 = arith.constant 0 : index
    %36 = vector.load %arg4[%c8, %c0_32, %c0_33] : memref<16x32x128xbf16, #tpu.memory_space<vmem>>, vector<1x32x128xbf16>
    %37 = vector.shape_cast %36 : vector<1x32x128xbf16> to vector<32x128xbf16>
    %cst_34 = arith.constant dense<0.000000e+00> : vector<32x16xf32>
    %38 = tpu.matmul %37, %11, %cst_34 {dimension_numbers = #tpu.dot_dimension_numbers<[1], [0], [0], [1], [0, 0, 1, 1], [], []>} : vector<32x128xbf16>, vector<128x16xbf16>, vector<32x16xf32> -> vector<32x16xf32>
    %c9 = arith.constant 9 : index
    %c0_35 = arith.constant 0 : index
    %c0_36 = arith.constant 0 : index
    %39 = vector.load %arg4[%c9, %c0_35, %c0_36] : memref<16x32x128xbf16, #tpu.memory_space<vmem>>, vector<1x32x128xbf16>
    %40 = vector.shape_cast %39 : vector<1x32x128xbf16> to vector<32x128xbf16>
    %cst_37 = arith.constant dense<0.000000e+00> : vector<32x16xf32>
    %41 = tpu.matmul %40, %11, %cst_37 {dimension_numbers = #tpu.dot_dimension_numbers<[1], [0], [0], [1], [0, 0, 1, 1], [], []>} : vector<32x128xbf16>, vector<128x16xbf16>, vector<32x16xf32> -> vector<32x16xf32>
    %c10 = arith.constant 10 : index
    %c0_38 = arith.constant 0 : index
    %c0_39 = arith.constant 0 : index
    %42 = vector.load %arg4[%c10, %c0_38, %c0_39] : memref<16x32x128xbf16, #tpu.memory_space<vmem>>, vector<1x32x128xbf16>
    %43 = vector.shape_cast %42 : vector<1x32x128xbf16> to vector<32x128xbf16>
    %cst_40 = arith.constant dense<0.000000e+00> : vector<32x16xf32>
    %44 = tpu.matmul %43, %11, %cst_40 {dimension_numbers = #tpu.dot_dimension_numbers<[1], [0], [0], [1], [0, 0, 1, 1], [], []>} : vector<32x128xbf16>, vector<128x16xbf16>, vector<32x16xf32> -> vector<32x16xf32>
    %c11 = arith.constant 11 : index
    %c0_41 = arith.constant 0 : index
    %c0_42 = arith.constant 0 : index
    %45 = vector.load %arg4[%c11, %c0_41, %c0_42] : memref<16x32x128xbf16, #tpu.memory_space<vmem>>, vector<1x32x128xbf16>
    %46 = vector.shape_cast %45 : vector<1x32x128xbf16> to vector<32x128xbf16>
    %cst_43 = arith.constant dense<0.000000e+00> : vector<32x16xf32>
    %47 = tpu.matmul %46, %11, %cst_43 {dimension_numbers = #tpu.dot_dimension_numbers<[1], [0], [0], [1], [0, 0, 1, 1], [], []>} : vector<32x128xbf16>, vector<128x16xbf16>, vector<32x16xf32> -> vector<32x16xf32>
    %c12 = arith.constant 12 : index
    %c0_44 = arith.constant 0 : index
    %c0_45 = arith.constant 0 : index
    %48 = vector.load %arg4[%c12, %c0_44, %c0_45] : memref<16x32x128xbf16, #tpu.memory_space<vmem>>, vector<1x32x128xbf16>
    %49 = vector.shape_cast %48 : vector<1x32x128xbf16> to vector<32x128xbf16>
    %cst_46 = arith.constant dense<0.000000e+00> : vector<32x16xf32>
    %50 = tpu.matmul %49, %11, %cst_46 {dimension_numbers = #tpu.dot_dimension_numbers<[1], [0], [0], [1], [0, 0, 1, 1], [], []>} : vector<32x128xbf16>, vector<128x16xbf16>, vector<32x16xf32> -> vector<32x16xf32>
    %c13 = arith.constant 13 : index
    %c0_47 = arith.constant 0 : index
    %c0_48 = arith.constant 0 : index
    %51 = vector.load %arg4[%c13, %c0_47, %c0_48] : memref<16x32x128xbf16, #tpu.memory_space<vmem>>, vector<1x32x128xbf16>
    %52 = vector.shape_cast %51 : vector<1x32x128xbf16> to vector<32x128xbf16>
    %cst_49 = arith.constant dense<0.000000e+00> : vector<32x16xf32>
    %53 = tpu.matmul %52, %11, %cst_49 {dimension_numbers = #tpu.dot_dimension_numbers<[1], [0], [0], [1], [0, 0, 1, 1], [], []>} : vector<32x128xbf16>, vector<128x16xbf16>, vector<32x16xf32> -> vector<32x16xf32>
    %c14 = arith.constant 14 : index
    %c0_50 = arith.constant 0 : index
    %c0_51 = arith.constant 0 : index
    %54 = vector.load %arg4[%c14, %c0_50, %c0_51] : memref<16x32x128xbf16, #tpu.memory_space<vmem>>, vector<1x32x128xbf16>
    %55 = vector.shape_cast %54 : vector<1x32x128xbf16> to vector<32x128xbf16>
    %cst_52 = arith.constant dense<0.000000e+00> : vector<32x16xf32>
    %56 = tpu.matmul %55, %11, %cst_52 {dimension_numbers = #tpu.dot_dimension_numbers<[1], [0], [0], [1], [0, 0, 1, 1], [], []>} : vector<32x128xbf16>, vector<128x16xbf16>, vector<32x16xf32> -> vector<32x16xf32>
    %c15 = arith.constant 15 : index
    %c0_53 = arith.constant 0 : index
    %c0_54 = arith.constant 0 : index
    %57 = vector.load %arg4[%c15, %c0_53, %c0_54] : memref<16x32x128xbf16, #tpu.memory_space<vmem>>, vector<1x32x128xbf16>
    %58 = vector.shape_cast %57 : vector<1x32x128xbf16> to vector<32x128xbf16>
    %cst_55 = arith.constant dense<0.000000e+00> : vector<32x16xf32>
    %59 = tpu.matmul %58, %11, %cst_55 {dimension_numbers = #tpu.dot_dimension_numbers<[1], [0], [0], [1], [0, 0, 1, 1], [], []>} : vector<32x128xbf16>, vector<128x16xbf16>, vector<32x16xf32> -> vector<32x16xf32>
    %60 = tpu.concatenate %14, %17, %20, %23, %26, %29, %32, %35, %38, %41, %44, %47, %50, %53, %56, %59 in 1 : vector<32x16xf32>, vector<32x16xf32>, vector<32x16xf32>, vector<32x16xf32>, vector<32x16xf32>, vector<32x16xf32>, vector<32x16xf32>, vector<32x16xf32>, vector<32x16xf32>, vector<32x16xf32>, vector<32x16xf32>, vector<32x16xf32>, vector<32x16xf32>, vector<32x16xf32>, vector<32x16xf32>, vector<32x16xf32> -> vector<32x256xf32>
    %61 = arith.truncf %60 : vector<32x256xf32> to vector<32x256xbf16>
    %c0_56 = arith.constant 0 : index
    %c0_57 = arith.constant 0 : index
    %62 = vector.load %arg5[%c0_56, %c0_57] : memref<256x32xbf16, #tpu.memory_space<vmem>>, vector<256x32xbf16>
    %cst_58 = arith.constant dense<0.000000e+00> : vector<32x32xf32>
    %63 = tpu.matmul %61, %62, %cst_58 {dimension_numbers = #tpu.dot_dimension_numbers<[1], [0], [0], [1], [0, 0, 1, 1], [], []>} : vector<32x256xbf16>, vector<256x32xbf16>, vector<32x32xf32> -> vector<32x32xf32>
    %c0_59 = arith.constant 0 : index
    %c0_60 = arith.constant 0 : index
    %64 = vector.load %arg6[%c0_59, %c0_60] : memref<1x32xf32, #tpu.memory_space<vmem>>, vector<1x32xf32>
    %65 = vector.broadcast %64 : vector<1x32xf32> to vector<32x32xf32>
    %66 = arith.addf %63, %65 : vector<32x32xf32>
    %cst_61 = arith.constant 0.000000e+00 : f32
    %67 = vector.broadcast %cst_61 : f32 to vector<32x32xf32>
    %68 = arith.cmpf oge, %66, %67 : vector<32x32xf32>
    %cst_62 = arith.constant 2.000000e-01 : f32
    %69 = vector.broadcast %cst_62 : f32 to vector<32x32xf32>
    %70 = arith.mulf %69, %66 : vector<32x32xf32>
    %71 = arith.select %68, %66, %70 : vector<32x32xi1>, vector<32x32xf32>
    %72 = arith.truncf %71 : vector<32x32xf32> to vector<32x32xbf16>
    %c0_63 = arith.constant 0 : index
    %c0_64 = arith.constant 0 : index
    %c0_65 = arith.constant 0 : index
    %73 = vector.load %arg7[%c0_63, %c0_64, %c0_65] : memref<16x8x32xbf16, #tpu.memory_space<vmem>>, vector<1x8x32xbf16>
    %74 = vector.shape_cast %73 : vector<1x8x32xbf16> to vector<8x32xbf16>
    %cst_66 = arith.constant dense<0.000000e+00> : vector<8x32xf32>
    %75 = tpu.matmul %74, %72, %cst_66 {dimension_numbers = #tpu.dot_dimension_numbers<[1], [0], [0], [1], [0, 0, 1, 1], [], []>} : vector<8x32xbf16>, vector<32x32xbf16>, vector<8x32xf32> -> vector<8x32xf32>
    %c1_67 = arith.constant 1 : index
    %c0_68 = arith.constant 0 : index
    %c0_69 = arith.constant 0 : index
    %76 = vector.load %arg7[%c1_67, %c0_68, %c0_69] : memref<16x8x32xbf16, #tpu.memory_space<vmem>>, vector<1x8x32xbf16>
    %77 = vector.shape_cast %76 : vector<1x8x32xbf16> to vector<8x32xbf16>
    %cst_70 = arith.constant dense<0.000000e+00> : vector<8x32xf32>
    %78 = tpu.matmul %77, %72, %cst_70 {dimension_numbers = #tpu.dot_dimension_numbers<[1], [0], [0], [1], [0, 0, 1, 1], [], []>} : vector<8x32xbf16>, vector<32x32xbf16>, vector<8x32xf32> -> vector<8x32xf32>
    %c2_71 = arith.constant 2 : index
    %c0_72 = arith.constant 0 : index
    %c0_73 = arith.constant 0 : index
    %79 = vector.load %arg7[%c2_71, %c0_72, %c0_73] : memref<16x8x32xbf16, #tpu.memory_space<vmem>>, vector<1x8x32xbf16>
    %80 = vector.shape_cast %79 : vector<1x8x32xbf16> to vector<8x32xbf16>
    %cst_74 = arith.constant dense<0.000000e+00> : vector<8x32xf32>
    %81 = tpu.matmul %80, %72, %cst_74 {dimension_numbers = #tpu.dot_dimension_numbers<[1], [0], [0], [1], [0, 0, 1, 1], [], []>} : vector<8x32xbf16>, vector<32x32xbf16>, vector<8x32xf32> -> vector<8x32xf32>
    %c3_75 = arith.constant 3 : index
    %c0_76 = arith.constant 0 : index
    %c0_77 = arith.constant 0 : index
    %82 = vector.load %arg7[%c3_75, %c0_76, %c0_77] : memref<16x8x32xbf16, #tpu.memory_space<vmem>>, vector<1x8x32xbf16>
    %83 = vector.shape_cast %82 : vector<1x8x32xbf16> to vector<8x32xbf16>
    %cst_78 = arith.constant dense<0.000000e+00> : vector<8x32xf32>
    %84 = tpu.matmul %83, %72, %cst_78 {dimension_numbers = #tpu.dot_dimension_numbers<[1], [0], [0], [1], [0, 0, 1, 1], [], []>} : vector<8x32xbf16>, vector<32x32xbf16>, vector<8x32xf32> -> vector<8x32xf32>
    %c4_79 = arith.constant 4 : index
    %c0_80 = arith.constant 0 : index
    %c0_81 = arith.constant 0 : index
    %85 = vector.load %arg7[%c4_79, %c0_80, %c0_81] : memref<16x8x32xbf16, #tpu.memory_space<vmem>>, vector<1x8x32xbf16>
    %86 = vector.shape_cast %85 : vector<1x8x32xbf16> to vector<8x32xbf16>
    %cst_82 = arith.constant dense<0.000000e+00> : vector<8x32xf32>
    %87 = tpu.matmul %86, %72, %cst_82 {dimension_numbers = #tpu.dot_dimension_numbers<[1], [0], [0], [1], [0, 0, 1, 1], [], []>} : vector<8x32xbf16>, vector<32x32xbf16>, vector<8x32xf32> -> vector<8x32xf32>
    %c5_83 = arith.constant 5 : index
    %c0_84 = arith.constant 0 : index
    %c0_85 = arith.constant 0 : index
    %88 = vector.load %arg7[%c5_83, %c0_84, %c0_85] : memref<16x8x32xbf16, #tpu.memory_space<vmem>>, vector<1x8x32xbf16>
    %89 = vector.shape_cast %88 : vector<1x8x32xbf16> to vector<8x32xbf16>
    %cst_86 = arith.constant dense<0.000000e+00> : vector<8x32xf32>
    %90 = tpu.matmul %89, %72, %cst_86 {dimension_numbers = #tpu.dot_dimension_numbers<[1], [0], [0], [1], [0, 0, 1, 1], [], []>} : vector<8x32xbf16>, vector<32x32xbf16>, vector<8x32xf32> -> vector<8x32xf32>
    %c6_87 = arith.constant 6 : index
    %c0_88 = arith.constant 0 : index
    %c0_89 = arith.constant 0 : index
    %91 = vector.load %arg7[%c6_87, %c0_88, %c0_89] : memref<16x8x32xbf16, #tpu.memory_space<vmem>>, vector<1x8x32xbf16>
    %92 = vector.shape_cast %91 : vector<1x8x32xbf16> to vector<8x32xbf16>
    %cst_90 = arith.constant dense<0.000000e+00> : vector<8x32xf32>
    %93 = tpu.matmul %92, %72, %cst_90 {dimension_numbers = #tpu.dot_dimension_numbers<[1], [0], [0], [1], [0, 0, 1, 1], [], []>} : vector<8x32xbf16>, vector<32x32xbf16>, vector<8x32xf32> -> vector<8x32xf32>
    %c7_91 = arith.constant 7 : index
    %c0_92 = arith.constant 0 : index
    %c0_93 = arith.constant 0 : index
    %94 = vector.load %arg7[%c7_91, %c0_92, %c0_93] : memref<16x8x32xbf16, #tpu.memory_space<vmem>>, vector<1x8x32xbf16>
    %95 = vector.shape_cast %94 : vector<1x8x32xbf16> to vector<8x32xbf16>
    %cst_94 = arith.constant dense<0.000000e+00> : vector<8x32xf32>
    %96 = tpu.matmul %95, %72, %cst_94 {dimension_numbers = #tpu.dot_dimension_numbers<[1], [0], [0], [1], [0, 0, 1, 1], [], []>} : vector<8x32xbf16>, vector<32x32xbf16>, vector<8x32xf32> -> vector<8x32xf32>
    %c8_95 = arith.constant 8 : index
    %c0_96 = arith.constant 0 : index
    %c0_97 = arith.constant 0 : index
    %97 = vector.load %arg7[%c8_95, %c0_96, %c0_97] : memref<16x8x32xbf16, #tpu.memory_space<vmem>>, vector<1x8x32xbf16>
    %98 = vector.shape_cast %97 : vector<1x8x32xbf16> to vector<8x32xbf16>
    %cst_98 = arith.constant dense<0.000000e+00> : vector<8x32xf32>
    %99 = tpu.matmul %98, %72, %cst_98 {dimension_numbers = #tpu.dot_dimension_numbers<[1], [0], [0], [1], [0, 0, 1, 1], [], []>} : vector<8x32xbf16>, vector<32x32xbf16>, vector<8x32xf32> -> vector<8x32xf32>
    %c9_99 = arith.constant 9 : index
    %c0_100 = arith.constant 0 : index
    %c0_101 = arith.constant 0 : index
    %100 = vector.load %arg7[%c9_99, %c0_100, %c0_101] : memref<16x8x32xbf16, #tpu.memory_space<vmem>>, vector<1x8x32xbf16>
    %101 = vector.shape_cast %100 : vector<1x8x32xbf16> to vector<8x32xbf16>
    %cst_102 = arith.constant dense<0.000000e+00> : vector<8x32xf32>
    %102 = tpu.matmul %101, %72, %cst_102 {dimension_numbers = #tpu.dot_dimension_numbers<[1], [0], [0], [1], [0, 0, 1, 1], [], []>} : vector<8x32xbf16>, vector<32x32xbf16>, vector<8x32xf32> -> vector<8x32xf32>
    %c10_103 = arith.constant 10 : index
    %c0_104 = arith.constant 0 : index
    %c0_105 = arith.constant 0 : index
    %103 = vector.load %arg7[%c10_103, %c0_104, %c0_105] : memref<16x8x32xbf16, #tpu.memory_space<vmem>>, vector<1x8x32xbf16>
    %104 = vector.shape_cast %103 : vector<1x8x32xbf16> to vector<8x32xbf16>
    %cst_106 = arith.constant dense<0.000000e+00> : vector<8x32xf32>
    %105 = tpu.matmul %104, %72, %cst_106 {dimension_numbers = #tpu.dot_dimension_numbers<[1], [0], [0], [1], [0, 0, 1, 1], [], []>} : vector<8x32xbf16>, vector<32x32xbf16>, vector<8x32xf32> -> vector<8x32xf32>
    %c11_107 = arith.constant 11 : index
    %c0_108 = arith.constant 0 : index
    %c0_109 = arith.constant 0 : index
    %106 = vector.load %arg7[%c11_107, %c0_108, %c0_109] : memref<16x8x32xbf16, #tpu.memory_space<vmem>>, vector<1x8x32xbf16>
    %107 = vector.shape_cast %106 : vector<1x8x32xbf16> to vector<8x32xbf16>
    %cst_110 = arith.constant dense<0.000000e+00> : vector<8x32xf32>
    %108 = tpu.matmul %107, %72, %cst_110 {dimension_numbers = #tpu.dot_dimension_numbers<[1], [0], [0], [1], [0, 0, 1, 1], [], []>} : vector<8x32xbf16>, vector<32x32xbf16>, vector<8x32xf32> -> vector<8x32xf32>
    %c12_111 = arith.constant 12 : index
    %c0_112 = arith.constant 0 : index
    %c0_113 = arith.constant 0 : index
    %109 = vector.load %arg7[%c12_111, %c0_112, %c0_113] : memref<16x8x32xbf16, #tpu.memory_space<vmem>>, vector<1x8x32xbf16>
    %110 = vector.shape_cast %109 : vector<1x8x32xbf16> to vector<8x32xbf16>
    %cst_114 = arith.constant dense<0.000000e+00> : vector<8x32xf32>
    %111 = tpu.matmul %110, %72, %cst_114 {dimension_numbers = #tpu.dot_dimension_numbers<[1], [0], [0], [1], [0, 0, 1, 1], [], []>} : vector<8x32xbf16>, vector<32x32xbf16>, vector<8x32xf32> -> vector<8x32xf32>
    %c13_115 = arith.constant 13 : index
    %c0_116 = arith.constant 0 : index
    %c0_117 = arith.constant 0 : index
    %112 = vector.load %arg7[%c13_115, %c0_116, %c0_117] : memref<16x8x32xbf16, #tpu.memory_space<vmem>>, vector<1x8x32xbf16>
    %113 = vector.shape_cast %112 : vector<1x8x32xbf16> to vector<8x32xbf16>
    %cst_118 = arith.constant dense<0.000000e+00> : vector<8x32xf32>
    %114 = tpu.matmul %113, %72, %cst_118 {dimension_numbers = #tpu.dot_dimension_numbers<[1], [0], [0], [1], [0, 0, 1, 1], [], []>} : vector<8x32xbf16>, vector<32x32xbf16>, vector<8x32xf32> -> vector<8x32xf32>
    %c14_119 = arith.constant 14 : index
    %c0_120 = arith.constant 0 : index
    %c0_121 = arith.constant 0 : index
    %115 = vector.load %arg7[%c14_119, %c0_120, %c0_121] : memref<16x8x32xbf16, #tpu.memory_space<vmem>>, vector<1x8x32xbf16>
    %116 = vector.shape_cast %115 : vector<1x8x32xbf16> to vector<8x32xbf16>
    %cst_122 = arith.constant dense<0.000000e+00> : vector<8x32xf32>
    %117 = tpu.matmul %116, %72, %cst_122 {dimension_numbers = #tpu.dot_dimension_numbers<[1], [0], [0], [1], [0, 0, 1, 1], [], []>} : vector<8x32xbf16>, vector<32x32xbf16>, vector<8x32xf32> -> vector<8x32xf32>
    %c15_123 = arith.constant 15 : index
    %c0_124 = arith.constant 0 : index
    %c0_125 = arith.constant 0 : index
    %118 = vector.load %arg7[%c15_123, %c0_124, %c0_125] : memref<16x8x32xbf16, #tpu.memory_space<vmem>>, vector<1x8x32xbf16>
    %119 = vector.shape_cast %118 : vector<1x8x32xbf16> to vector<8x32xbf16>
    %cst_126 = arith.constant dense<0.000000e+00> : vector<8x32xf32>
    %120 = tpu.matmul %119, %72, %cst_126 {dimension_numbers = #tpu.dot_dimension_numbers<[1], [0], [0], [1], [0, 0, 1, 1], [], []>} : vector<8x32xbf16>, vector<32x32xbf16>, vector<8x32xf32> -> vector<8x32xf32>
    %121 = tpu.concatenate %75, %78, %81, %84, %87, %90, %93, %96, %99, %102, %105, %108, %111, %114, %117, %120 in 1 : vector<8x32xf32>, vector<8x32xf32>, vector<8x32xf32>, vector<8x32xf32>, vector<8x32xf32>, vector<8x32xf32>, vector<8x32xf32>, vector<8x32xf32>, vector<8x32xf32>, vector<8x32xf32>, vector<8x32xf32>, vector<8x32xf32>, vector<8x32xf32>, vector<8x32xf32>, vector<8x32xf32>, vector<8x32xf32> -> vector<8x512xf32>
    %122 = arith.truncf %121 : vector<8x512xf32> to vector<8x512xbf16>
    %c0_127 = arith.constant 0 : index
    %c0_128 = arith.constant 0 : index
    %123 = vector.load %arg8[%c0_127, %c0_128] : memref<512x32xbf16, #tpu.memory_space<vmem>>, vector<512x32xbf16>
    %cst_129 = arith.constant dense<0.000000e+00> : vector<8x32xf32>
    %124 = tpu.matmul %122, %123, %cst_129 {dimension_numbers = #tpu.dot_dimension_numbers<[1], [0], [0], [1], [0, 0, 1, 1], [], []>} : vector<8x512xbf16>, vector<512x32xbf16>, vector<8x32xf32> -> vector<8x32xf32>
    %c0_130 = arith.constant 0 : index
    %c0_131 = arith.constant 0 : index
    %125 = vector.load %arg9[%c0_130, %c0_131] : memref<1x32xf32, #tpu.memory_space<vmem>>, vector<1x32xf32>
    %126 = vector.broadcast %125 : vector<1x32xf32> to vector<8x32xf32>
    %127 = arith.addf %124, %126 : vector<8x32xf32>
    %cst_132 = arith.constant 0.000000e+00 : f32
    %128 = vector.broadcast %cst_132 : f32 to vector<8x32xf32>
    %129 = arith.cmpf oge, %127, %128 : vector<8x32xf32>
    %cst_133 = arith.constant 2.000000e-01 : f32
    %130 = vector.broadcast %cst_133 : f32 to vector<8x32xf32>
    %131 = arith.mulf %130, %127 : vector<8x32xf32>
    %132 = arith.select %129, %127, %131 : vector<8x32xi1>, vector<8x32xf32>
    %133 = arith.truncf %132 : vector<8x32xf32> to vector<8x32xbf16>
    %c0_134 = arith.constant 0 : index
    %c0_135 = arith.constant 0 : index
    %c0_136 = arith.constant 0 : index
    %134 = vector.load %arg10[%c0_134, %c0_135, %c0_136] : memref<16x2x8xbf16, #tpu.memory_space<vmem>>, vector<1x2x8xbf16>
    %135 = vector.shape_cast %134 : vector<1x2x8xbf16> to vector<2x8xbf16>
    %cst_137 = arith.constant dense<0.000000e+00> : vector<2x32xf32>
    %136 = tpu.matmul %135, %133, %cst_137 {dimension_numbers = #tpu.dot_dimension_numbers<[1], [0], [0], [1], [0, 0, 1, 1], [], []>} : vector<2x8xbf16>, vector<8x32xbf16>, vector<2x32xf32> -> vector<2x32xf32>
    %c1_138 = arith.constant 1 : index
    %c0_139 = arith.constant 0 : index
    %c0_140 = arith.constant 0 : index
    %137 = vector.load %arg10[%c1_138, %c0_139, %c0_140] : memref<16x2x8xbf16, #tpu.memory_space<vmem>>, vector<1x2x8xbf16>
    %138 = vector.shape_cast %137 : vector<1x2x8xbf16> to vector<2x8xbf16>
    %cst_141 = arith.constant dense<0.000000e+00> : vector<2x32xf32>
    %139 = tpu.matmul %138, %133, %cst_141 {dimension_numbers = #tpu.dot_dimension_numbers<[1], [0], [0], [1], [0, 0, 1, 1], [], []>} : vector<2x8xbf16>, vector<8x32xbf16>, vector<2x32xf32> -> vector<2x32xf32>
    %c2_142 = arith.constant 2 : index
    %c0_143 = arith.constant 0 : index
    %c0_144 = arith.constant 0 : index
    %140 = vector.load %arg10[%c2_142, %c0_143, %c0_144] : memref<16x2x8xbf16, #tpu.memory_space<vmem>>, vector<1x2x8xbf16>
    %141 = vector.shape_cast %140 : vector<1x2x8xbf16> to vector<2x8xbf16>
    %cst_145 = arith.constant dense<0.000000e+00> : vector<2x32xf32>
    %142 = tpu.matmul %141, %133, %cst_145 {dimension_numbers = #tpu.dot_dimension_numbers<[1], [0], [0], [1], [0, 0, 1, 1], [], []>} : vector<2x8xbf16>, vector<8x32xbf16>, vector<2x32xf32> -> vector<2x32xf32>
    %c3_146 = arith.constant 3 : index
    %c0_147 = arith.constant 0 : index
    %c0_148 = arith.constant 0 : index
    %143 = vector.load %arg10[%c3_146, %c0_147, %c0_148] : memref<16x2x8xbf16, #tpu.memory_space<vmem>>, vector<1x2x8xbf16>
    %144 = vector.shape_cast %143 : vector<1x2x8xbf16> to vector<2x8xbf16>
    %cst_149 = arith.constant dense<0.000000e+00> : vector<2x32xf32>
    %145 = tpu.matmul %144, %133, %cst_149 {dimension_numbers = #tpu.dot_dimension_numbers<[1], [0], [0], [1], [0, 0, 1, 1], [], []>} : vector<2x8xbf16>, vector<8x32xbf16>, vector<2x32xf32> -> vector<2x32xf32>
    %c4_150 = arith.constant 4 : index
    %c0_151 = arith.constant 0 : index
    %c0_152 = arith.constant 0 : index
    %146 = vector.load %arg10[%c4_150, %c0_151, %c0_152] : memref<16x2x8xbf16, #tpu.memory_space<vmem>>, vector<1x2x8xbf16>
    %147 = vector.shape_cast %146 : vector<1x2x8xbf16> to vector<2x8xbf16>
    %cst_153 = arith.constant dense<0.000000e+00> : vector<2x32xf32>
    %148 = tpu.matmul %147, %133, %cst_153 {dimension_numbers = #tpu.dot_dimension_numbers<[1], [0], [0], [1], [0, 0, 1, 1], [], []>} : vector<2x8xbf16>, vector<8x32xbf16>, vector<2x32xf32> -> vector<2x32xf32>
    %c5_154 = arith.constant 5 : index
    %c0_155 = arith.constant 0 : index
    %c0_156 = arith.constant 0 : index
    %149 = vector.load %arg10[%c5_154, %c0_155, %c0_156] : memref<16x2x8xbf16, #tpu.memory_space<vmem>>, vector<1x2x8xbf16>
    %150 = vector.shape_cast %149 : vector<1x2x8xbf16> to vector<2x8xbf16>
    %cst_157 = arith.constant dense<0.000000e+00> : vector<2x32xf32>
    %151 = tpu.matmul %150, %133, %cst_157 {dimension_numbers = #tpu.dot_dimension_numbers<[1], [0], [0], [1], [0, 0, 1, 1], [], []>} : vector<2x8xbf16>, vector<8x32xbf16>, vector<2x32xf32> -> vector<2x32xf32>
    %c6_158 = arith.constant 6 : index
    %c0_159 = arith.constant 0 : index
    %c0_160 = arith.constant 0 : index
    %152 = vector.load %arg10[%c6_158, %c0_159, %c0_160] : memref<16x2x8xbf16, #tpu.memory_space<vmem>>, vector<1x2x8xbf16>
    %153 = vector.shape_cast %152 : vector<1x2x8xbf16> to vector<2x8xbf16>
    %cst_161 = arith.constant dense<0.000000e+00> : vector<2x32xf32>
    %154 = tpu.matmul %153, %133, %cst_161 {dimension_numbers = #tpu.dot_dimension_numbers<[1], [0], [0], [1], [0, 0, 1, 1], [], []>} : vector<2x8xbf16>, vector<8x32xbf16>, vector<2x32xf32> -> vector<2x32xf32>
    %c7_162 = arith.constant 7 : index
    %c0_163 = arith.constant 0 : index
    %c0_164 = arith.constant 0 : index
    %155 = vector.load %arg10[%c7_162, %c0_163, %c0_164] : memref<16x2x8xbf16, #tpu.memory_space<vmem>>, vector<1x2x8xbf16>
    %156 = vector.shape_cast %155 : vector<1x2x8xbf16> to vector<2x8xbf16>
    %cst_165 = arith.constant dense<0.000000e+00> : vector<2x32xf32>
    %157 = tpu.matmul %156, %133, %cst_165 {dimension_numbers = #tpu.dot_dimension_numbers<[1], [0], [0], [1], [0, 0, 1, 1], [], []>} : vector<2x8xbf16>, vector<8x32xbf16>, vector<2x32xf32> -> vector<2x32xf32>
    %c8_166 = arith.constant 8 : index
    %c0_167 = arith.constant 0 : index
    %c0_168 = arith.constant 0 : index
    %158 = vector.load %arg10[%c8_166, %c0_167, %c0_168] : memref<16x2x8xbf16, #tpu.memory_space<vmem>>, vector<1x2x8xbf16>
    %159 = vector.shape_cast %158 : vector<1x2x8xbf16> to vector<2x8xbf16>
    %cst_169 = arith.constant dense<0.000000e+00> : vector<2x32xf32>
    %160 = tpu.matmul %159, %133, %cst_169 {dimension_numbers = #tpu.dot_dimension_numbers<[1], [0], [0], [1], [0, 0, 1, 1], [], []>} : vector<2x8xbf16>, vector<8x32xbf16>, vector<2x32xf32> -> vector<2x32xf32>
    %c9_170 = arith.constant 9 : index
    %c0_171 = arith.constant 0 : index
    %c0_172 = arith.constant 0 : index
    %161 = vector.load %arg10[%c9_170, %c0_171, %c0_172] : memref<16x2x8xbf16, #tpu.memory_space<vmem>>, vector<1x2x8xbf16>
    %162 = vector.shape_cast %161 : vector<1x2x8xbf16> to vector<2x8xbf16>
    %cst_173 = arith.constant dense<0.000000e+00> : vector<2x32xf32>
    %163 = tpu.matmul %162, %133, %cst_173 {dimension_numbers = #tpu.dot_dimension_numbers<[1], [0], [0], [1], [0, 0, 1, 1], [], []>} : vector<2x8xbf16>, vector<8x32xbf16>, vector<2x32xf32> -> vector<2x32xf32>
    %c10_174 = arith.constant 10 : index
    %c0_175 = arith.constant 0 : index
    %c0_176 = arith.constant 0 : index
    %164 = vector.load %arg10[%c10_174, %c0_175, %c0_176] : memref<16x2x8xbf16, #tpu.memory_space<vmem>>, vector<1x2x8xbf16>
    %165 = vector.shape_cast %164 : vector<1x2x8xbf16> to vector<2x8xbf16>
    %cst_177 = arith.constant dense<0.000000e+00> : vector<2x32xf32>
    %166 = tpu.matmul %165, %133, %cst_177 {dimension_numbers = #tpu.dot_dimension_numbers<[1], [0], [0], [1], [0, 0, 1, 1], [], []>} : vector<2x8xbf16>, vector<8x32xbf16>, vector<2x32xf32> -> vector<2x32xf32>
    %c11_178 = arith.constant 11 : index
    %c0_179 = arith.constant 0 : index
    %c0_180 = arith.constant 0 : index
    %167 = vector.load %arg10[%c11_178, %c0_179, %c0_180] : memref<16x2x8xbf16, #tpu.memory_space<vmem>>, vector<1x2x8xbf16>
    %168 = vector.shape_cast %167 : vector<1x2x8xbf16> to vector<2x8xbf16>
    %cst_181 = arith.constant dense<0.000000e+00> : vector<2x32xf32>
    %169 = tpu.matmul %168, %133, %cst_181 {dimension_numbers = #tpu.dot_dimension_numbers<[1], [0], [0], [1], [0, 0, 1, 1], [], []>} : vector<2x8xbf16>, vector<8x32xbf16>, vector<2x32xf32> -> vector<2x32xf32>
    %c12_182 = arith.constant 12 : index
    %c0_183 = arith.constant 0 : index
    %c0_184 = arith.constant 0 : index
    %170 = vector.load %arg10[%c12_182, %c0_183, %c0_184] : memref<16x2x8xbf16, #tpu.memory_space<vmem>>, vector<1x2x8xbf16>
    %171 = vector.shape_cast %170 : vector<1x2x8xbf16> to vector<2x8xbf16>
    %cst_185 = arith.constant dense<0.000000e+00> : vector<2x32xf32>
    %172 = tpu.matmul %171, %133, %cst_185 {dimension_numbers = #tpu.dot_dimension_numbers<[1], [0], [0], [1], [0, 0, 1, 1], [], []>} : vector<2x8xbf16>, vector<8x32xbf16>, vector<2x32xf32> -> vector<2x32xf32>
    %c13_186 = arith.constant 13 : index
    %c0_187 = arith.constant 0 : index
    %c0_188 = arith.constant 0 : index
    %173 = vector.load %arg10[%c13_186, %c0_187, %c0_188] : memref<16x2x8xbf16, #tpu.memory_space<vmem>>, vector<1x2x8xbf16>
    %174 = vector.shape_cast %173 : vector<1x2x8xbf16> to vector<2x8xbf16>
    %cst_189 = arith.constant dense<0.000000e+00> : vector<2x32xf32>
    %175 = tpu.matmul %174, %133, %cst_189 {dimension_numbers = #tpu.dot_dimension_numbers<[1], [0], [0], [1], [0, 0, 1, 1], [], []>} : vector<2x8xbf16>, vector<8x32xbf16>, vector<2x32xf32> -> vector<2x32xf32>
    %c14_190 = arith.constant 14 : index
    %c0_191 = arith.constant 0 : index
    %c0_192 = arith.constant 0 : index
    %176 = vector.load %arg10[%c14_190, %c0_191, %c0_192] : memref<16x2x8xbf16, #tpu.memory_space<vmem>>, vector<1x2x8xbf16>
    %177 = vector.shape_cast %176 : vector<1x2x8xbf16> to vector<2x8xbf16>
    %cst_193 = arith.constant dense<0.000000e+00> : vector<2x32xf32>
    %178 = tpu.matmul %177, %133, %cst_193 {dimension_numbers = #tpu.dot_dimension_numbers<[1], [0], [0], [1], [0, 0, 1, 1], [], []>} : vector<2x8xbf16>, vector<8x32xbf16>, vector<2x32xf32> -> vector<2x32xf32>
    %c15_194 = arith.constant 15 : index
    %c0_195 = arith.constant 0 : index
    %c0_196 = arith.constant 0 : index
    %179 = vector.load %arg10[%c15_194, %c0_195, %c0_196] : memref<16x2x8xbf16, #tpu.memory_space<vmem>>, vector<1x2x8xbf16>
    %180 = vector.shape_cast %179 : vector<1x2x8xbf16> to vector<2x8xbf16>
    %cst_197 = arith.constant dense<0.000000e+00> : vector<2x32xf32>
    %181 = tpu.matmul %180, %133, %cst_197 {dimension_numbers = #tpu.dot_dimension_numbers<[1], [0], [0], [1], [0, 0, 1, 1], [], []>} : vector<2x8xbf16>, vector<8x32xbf16>, vector<2x32xf32> -> vector<2x32xf32>
    %182 = tpu.concatenate %136, %139, %142, %145, %148, %151, %154, %157, %160, %163, %166, %169, %172, %175, %178, %181 in 1 : vector<2x32xf32>, vector<2x32xf32>, vector<2x32xf32>, vector<2x32xf32>, vector<2x32xf32>, vector<2x32xf32>, vector<2x32xf32>, vector<2x32xf32>, vector<2x32xf32>, vector<2x32xf32>, vector<2x32xf32>, vector<2x32xf32>, vector<2x32xf32>, vector<2x32xf32>, vector<2x32xf32>, vector<2x32xf32> -> vector<2x512xf32>
    %183 = arith.truncf %182 : vector<2x512xf32> to vector<2x512xbf16>
    %c0_198 = arith.constant 0 : index
    %c0_199 = arith.constant 0 : index
    %184 = vector.load %arg11[%c0_198, %c0_199] : memref<512x32xbf16, #tpu.memory_space<vmem>>, vector<512x32xbf16>
    %cst_200 = arith.constant dense<0.000000e+00> : vector<2x32xf32>
    %185 = tpu.matmul %183, %184, %cst_200 {dimension_numbers = #tpu.dot_dimension_numbers<[1], [0], [0], [1], [0, 0, 1, 1], [], []>} : vector<2x512xbf16>, vector<512x32xbf16>, vector<2x32xf32> -> vector<2x32xf32>
    %c0_201 = arith.constant 0 : index
    %c0_202 = arith.constant 0 : index
    %186 = vector.load %arg12[%c0_201, %c0_202] : memref<1x32xf32, #tpu.memory_space<vmem>>, vector<1x32xf32>
    %187 = vector.broadcast %186 : vector<1x32xf32> to vector<2x32xf32>
    %188 = arith.addf %185, %187 : vector<2x32xf32>
    %cst_203 = arith.constant 0.000000e+00 : f32
    %189 = vector.broadcast %cst_203 : f32 to vector<2x32xf32>
    %190 = arith.cmpf oge, %188, %189 : vector<2x32xf32>
    %cst_204 = arith.constant 2.000000e-01 : f32
    %191 = vector.broadcast %cst_204 : f32 to vector<2x32xf32>
    %192 = arith.mulf %191, %188 : vector<2x32xf32>
    %193 = arith.select %190, %188, %192 : vector<2x32xi1>, vector<2x32xf32>
    %c0_205 = arith.constant 0 : index
    %c0_206 = arith.constant 0 : index
    %194 = vector.load %arg15[%c0_205, %c0_206] : memref<128x384xbf16, #tpu.memory_space<vmem>>, vector<128x384xbf16>
    %c0_207 = arith.constant 0 : index
    %c0_208 = arith.constant 0 : index
    %195 = vector.load %arg17[%c0_207, %c0_208] : memref<1x384xf32, #tpu.memory_space<vmem>>, vector<1x384xf32>
    %c0_209 = arith.constant 0 : index
    %c0_210 = arith.constant 0 : index
    %196 = vector.load %arg13[%c0_209, %c0_210] : memref<16x16xbf16, #tpu.memory_space<vmem>>, vector<16x16xbf16>
    %c0_211 = arith.constant 0 : index
    %c0_212 = arith.constant 0 : index
    %197 = vector.load %arg14[%c0_211, %c0_212] : memref<16x384xbf16, #tpu.memory_space<vmem>>, vector<16x384xbf16>
    %cst_213 = arith.constant dense<0.000000e+00> : vector<16x384xf32>
    %198 = tpu.matmul %196, %197, %cst_213 {dimension_numbers = #tpu.dot_dimension_numbers<[1], [0], [0], [1], [0, 0, 1, 1], [], []>} : vector<16x16xbf16>, vector<16x384xbf16>, vector<16x384xf32> -> vector<16x384xf32>
    %c0_214 = arith.constant 0 : index
    %c0_215 = arith.constant 0 : index
    %199 = vector.load %arg16[%c0_214, %c0_215] : memref<1x384xf32, #tpu.memory_space<vmem>>, vector<1x384xf32>
    %200 = vector.broadcast %199 : vector<1x384xf32> to vector<16x384xf32>
    %201 = arith.addf %198, %200 : vector<16x384xf32>
    %cst_216 = arith.constant 0.000000e+00 : f32
    %202 = vector.broadcast %cst_216 : f32 to vector<2x128xf32>
    %203 = vector.extract_strided_slice %201 {offsets = [0, 0], sizes = [2, 384], strides = [1, 1]} : vector<16x384xf32> to vector<2x384xf32>
    %204 = arith.truncf %202 : vector<2x128xf32> to vector<2x128xbf16>
    %cst_217 = arith.constant dense<0.000000e+00> : vector<2x384xf32>
    %205 = tpu.matmul %204, %194, %cst_217 {dimension_numbers = #tpu.dot_dimension_numbers<[1], [0], [0], [1], [0, 0, 1, 1], [], []>} : vector<2x128xbf16>, vector<128x384xbf16>, vector<2x384xf32> -> vector<2x384xf32>
    %206 = vector.broadcast %195 : vector<1x384xf32> to vector<2x384xf32>
    %207 = arith.addf %205, %206 : vector<2x384xf32>
    %208 = vector.extract_strided_slice %203 {offsets = [0, 0], sizes = [2, 128], strides = [1, 1]} : vector<2x384xf32> to vector<2x128xf32>
    %209 = vector.extract_strided_slice %207 {offsets = [0, 0], sizes = [2, 128], strides = [1, 1]} : vector<2x384xf32> to vector<2x128xf32>
    %210 = arith.addf %208, %209 : vector<2x128xf32>
    %211 = arith.negf %210 : vector<2x128xf32>
    %212 = math.exp %211 : vector<2x128xf32>
    %cst_218 = arith.constant 1.000000e+00 : f32
    %213 = vector.broadcast %cst_218 : f32 to vector<2x128xf32>
    %214 = arith.addf %213, %212 : vector<2x128xf32>
    %215 = arith.divf %213, %214 : vector<2x128xf32>
    %216 = vector.extract_strided_slice %203 {offsets = [0, 128], sizes = [2, 128], strides = [1, 1]} : vector<2x384xf32> to vector<2x128xf32>
    %217 = vector.extract_strided_slice %207 {offsets = [0, 128], sizes = [2, 128], strides = [1, 1]} : vector<2x384xf32> to vector<2x128xf32>
    %218 = arith.addf %216, %217 : vector<2x128xf32>
    %219 = arith.negf %218 : vector<2x128xf32>
    %220 = math.exp %219 : vector<2x128xf32>
    %cst_219 = arith.constant 1.000000e+00 : f32
    %221 = vector.broadcast %cst_219 : f32 to vector<2x128xf32>
    %222 = arith.addf %221, %220 : vector<2x128xf32>
    %223 = arith.divf %221, %222 : vector<2x128xf32>
    %224 = vector.extract_strided_slice %203 {offsets = [0, 256], sizes = [2, 128], strides = [1, 1]} : vector<2x384xf32> to vector<2x128xf32>
    %225 = vector.extract_strided_slice %207 {offsets = [0, 256], sizes = [2, 128], strides = [1, 1]} : vector<2x384xf32> to vector<2x128xf32>
    %226 = arith.mulf %215, %225 : vector<2x128xf32>
    %227 = arith.addf %224, %226 : vector<2x128xf32>
    %228 = math.tanh %227 : vector<2x128xf32>
    %cst_220 = arith.constant 1.000000e+00 : f32
    %229 = vector.broadcast %cst_220 : f32 to vector<2x128xf32>
    %230 = arith.subf %229, %223 : vector<2x128xf32>
    %231 = arith.mulf %230, %228 : vector<2x128xf32>
    %232 = arith.mulf %223, %202 : vector<2x128xf32>
    %233 = arith.addf %231, %232 : vector<2x128xf32>
    %234 = vector.extract_strided_slice %201 {offsets = [2, 0], sizes = [2, 384], strides = [1, 1]} : vector<16x384xf32> to vector<2x384xf32>
    %235 = arith.truncf %233 : vector<2x128xf32> to vector<2x128xbf16>
    %cst_221 = arith.constant dense<0.000000e+00> : vector<2x384xf32>
    %236 = tpu.matmul %235, %194, %cst_221 {dimension_numbers = #tpu.dot_dimension_numbers<[1], [0], [0], [1], [0, 0, 1, 1], [], []>} : vector<2x128xbf16>, vector<128x384xbf16>, vector<2x384xf32> -> vector<2x384xf32>
    %237 = vector.broadcast %195 : vector<1x384xf32> to vector<2x384xf32>
    %238 = arith.addf %236, %237 : vector<2x384xf32>
    %239 = vector.extract_strided_slice %234 {offsets = [0, 0], sizes = [2, 128], strides = [1, 1]} : vector<2x384xf32> to vector<2x128xf32>
    %240 = vector.extract_strided_slice %238 {offsets = [0, 0], sizes = [2, 128], strides = [1, 1]} : vector<2x384xf32> to vector<2x128xf32>
    %241 = arith.addf %239, %240 : vector<2x128xf32>
    %242 = arith.negf %241 : vector<2x128xf32>
    %243 = math.exp %242 : vector<2x128xf32>
    %cst_222 = arith.constant 1.000000e+00 : f32
    %244 = vector.broadcast %cst_222 : f32 to vector<2x128xf32>
    %245 = arith.addf %244, %243 : vector<2x128xf32>
    %246 = arith.divf %244, %245 : vector<2x128xf32>
    %247 = vector.extract_strided_slice %234 {offsets = [0, 128], sizes = [2, 128], strides = [1, 1]} : vector<2x384xf32> to vector<2x128xf32>
    %248 = vector.extract_strided_slice %238 {offsets = [0, 128], sizes = [2, 128], strides = [1, 1]} : vector<2x384xf32> to vector<2x128xf32>
    %249 = arith.addf %247, %248 : vector<2x128xf32>
    %250 = arith.negf %249 : vector<2x128xf32>
    %251 = math.exp %250 : vector<2x128xf32>
    %cst_223 = arith.constant 1.000000e+00 : f32
    %252 = vector.broadcast %cst_223 : f32 to vector<2x128xf32>
    %253 = arith.addf %252, %251 : vector<2x128xf32>
    %254 = arith.divf %252, %253 : vector<2x128xf32>
    %255 = vector.extract_strided_slice %234 {offsets = [0, 256], sizes = [2, 128], strides = [1, 1]} : vector<2x384xf32> to vector<2x128xf32>
    %256 = vector.extract_strided_slice %238 {offsets = [0, 256], sizes = [2, 128], strides = [1, 1]} : vector<2x384xf32> to vector<2x128xf32>
    %257 = arith.mulf %246, %256 : vector<2x128xf32>
    %258 = arith.addf %255, %257 : vector<2x128xf32>
    %259 = math.tanh %258 : vector<2x128xf32>
    %cst_224 = arith.constant 1.000000e+00 : f32
    %260 = vector.broadcast %cst_224 : f32 to vector<2x128xf32>
    %261 = arith.subf %260, %254 : vector<2x128xf32>
    %262 = arith.mulf %261, %259 : vector<2x128xf32>
    %263 = arith.mulf %254, %233 : vector<2x128xf32>
    %264 = arith.addf %262, %263 : vector<2x128xf32>
    %265 = vector.extract_strided_slice %201 {offsets = [4, 0], sizes = [2, 384], strides = [1, 1]} : vector<16x384xf32> to vector<2x384xf32>
    %266 = arith.truncf %264 : vector<2x128xf32> to vector<2x128xbf16>
    %cst_225 = arith.constant dense<0.000000e+00> : vector<2x384xf32>
    %267 = tpu.matmul %266, %194, %cst_225 {dimension_numbers = #tpu.dot_dimension_numbers<[1], [0], [0], [1], [0, 0, 1, 1], [], []>} : vector<2x128xbf16>, vector<128x384xbf16>, vector<2x384xf32> -> vector<2x384xf32>
    %268 = vector.broadcast %195 : vector<1x384xf32> to vector<2x384xf32>
    %269 = arith.addf %267, %268 : vector<2x384xf32>
    %270 = vector.extract_strided_slice %265 {offsets = [0, 0], sizes = [2, 128], strides = [1, 1]} : vector<2x384xf32> to vector<2x128xf32>
    %271 = vector.extract_strided_slice %269 {offsets = [0, 0], sizes = [2, 128], strides = [1, 1]} : vector<2x384xf32> to vector<2x128xf32>
    %272 = arith.addf %270, %271 : vector<2x128xf32>
    %273 = arith.negf %272 : vector<2x128xf32>
    %274 = math.exp %273 : vector<2x128xf32>
    %cst_226 = arith.constant 1.000000e+00 : f32
    %275 = vector.broadcast %cst_226 : f32 to vector<2x128xf32>
    %276 = arith.addf %275, %274 : vector<2x128xf32>
    %277 = arith.divf %275, %276 : vector<2x128xf32>
    %278 = vector.extract_strided_slice %265 {offsets = [0, 128], sizes = [2, 128], strides = [1, 1]} : vector<2x384xf32> to vector<2x128xf32>
    %279 = vector.extract_strided_slice %269 {offsets = [0, 128], sizes = [2, 128], strides = [1, 1]} : vector<2x384xf32> to vector<2x128xf32>
    %280 = arith.addf %278, %279 : vector<2x128xf32>
    %281 = arith.negf %280 : vector<2x128xf32>
    %282 = math.exp %281 : vector<2x128xf32>
    %cst_227 = arith.constant 1.000000e+00 : f32
    %283 = vector.broadcast %cst_227 : f32 to vector<2x128xf32>
    %284 = arith.addf %283, %282 : vector<2x128xf32>
    %285 = arith.divf %283, %284 : vector<2x128xf32>
    %286 = vector.extract_strided_slice %265 {offsets = [0, 256], sizes = [2, 128], strides = [1, 1]} : vector<2x384xf32> to vector<2x128xf32>
    %287 = vector.extract_strided_slice %269 {offsets = [0, 256], sizes = [2, 128], strides = [1, 1]} : vector<2x384xf32> to vector<2x128xf32>
    %288 = arith.mulf %277, %287 : vector<2x128xf32>
    %289 = arith.addf %286, %288 : vector<2x128xf32>
    %290 = math.tanh %289 : vector<2x128xf32>
    %cst_228 = arith.constant 1.000000e+00 : f32
    %291 = vector.broadcast %cst_228 : f32 to vector<2x128xf32>
    %292 = arith.subf %291, %285 : vector<2x128xf32>
    %293 = arith.mulf %292, %290 : vector<2x128xf32>
    %294 = arith.mulf %285, %264 : vector<2x128xf32>
    %295 = arith.addf %293, %294 : vector<2x128xf32>
    %296 = vector.extract_strided_slice %201 {offsets = [6, 0], sizes = [2, 384], strides = [1, 1]} : vector<16x384xf32> to vector<2x384xf32>
    %297 = arith.truncf %295 : vector<2x128xf32> to vector<2x128xbf16>
    %cst_229 = arith.constant dense<0.000000e+00> : vector<2x384xf32>
    %298 = tpu.matmul %297, %194, %cst_229 {dimension_numbers = #tpu.dot_dimension_numbers<[1], [0], [0], [1], [0, 0, 1, 1], [], []>} : vector<2x128xbf16>, vector<128x384xbf16>, vector<2x384xf32> -> vector<2x384xf32>
    %299 = vector.broadcast %195 : vector<1x384xf32> to vector<2x384xf32>
    %300 = arith.addf %298, %299 : vector<2x384xf32>
    %301 = vector.extract_strided_slice %296 {offsets = [0, 0], sizes = [2, 128], strides = [1, 1]} : vector<2x384xf32> to vector<2x128xf32>
    %302 = vector.extract_strided_slice %300 {offsets = [0, 0], sizes = [2, 128], strides = [1, 1]} : vector<2x384xf32> to vector<2x128xf32>
    %303 = arith.addf %301, %302 : vector<2x128xf32>
    %304 = arith.negf %303 : vector<2x128xf32>
    %305 = math.exp %304 : vector<2x128xf32>
    %cst_230 = arith.constant 1.000000e+00 : f32
    %306 = vector.broadcast %cst_230 : f32 to vector<2x128xf32>
    %307 = arith.addf %306, %305 : vector<2x128xf32>
    %308 = arith.divf %306, %307 : vector<2x128xf32>
    %309 = vector.extract_strided_slice %296 {offsets = [0, 128], sizes = [2, 128], strides = [1, 1]} : vector<2x384xf32> to vector<2x128xf32>
    %310 = vector.extract_strided_slice %300 {offsets = [0, 128], sizes = [2, 128], strides = [1, 1]} : vector<2x384xf32> to vector<2x128xf32>
    %311 = arith.addf %309, %310 : vector<2x128xf32>
    %312 = arith.negf %311 : vector<2x128xf32>
    %313 = math.exp %312 : vector<2x128xf32>
    %cst_231 = arith.constant 1.000000e+00 : f32
    %314 = vector.broadcast %cst_231 : f32 to vector<2x128xf32>
    %315 = arith.addf %314, %313 : vector<2x128xf32>
    %316 = arith.divf %314, %315 : vector<2x128xf32>
    %317 = vector.extract_strided_slice %296 {offsets = [0, 256], sizes = [2, 128], strides = [1, 1]} : vector<2x384xf32> to vector<2x128xf32>
    %318 = vector.extract_strided_slice %300 {offsets = [0, 256], sizes = [2, 128], strides = [1, 1]} : vector<2x384xf32> to vector<2x128xf32>
    %319 = arith.mulf %308, %318 : vector<2x128xf32>
    %320 = arith.addf %317, %319 : vector<2x128xf32>
    %321 = math.tanh %320 : vector<2x128xf32>
    %cst_232 = arith.constant 1.000000e+00 : f32
    %322 = vector.broadcast %cst_232 : f32 to vector<2x128xf32>
    %323 = arith.subf %322, %316 : vector<2x128xf32>
    %324 = arith.mulf %323, %321 : vector<2x128xf32>
    %325 = arith.mulf %316, %295 : vector<2x128xf32>
    %326 = arith.addf %324, %325 : vector<2x128xf32>
    %327 = vector.extract_strided_slice %201 {offsets = [8, 0], sizes = [2, 384], strides = [1, 1]} : vector<16x384xf32> to vector<2x384xf32>
    %328 = arith.truncf %326 : vector<2x128xf32> to vector<2x128xbf16>
    %cst_233 = arith.constant dense<0.000000e+00> : vector<2x384xf32>
    %329 = tpu.matmul %328, %194, %cst_233 {dimension_numbers = #tpu.dot_dimension_numbers<[1], [0], [0], [1], [0, 0, 1, 1], [], []>} : vector<2x128xbf16>, vector<128x384xbf16>, vector<2x384xf32> -> vector<2x384xf32>
    %330 = vector.broadcast %195 : vector<1x384xf32> to vector<2x384xf32>
    %331 = arith.addf %329, %330 : vector<2x384xf32>
    %332 = vector.extract_strided_slice %327 {offsets = [0, 0], sizes = [2, 128], strides = [1, 1]} : vector<2x384xf32> to vector<2x128xf32>
    %333 = vector.extract_strided_slice %331 {offsets = [0, 0], sizes = [2, 128], strides = [1, 1]} : vector<2x384xf32> to vector<2x128xf32>
    %334 = arith.addf %332, %333 : vector<2x128xf32>
    %335 = arith.negf %334 : vector<2x128xf32>
    %336 = math.exp %335 : vector<2x128xf32>
    %cst_234 = arith.constant 1.000000e+00 : f32
    %337 = vector.broadcast %cst_234 : f32 to vector<2x128xf32>
    %338 = arith.addf %337, %336 : vector<2x128xf32>
    %339 = arith.divf %337, %338 : vector<2x128xf32>
    %340 = vector.extract_strided_slice %327 {offsets = [0, 128], sizes = [2, 128], strides = [1, 1]} : vector<2x384xf32> to vector<2x128xf32>
    %341 = vector.extract_strided_slice %331 {offsets = [0, 128], sizes = [2, 128], strides = [1, 1]} : vector<2x384xf32> to vector<2x128xf32>
    %342 = arith.addf %340, %341 : vector<2x128xf32>
    %343 = arith.negf %342 : vector<2x128xf32>
    %344 = math.exp %343 : vector<2x128xf32>
    %cst_235 = arith.constant 1.000000e+00 : f32
    %345 = vector.broadcast %cst_235 : f32 to vector<2x128xf32>
    %346 = arith.addf %345, %344 : vector<2x128xf32>
    %347 = arith.divf %345, %346 : vector<2x128xf32>
    %348 = vector.extract_strided_slice %327 {offsets = [0, 256], sizes = [2, 128], strides = [1, 1]} : vector<2x384xf32> to vector<2x128xf32>
    %349 = vector.extract_strided_slice %331 {offsets = [0, 256], sizes = [2, 128], strides = [1, 1]} : vector<2x384xf32> to vector<2x128xf32>
    %350 = arith.mulf %339, %349 : vector<2x128xf32>
    %351 = arith.addf %348, %350 : vector<2x128xf32>
    %352 = math.tanh %351 : vector<2x128xf32>
    %cst_236 = arith.constant 1.000000e+00 : f32
    %353 = vector.broadcast %cst_236 : f32 to vector<2x128xf32>
    %354 = arith.subf %353, %347 : vector<2x128xf32>
    %355 = arith.mulf %354, %352 : vector<2x128xf32>
    %356 = arith.mulf %347, %326 : vector<2x128xf32>
    %357 = arith.addf %355, %356 : vector<2x128xf32>
    %358 = vector.extract_strided_slice %201 {offsets = [10, 0], sizes = [2, 384], strides = [1, 1]} : vector<16x384xf32> to vector<2x384xf32>
    %359 = arith.truncf %357 : vector<2x128xf32> to vector<2x128xbf16>
    %cst_237 = arith.constant dense<0.000000e+00> : vector<2x384xf32>
    %360 = tpu.matmul %359, %194, %cst_237 {dimension_numbers = #tpu.dot_dimension_numbers<[1], [0], [0], [1], [0, 0, 1, 1], [], []>} : vector<2x128xbf16>, vector<128x384xbf16>, vector<2x384xf32> -> vector<2x384xf32>
    %361 = vector.broadcast %195 : vector<1x384xf32> to vector<2x384xf32>
    %362 = arith.addf %360, %361 : vector<2x384xf32>
    %363 = vector.extract_strided_slice %358 {offsets = [0, 0], sizes = [2, 128], strides = [1, 1]} : vector<2x384xf32> to vector<2x128xf32>
    %364 = vector.extract_strided_slice %362 {offsets = [0, 0], sizes = [2, 128], strides = [1, 1]} : vector<2x384xf32> to vector<2x128xf32>
    %365 = arith.addf %363, %364 : vector<2x128xf32>
    %366 = arith.negf %365 : vector<2x128xf32>
    %367 = math.exp %366 : vector<2x128xf32>
    %cst_238 = arith.constant 1.000000e+00 : f32
    %368 = vector.broadcast %cst_238 : f32 to vector<2x128xf32>
    %369 = arith.addf %368, %367 : vector<2x128xf32>
    %370 = arith.divf %368, %369 : vector<2x128xf32>
    %371 = vector.extract_strided_slice %358 {offsets = [0, 128], sizes = [2, 128], strides = [1, 1]} : vector<2x384xf32> to vector<2x128xf32>
    %372 = vector.extract_strided_slice %362 {offsets = [0, 128], sizes = [2, 128], strides = [1, 1]} : vector<2x384xf32> to vector<2x128xf32>
    %373 = arith.addf %371, %372 : vector<2x128xf32>
    %374 = arith.negf %373 : vector<2x128xf32>
    %375 = math.exp %374 : vector<2x128xf32>
    %cst_239 = arith.constant 1.000000e+00 : f32
    %376 = vector.broadcast %cst_239 : f32 to vector<2x128xf32>
    %377 = arith.addf %376, %375 : vector<2x128xf32>
    %378 = arith.divf %376, %377 : vector<2x128xf32>
    %379 = vector.extract_strided_slice %358 {offsets = [0, 256], sizes = [2, 128], strides = [1, 1]} : vector<2x384xf32> to vector<2x128xf32>
    %380 = vector.extract_strided_slice %362 {offsets = [0, 256], sizes = [2, 128], strides = [1, 1]} : vector<2x384xf32> to vector<2x128xf32>
    %381 = arith.mulf %370, %380 : vector<2x128xf32>
    %382 = arith.addf %379, %381 : vector<2x128xf32>
    %383 = math.tanh %382 : vector<2x128xf32>
    %cst_240 = arith.constant 1.000000e+00 : f32
    %384 = vector.broadcast %cst_240 : f32 to vector<2x128xf32>
    %385 = arith.subf %384, %378 : vector<2x128xf32>
    %386 = arith.mulf %385, %383 : vector<2x128xf32>
    %387 = arith.mulf %378, %357 : vector<2x128xf32>
    %388 = arith.addf %386, %387 : vector<2x128xf32>
    %389 = vector.extract_strided_slice %201 {offsets = [12, 0], sizes = [2, 384], strides = [1, 1]} : vector<16x384xf32> to vector<2x384xf32>
    %390 = arith.truncf %388 : vector<2x128xf32> to vector<2x128xbf16>
    %cst_241 = arith.constant dense<0.000000e+00> : vector<2x384xf32>
    %391 = tpu.matmul %390, %194, %cst_241 {dimension_numbers = #tpu.dot_dimension_numbers<[1], [0], [0], [1], [0, 0, 1, 1], [], []>} : vector<2x128xbf16>, vector<128x384xbf16>, vector<2x384xf32> -> vector<2x384xf32>
    %392 = vector.broadcast %195 : vector<1x384xf32> to vector<2x384xf32>
    %393 = arith.addf %391, %392 : vector<2x384xf32>
    %394 = vector.extract_strided_slice %389 {offsets = [0, 0], sizes = [2, 128], strides = [1, 1]} : vector<2x384xf32> to vector<2x128xf32>
    %395 = vector.extract_strided_slice %393 {offsets = [0, 0], sizes = [2, 128], strides = [1, 1]} : vector<2x384xf32> to vector<2x128xf32>
    %396 = arith.addf %394, %395 : vector<2x128xf32>
    %397 = arith.negf %396 : vector<2x128xf32>
    %398 = math.exp %397 : vector<2x128xf32>
    %cst_242 = arith.constant 1.000000e+00 : f32
    %399 = vector.broadcast %cst_242 : f32 to vector<2x128xf32>
    %400 = arith.addf %399, %398 : vector<2x128xf32>
    %401 = arith.divf %399, %400 : vector<2x128xf32>
    %402 = vector.extract_strided_slice %389 {offsets = [0, 128], sizes = [2, 128], strides = [1, 1]} : vector<2x384xf32> to vector<2x128xf32>
    %403 = vector.extract_strided_slice %393 {offsets = [0, 128], sizes = [2, 128], strides = [1, 1]} : vector<2x384xf32> to vector<2x128xf32>
    %404 = arith.addf %402, %403 : vector<2x128xf32>
    %405 = arith.negf %404 : vector<2x128xf32>
    %406 = math.exp %405 : vector<2x128xf32>
    %cst_243 = arith.constant 1.000000e+00 : f32
    %407 = vector.broadcast %cst_243 : f32 to vector<2x128xf32>
    %408 = arith.addf %407, %406 : vector<2x128xf32>
    %409 = arith.divf %407, %408 : vector<2x128xf32>
    %410 = vector.extract_strided_slice %389 {offsets = [0, 256], sizes = [2, 128], strides = [1, 1]} : vector<2x384xf32> to vector<2x128xf32>
    %411 = vector.extract_strided_slice %393 {offsets = [0, 256], sizes = [2, 128], strides = [1, 1]} : vector<2x384xf32> to vector<2x128xf32>
    %412 = arith.mulf %401, %411 : vector<2x128xf32>
    %413 = arith.addf %410, %412 : vector<2x128xf32>
    %414 = math.tanh %413 : vector<2x128xf32>
    %cst_244 = arith.constant 1.000000e+00 : f32
    %415 = vector.broadcast %cst_244 : f32 to vector<2x128xf32>
    %416 = arith.subf %415, %409 : vector<2x128xf32>
    %417 = arith.mulf %416, %414 : vector<2x128xf32>
    %418 = arith.mulf %409, %388 : vector<2x128xf32>
    %419 = arith.addf %417, %418 : vector<2x128xf32>
    %420 = vector.extract_strided_slice %201 {offsets = [14, 0], sizes = [2, 384], strides = [1, 1]} : vector<16x384xf32> to vector<2x384xf32>
    %421 = arith.truncf %419 : vector<2x128xf32> to vector<2x128xbf16>
    %cst_245 = arith.constant dense<0.000000e+00> : vector<2x384xf32>
    %422 = tpu.matmul %421, %194, %cst_245 {dimension_numbers = #tpu.dot_dimension_numbers<[1], [0], [0], [1], [0, 0, 1, 1], [], []>} : vector<2x128xbf16>, vector<128x384xbf16>, vector<2x384xf32> -> vector<2x384xf32>
    %423 = vector.broadcast %195 : vector<1x384xf32> to vector<2x384xf32>
    %424 = arith.addf %422, %423 : vector<2x384xf32>
    %425 = vector.extract_strided_slice %420 {offsets = [0, 0], sizes = [2, 128], strides = [1, 1]} : vector<2x384xf32> to vector<2x128xf32>
    %426 = vector.extract_strided_slice %424 {offsets = [0, 0], sizes = [2, 128], strides = [1, 1]} : vector<2x384xf32> to vector<2x128xf32>
    %427 = arith.addf %425, %426 : vector<2x128xf32>
    %428 = arith.negf %427 : vector<2x128xf32>
    %429 = math.exp %428 : vector<2x128xf32>
    %cst_246 = arith.constant 1.000000e+00 : f32
    %430 = vector.broadcast %cst_246 : f32 to vector<2x128xf32>
    %431 = arith.addf %430, %429 : vector<2x128xf32>
    %432 = arith.divf %430, %431 : vector<2x128xf32>
    %433 = vector.extract_strided_slice %420 {offsets = [0, 128], sizes = [2, 128], strides = [1, 1]} : vector<2x384xf32> to vector<2x128xf32>
    %434 = vector.extract_strided_slice %424 {offsets = [0, 128], sizes = [2, 128], strides = [1, 1]} : vector<2x384xf32> to vector<2x128xf32>
    %435 = arith.addf %433, %434 : vector<2x128xf32>
    %436 = arith.negf %435 : vector<2x128xf32>
    %437 = math.exp %436 : vector<2x128xf32>
    %cst_247 = arith.constant 1.000000e+00 : f32
    %438 = vector.broadcast %cst_247 : f32 to vector<2x128xf32>
    %439 = arith.addf %438, %437 : vector<2x128xf32>
    %440 = arith.divf %438, %439 : vector<2x128xf32>
    %441 = vector.extract_strided_slice %420 {offsets = [0, 256], sizes = [2, 128], strides = [1, 1]} : vector<2x384xf32> to vector<2x128xf32>
    %442 = vector.extract_strided_slice %424 {offsets = [0, 256], sizes = [2, 128], strides = [1, 1]} : vector<2x384xf32> to vector<2x128xf32>
    %443 = arith.mulf %432, %442 : vector<2x128xf32>
    %444 = arith.addf %441, %443 : vector<2x128xf32>
    %445 = math.tanh %444 : vector<2x128xf32>
    %cst_248 = arith.constant 1.000000e+00 : f32
    %446 = vector.broadcast %cst_248 : f32 to vector<2x128xf32>
    %447 = arith.subf %446, %440 : vector<2x128xf32>
    %448 = arith.mulf %447, %445 : vector<2x128xf32>
    %449 = arith.mulf %440, %419 : vector<2x128xf32>
    %450 = arith.addf %448, %449 : vector<2x128xf32>
    %c0_249 = arith.constant 0 : index
    %c0_250 = arith.constant 0 : index
    %451 = vector.load %arg18[%c0_249, %c0_250] : memref<1x32xf32, #tpu.memory_space<vmem>>, vector<1x32xf32>
    %452 = vector.broadcast %451 : vector<1x32xf32> to vector<2x32xf32>
    %453 = arith.mulf %193, %452 : vector<2x32xf32>
    %cst_251 = arith.constant dense<0.000000e+00> : vector<2xf32>
    %454 = vector.multi_reduction <add>, %453, %cst_251 [1] : vector<2x32xf32> to vector<2xf32>
    %455 = vector.shape_cast %454 : vector<2xf32> to vector<2x1xf32>
    %c0_252 = arith.constant 0 : index
    %c0_253 = arith.constant 0 : index
    %456 = vector.load %arg19[%c0_252, %c0_253] : memref<1x128xf32, #tpu.memory_space<vmem>>, vector<1x128xf32>
    %457 = vector.broadcast %456 : vector<1x128xf32> to vector<2x128xf32>
    %458 = arith.mulf %450, %457 : vector<2x128xf32>
    %cst_254 = arith.constant dense<0.000000e+00> : vector<2xf32>
    %459 = vector.multi_reduction <add>, %458, %cst_254 [1] : vector<2x128xf32> to vector<2xf32>
    %460 = vector.shape_cast %459 : vector<2xf32> to vector<2x1xf32>
    %461 = arith.addf %455, %460 : vector<2x1xf32>
    %462 = arith.negf %461 : vector<2x1xf32>
    %463 = math.exp %462 : vector<2x1xf32>
    %cst_255 = arith.constant 1.000000e+00 : f32
    %464 = vector.broadcast %cst_255 : f32 to vector<2x1xf32>
    %465 = arith.addf %464, %463 : vector<2x1xf32>
    %466 = arith.divf %464, %465 : vector<2x1xf32>
    %c0_256 = arith.constant 0 : index
    %c0_257 = arith.constant 0 : index
    %467 = vector.load %arg20[%c0_256, %c0_257] : memref<2x1xf32, #tpu.memory_space<vmem>>, vector<2x1xf32>
    tpu.vector_store %arg20[%c0_256, %c0_257], %466 {strides = array<i32>} : memref<2x1xf32, #tpu.memory_space<vmem>>, vector<2x1xf32>,
    return
  }
  func.func @transform_0(%arg0: i32) -> (i32, i32) {
    %c0_i32 = arith.constant 0 : i32
    %c0_i32_0 = arith.constant 0 : i32
    %c0_i32_1 = arith.constant 0 : i32
    return %c0_i32, %c0_i32_0 : i32, i32
  }
  func.func @transform_1(%arg0: i32) -> (i32, i32) {
    %c0_i32 = arith.constant 0 : i32
    %c0_i32_0 = arith.constant 0 : i32
    %c0_i32_1 = arith.constant 0 : i32
    return %c0_i32, %c0_i32_0 : i32, i32
  }
  func.func @transform_2(%arg0: i32) -> (i32, i32) {
    %c0_i32 = arith.constant 0 : i32
    %c0_i32_0 = arith.constant 0 : i32
    %c0_i32_1 = arith.constant 0 : i32
    return %c0_i32, %c0_i32_0 : i32, i32
  }
  func.func @transform_3(%arg0: i32) -> (i32, i32, i32) {
    %c0_i32 = arith.constant 0 : i32
    %c0_i32_0 = arith.constant 0 : i32
    %c0_i32_1 = arith.constant 0 : i32
    %c0_i32_2 = arith.constant 0 : i32
    return %c0_i32, %c0_i32_0, %c0_i32_1 : i32, i32, i32
  }
  func.func @transform_4(%arg0: i32) -> (i32, i32) {
    %c0_i32 = arith.constant 0 : i32
    %c0_i32_0 = arith.constant 0 : i32
    %c0_i32_1 = arith.constant 0 : i32
    return %c0_i32, %c0_i32_0 : i32, i32
  }
  func.func @transform_5(%arg0: i32) -> (i32, i32) {
    %c0_i32 = arith.constant 0 : i32
    %c0_i32_0 = arith.constant 0 : i32
    %c0_i32_1 = arith.constant 0 : i32
    return %c0_i32, %c0_i32_0 : i32, i32
  }
  func.func @transform_6(%arg0: i32) -> (i32, i32, i32) {
    %c0_i32 = arith.constant 0 : i32
    %c0_i32_0 = arith.constant 0 : i32
    %c0_i32_1 = arith.constant 0 : i32
    %c0_i32_2 = arith.constant 0 : i32
    return %c0_i32, %c0_i32_0, %c0_i32_1 : i32, i32, i32
  }
  func.func @transform_7(%arg0: i32) -> (i32, i32) {
    %c0_i32 = arith.constant 0 : i32
    %c0_i32_0 = arith.constant 0 : i32
    %c0_i32_1 = arith.constant 0 : i32
    return %c0_i32, %c0_i32_0 : i32, i32
  }
  func.func @transform_8(%arg0: i32) -> (i32, i32) {
    %c0_i32 = arith.constant 0 : i32
    %c0_i32_0 = arith.constant 0 : i32
    %c0_i32_1 = arith.constant 0 : i32
    return %c0_i32, %c0_i32_0 : i32, i32
  }
  func.func @transform_9(%arg0: i32) -> (i32, i32, i32) {
    %c0_i32 = arith.constant 0 : i32
    %c0_i32_0 = arith.constant 0 : i32
    %c0_i32_1 = arith.constant 0 : i32
    %c0_i32_2 = arith.constant 0 : i32
    return %c0_i32, %c0_i32_0, %c0_i32_1 : i32, i32, i32
  }
  func.func @transform_10(%arg0: i32) -> (i32, i32) {
    %c0_i32 = arith.constant 0 : i32
    %c0_i32_0 = arith.constant 0 : i32
    %c0_i32_1 = arith.constant 0 : i32
    return %c0_i32, %c0_i32_0 : i32, i32
  }
  func.func @transform_11(%arg0: i32) -> (i32, i32) {
    %c0_i32 = arith.constant 0 : i32
    %c0_i32_0 = arith.constant 0 : i32
    %c0_i32_1 = arith.constant 0 : i32
    return %c0_i32, %c0_i32_0 : i32, i32
  }
  func.func @transform_12(%arg0: i32) -> (i32, i32) {
    %c0_i32 = arith.constant 0 : i32
    %c0_i32_0 = arith.constant 0 : i32
    %c0_i32_1 = arith.constant 0 : i32
    return %c0_i32, %c0_i32_0 : i32, i32
  }
  func.func @transform_13(%arg0: i32) -> (i32, i32) {
    %c0_i32 = arith.constant 0 : i32
    %c0_i32_0 = arith.constant 0 : i32
    %c0_i32_1 = arith.constant 0 : i32
    return %c0_i32, %c0_i32_0 : i32, i32
  }
  func.func @transform_14(%arg0: i32) -> (i32, i32) {
    %c0_i32 = arith.constant 0 : i32
    %c0_i32_0 = arith.constant 0 : i32
    %c0_i32_1 = arith.constant 0 : i32
    return %c0_i32, %c0_i32_0 : i32, i32
  }
  func.func @transform_15(%arg0: i32) -> (i32, i32) {
    %c0_i32 = arith.constant 0 : i32
    %c0_i32_0 = arith.constant 0 : i32
    %c0_i32_1 = arith.constant 0 : i32
    return %c0_i32, %c0_i32_0 : i32, i32
  }
  func.func @transform_16(%arg0: i32) -> (i32, i32) {
    %c0_i32 = arith.constant 0 : i32
    %c0_i32_0 = arith.constant 0 : i32
    %c0_i32_1 = arith.constant 0 : i32
    return %c0_i32, %c0_i32_0 : i32, i32
  }
  func.func @transform_17(%arg0: i32) -> (i32, i32) {
    %c0_i32 = arith.constant 0 : i32
    %c0_i32_0 = arith.constant 0 : i32
    %c0_i32_1 = arith.constant 0 : i32
    return %c0_i32, %c0_i32_0 : i32, i32
  }
  func.func @transform_18(%arg0: i32) -> (i32, i32) {
    %c0_i32 = arith.constant 0 : i32
    %c0_i32_0 = arith.constant 0 : i32
    %c0_i32_1 = arith.constant 0 : i32
    return %c0_i32, %c0_i32_0 : i32, i32
  }
  func.func @transform_19(%arg0: i32) -> (i32, i32) {
    %c0_i32 = arith.constant 0 : i32
    %c0_i32_0 = arith.constant 0 : i32
    %c0_i32_1 = arith.constant 0 : i32
    return %c0_i32, %c0_i32_0 : i32, i32
  }
}

</mosaic_0001>

<llo_original>
// kernel: fake_sentence_discriminator.1
$region0: #{fake_sentence_discriminator.1}
  #allocation0 [shape = 'u32[]', space=smem, size = 0x4, offset = 0x4, fixed_abs, tag = 'smem constant byte address 0x4 - core index']
  #allocation1 [shape = 'u32[72,128]{1,0:T(1,128)}', space=vmem, size = 0x9000, scoped, tag = 'internal scratch']
  %s0 = inlined_call_operand.vmem [shape: bf16[128,48], index: 0, kind: input, shape index: {}]
  %s1 = inlined_call_operand.vmem [shape: bf16[48,16], index: 1, kind: input, shape index: {}]
  %s2 = inlined_call_operand.vmem [shape: f32[1,16], index: 2, kind: input, shape index: {}]
  %s3 = inlined_call_operand.vmem [shape: bf16[16,32,128], index: 3, kind: input, shape index: {}]
  %s4 = inlined_call_operand.vmem [shape: bf16[256,32], index: 4, kind: input, shape index: {}]
  %s5 = inlined_call_operand.vmem [shape: f32[1,32], index: 5, kind: input, shape index: {}]
  %s6 = inlined_call_operand.vmem [shape: bf16[16,8,32], index: 6, kind: input, shape index: {}]
  %s7 = inlined_call_operand.vmem [shape: bf16[512,32], index: 7, kind: input, shape index: {}]
  %s8 = inlined_call_operand.vmem [shape: f32[1,32], index: 8, kind: input, shape index: {}]
  %s9 = inlined_call_operand.vmem [shape: bf16[16,2,8], index: 9, kind: input, shape index: {}]
  %s10 = inlined_call_operand.vmem [shape: bf16[512,32], index: 10, kind: input, shape index: {}]
  %s11 = inlined_call_operand.vmem [shape: f32[1,32], index: 11, kind: input, shape index: {}]
  %s12 = inlined_call_operand.vmem [shape: bf16[16,16], index: 12, kind: input, shape index: {}]
  %s13 = inlined_call_operand.vmem [shape: bf16[16,384], index: 13, kind: input, shape index: {}]
  %s14 = inlined_call_operand.vmem [shape: bf16[128,384], index: 14, kind: input, shape index: {}]
  %s15 = inlined_call_operand.vmem [shape: f32[1,384], index: 15, kind: input, shape index: {}]
  %s16 = inlined_call_operand.vmem [shape: f32[1,384], index: 16, kind: input, shape index: {}]
  %s17 = inlined_call_operand.vmem [shape: f32[1,32], index: 17, kind: input, shape index: {}]
  %s18 = inlined_call_operand.vmem [shape: f32[1,128], index: 18, kind: input, shape index: {}]
  %s19 = inlined_call_operand.vmem [shape: f32[2,1], index: 19, kind: output, shape index: {}]
  %s20 = sld [smem:[#allocation0]]
  $region86: #{fake_sentence_discriminator.1} parent=0
    _
  %s22 = ssub.s32 1, %s20
  %s23 = scalar_select 0, %s22, %s20
  // Predicated region
  $region2: #{fake_sentence_discriminator.1} parent=0 // pred_check
    _
  $region3: #{fake_sentence_discriminator.1} parent=0 // pred_check_branch
    %25 = sbr.rel (0) target = $region5
  $region4: #{fake_sentence_discriminator.1} parent=0 // pred_region
    _
  $region5: #{fake_sentence_discriminator.1} parent=0 // pred_fallthru
    _
  // Predicated region
  $region6: #{fake_sentence_discriminator.1} parent=0 // pred_check
    _
  $region7: #{fake_sentence_discriminator.1} parent=0 // pred_check_branch
    %27 = sbr.rel (0) target = $region9
  $region8: #{fake_sentence_discriminator.1} parent=0 // pred_region
    _
  $region9: #{fake_sentence_discriminator.1} parent=0 // pred_fallthru
    _
  // Predicated region
  $region10: #{fake_sentence_discriminator.1} parent=0 // pred_check
    _
  $region11: #{fake_sentence_discriminator.1} parent=0 // pred_check_branch
    %29 = sbr.rel (0) target = $region13
  $region12: #{fake_sentence_discriminator.1} parent=0 // pred_region
    _
  $region13: #{fake_sentence_discriminator.1} parent=0 // pred_fallthru
    _
  // Predicated region
  $region14: #{fake_sentence_discriminator.1} parent=0 // pred_check
    _
  $region15: #{fake_sentence_discriminator.1} parent=0 // pred_check_branch
    %31 = sbr.rel (0) target = $region17
  $region16: #{fake_sentence_discriminator.1} parent=0 // pred_region
    _
  $region17: #{fake_sentence_discriminator.1} parent=0 // pred_fallthru
    _
  // Predicated region
  $region18: #{fake_sentence_discriminator.1} parent=0 // pred_check
    _
  $region19: #{fake_sentence_discriminator.1} parent=0 // pred_check_branch
    %33 = sbr.rel (0) target = $region21
  $region20: #{fake_sentence_discriminator.1} parent=0 // pred_region
    _
  $region21: #{fake_sentence_discriminator.1} parent=0 // pred_fallthru
    _
  // Predicated region
  $region22: #{fake_sentence_discriminator.1} parent=0 // pred_check
    _
  $region23: #{fake_sentence_discriminator.1} parent=0 // pred_check_branch
    %35 = sbr.rel (0) target = $region25
  $region24: #{fake_sentence_discriminator.1} parent=0 // pred_region
    _
  $region25: #{fake_sentence_discriminator.1} parent=0 // pred_fallthru
    _
  // Predicated region
  $region26: #{fake_sentence_discriminator.1} parent=0 // pred_check
    _
  $region27: #{fake_sentence_discriminator.1} parent=0 // pred_check_branch
    %37 = sbr.rel (0) target = $region29
  $region28: #{fake_sentence_discriminator.1} parent=0 // pred_region
    _
  $region29: #{fake_sentence_discriminator.1} parent=0 // pred_fallthru
    _
  // Predicated region
  $region30: #{fake_sentence_discriminator.1} parent=0 // pred_check
    _
  $region31: #{fake_sentence_discriminator.1} parent=0 // pred_check_branch
    %39 = sbr.rel (0) target = $region33
  $region32: #{fake_sentence_discriminator.1} parent=0 // pred_region
    _
  $region33: #{fake_sentence_discriminator.1} parent=0 // pred_fallthru
    _
  // Predicated region
  $region34: #{fake_sentence_discriminator.1} parent=0 // pred_check
    _
  $region35: #{fake_sentence_discriminator.1} parent=0 // pred_check_branch
    %41 = sbr.rel (0) target = $region37
  $region36: #{fake_sentence_discriminator.1} parent=0 // pred_region
    _
  $region37: #{fake_sentence_discriminator.1} parent=0 // pred_fallthru
    _
  // Predicated region
  $region38: #{fake_sentence_discriminator.1} parent=0 // pred_check
    _
  $region39: #{fake_sentence_discriminator.1} parent=0 // pred_check_branch
    %43 = sbr.rel (0) target = $region41
  $region40: #{fake_sentence_discriminator.1} parent=0 // pred_region
    _
  $region41: #{fake_sentence_discriminator.1} parent=0 // pred_fallthru
    _
  // Predicated region
  $region42: #{fake_sentence_discriminator.1} parent=0 // pred_check
    _
  $region43: #{fake_sentence_discriminator.1} parent=0 // pred_check_branch
    %45 = sbr.rel (0) target = $region45
  $region44: #{fake_sentence_discriminator.1} parent=0 // pred_region
    _
  $region45: #{fake_sentence_discriminator.1} parent=0 // pred_fallthru
    _
  // Predicated region
  $region46: #{fake_sentence_discriminator.1} parent=0 // pred_check
    _
  $region47: #{fake_sentence_discriminator.1} parent=0 // pred_check_branch
    %47 = sbr.rel (0) target = $region49
  $region48: #{fake_sentence_discriminator.1} parent=0 // pred_region
    _
  $region49: #{fake_sentence_discriminator.1} parent=0 // pred_fallthru
    _
  // Predicated region
  $region50: #{fake_sentence_discriminator.1} parent=0 // pred_check
    _
  $region51: #{fake_sentence_discriminator.1} parent=0 // pred_check_branch
    %49 = sbr.rel (0) target = $region53
  $region52: #{fake_sentence_discriminator.1} parent=0 // pred_region
    _
  $region53: #{fake_sentence_discriminator.1} parent=0 // pred_fallthru
    _
  // Predicated region
  $region54: #{fake_sentence_discriminator.1} parent=0 // pred_check
    _
  $region55: #{fake_sentence_discriminator.1} parent=0 // pred_check_branch
    %51 = sbr.rel (0) target = $region57
  $region56: #{fake_sentence_discriminator.1} parent=0 // pred_region
    _
  $region57: #{fake_sentence_discriminator.1} parent=0 // pred_fallthru
    _
  // Predicated region
  $region58: #{fake_sentence_discriminator.1} parent=0 // pred_check
    _
  $region59: #{fake_sentence_discriminator.1} parent=0 // pred_check_branch
    %53 = sbr.rel (0) target = $region61
  $region60: #{fake_sentence_discriminator.1} parent=0 // pred_region
    _
  $region61: #{fake_sentence_discriminator.1} parent=0 // pred_fallthru
    _
  // Predicated region
  $region62: #{fake_sentence_discriminator.1} parent=0 // pred_check
    _
  $region63: #{fake_sentence_discriminator.1} parent=0 // pred_check_branch
    %55 = sbr.rel (0) target = $region65
  $region64: #{fake_sentence_discriminator.1} parent=0 // pred_region
    _
  $region65: #{fake_sentence_discriminator.1} parent=0 // pred_fallthru
    _
  // Predicated region
  $region66: #{fake_sentence_discriminator.1} parent=0 // pred_check
    _
  $region67: #{fake_sentence_discriminator.1} parent=0 // pred_check_branch
    %57 = sbr.rel (0) target = $region69
  $region68: #{fake_sentence_discriminator.1} parent=0 // pred_region
    _
  $region69: #{fake_sentence_discriminator.1} parent=0 // pred_fallthru
    _
  // Predicated region
  $region70: #{fake_sentence_discriminator.1} parent=0 // pred_check
    _
  $region71: #{fake_sentence_discriminator.1} parent=0 // pred_check_branch
    %59 = sbr.rel (0) target = $region73
  $region72: #{fake_sentence_discriminator.1} parent=0 // pred_region
    _
  $region73: #{fake_sentence_discriminator.1} parent=0 // pred_fallthru
    _
  // Predicated region
  $region74: #{fake_sentence_discriminator.1} parent=0 // pred_check
    _
  $region75: #{fake_sentence_discriminator.1} parent=0 // pred_check_branch
    %61 = sbr.rel (0) target = $region77
  $region76: #{fake_sentence_discriminator.1} parent=0 // pred_region
    _
  $region77: #{fake_sentence_discriminator.1} parent=0 // pred_fallthru
    _
  %v63 = vld [vmem:[%s0] sm:$0xf]
  %v64 = vld [vmem:[%s0 + $0x4] sm:$0xf]
  %v65 = vld [vmem:[%s0 + $0x8] sm:$0xf]
  %v66 = vld [vmem:[%s0 + $0xc] sm:$0xf]
  %v67 = vld [vmem:[%s0 + $0x10] sm:$0xf]
  %v68 = vld [vmem:[%s0 + $0x14] sm:$0xf]
  %v69 = vld [vmem:[%s0 + $0x18] sm:$0xf]
  %v70 = vld [vmem:[%s0 + $0x1c] sm:$0xf]
  %v71 = vld [vmem:[%s0 + $0x20] sm:$0xf]
  %v72 = vld [vmem:[%s0 + $0x24] sm:$0xf]
  %v73 = vld [vmem:[%s0 + $0x28] sm:$0xf]
  %v74 = vld [vmem:[%s0 + $0x2c] sm:$0xf]
  %v75 = vld [vmem:[%s0 + $0x30] sm:$0xf]
  %v76 = vld [vmem:[%s0 + $0x34] sm:$0xf]
  %v77 = vld [vmem:[%s0 + $0x38] sm:$0xf]
  %v78 = vld [vmem:[%s0 + $0x3c] sm:$0xf]
  %v79 = vld [vmem:[%s1] sm:$0xf]
  %v80 = vld [vmem:[%s1 + $0x4] sm:$0xf]
  %v81 = vld [vmem:[%s1 + $0x8] sm:$0xf]
  %v82 = vld [vmem:[%s1 + $0xc] sm:$0xf]
  %v83 = vld [vmem:[%s1 + $0x10] sm:$0xf]
  %v84 = vld [vmem:[%s1 + $0x14] sm:$0xf]
  %v85 = vld [vmem:[%s2] sm:$0x1]
  %v87 = vperm.slane %v85, 0
  %v105 = vunpack.c.l.b16 %v63
  %v106 = vunpack.c.l.b16 %v64
  %v107 = vunpack.c.l.b16 %v65
  %v108 = vunpack.c.l.b16 %v66
  %v109 = vunpack.c.l.b16 %v67
  %v110 = vunpack.c.l.b16 %v68
  %v111 = vunpack.c.l.b16 %v69
  %v112 = vunpack.c.l.b16 %v70
  %v113 = vunpack.c.l.b16 %v71
  %v114 = vunpack.c.l.b16 %v72
  %v115 = vunpack.c.l.b16 %v73
  %v116 = vunpack.c.l.b16 %v74
  %v117 = vunpack.c.l.b16 %v75
  %v118 = vunpack.c.l.b16 %v76
  %v119 = vunpack.c.l.b16 %v77
  %v120 = vunpack.c.l.b16 %v78
  %v121 = vpack.c.b16 %v106, %v105
  %v122 = vpack.c.b16 %v108, %v107
  %v123 = vpack.c.b16 %v110, %v109
  %v124 = vpack.c.b16 %v112, %v111
  %v125 = vpack.c.b16 %v114, %v113
  %v126 = vpack.c.b16 %v116, %v115
  %v127 = vpack.c.b16 %v118, %v117
  %v128 = vpack.c.b16 %v120, %v119
  %v135 = vunpack.c.l.b16 %v79
  %v136 = vunpack.c.l.b16 %v80
  %v137 = vunpack.c.l.b16 %v81
  %v138 = vunpack.c.l.b16 %v82
  %v139 = vunpack.c.l.b16 %v83
  %v140 = vunpack.c.l.b16 %v84
  %v141 = vpack.c.b16 %v136, %v135
  %v142 = vpack.c.b16 %v138, %v137
  %v143 = vpack.c.b16 %v140, %v139
  %vm147 = vcmask 392192
  %v149 = vsel %vm147, %v121, 0
  %v152 = vsel %vm147, %v122, 0
  %v155 = vsel %vm147, %v123, 0
  %v158 = vsel %vm147, %v124, 0
  %v161 = vsel %vm147, %v125, 0
  %v164 = vsel %vm147, %v126, 0
  %v167 = vsel %vm147, %v127, 0
  %v170 = vsel %vm147, %v128, 0
  %172 = vmatpush.bf16.msra.mxu0 0
  %173 = vmatpush.bf16.msra.mxu0 0
  %174 = vmatpush.bf16.msra.mxu0 0
  %175 = vmatpush.bf16.msra.mxu0 0
  %176 = vmatpush.bf16.msra.mxu0 0
  %177 = vmatpush.bf16.msra.mxu0 %v143
  %178 = vmatpush.bf16.msra.mxu0 %v142
  %179 = vmatpush.bf16.msra.mxu0 %v141
  %180 = vmatmul.bf16.gmra.mxu0 %v149
  %v181 = vpop.f32.mrf.mxu0
  %v182 = vadd.f32 %v87, %v181
  %v183 = vpop.f32.mrf.mxu0
  %v184 = vadd.f32 %v87, %v183
  %185 = vmatmul.bf16.gmra.mxu0 %v152
  %v186 = vpop.f32.mrf.mxu0
  %v187 = vadd.f32 %v87, %v186
  %v188 = vpop.f32.mrf.mxu0
  %v189 = vadd.f32 %v87, %v188
  %190 = vmatmul.bf16.gmra.mxu0 %v155
  %v191 = vpop.f32.mrf.mxu0
  %v192 = vadd.f32 %v87, %v191
  %v193 = vpop.f32.mrf.mxu0
  %v194 = vadd.f32 %v87, %v193
  %195 = vmatmul.bf16.gmra.mxu0 %v158
  %v196 = vpop.f32.mrf.mxu0
  %v197 = vadd.f32 %v87, %v196
  %v198 = vpop.f32.mrf.mxu0
  %v199 = vadd.f32 %v87, %v198
  %200 = vmatmul.bf16.gmra.mxu0 %v161
  %v201 = vpop.f32.mrf.mxu0
  %v202 = vadd.f32 %v87, %v201
  %v203 = vpop.f32.mrf.mxu0
  %v204 = vadd.f32 %v87, %v203
  %205 = vmatmul.bf16.gmra.mxu0 %v164
  %v206 = vpop.f32.mrf.mxu0
  %v207 = vadd.f32 %v87, %v206
  %v208 = vpop.f32.mrf.mxu0
  %v209 = vadd.f32 %v87, %v208
  %210 = vmatmul.bf16.gmra.mxu0 %v167
  %v211 = vpop.f32.mrf.mxu0
  %v212 = vadd.f32 %v87, %v211
  %v213 = vpop.f32.mrf.mxu0
  %v214 = vadd.f32 %v87, %v213
  %215 = vmatmul.bf16.gmra.mxu0 %v170
  %v216 = vpop.f32.mrf.mxu0
  %v217 = vadd.f32 %v87, %v216
  %v218 = vpop.f32.mrf.mxu0
  %v219 = vadd.f32 %v87, %v218
  %220 = vdwg.mxu0
  %vm221 = vcmp.ge.f32.partialorder %v182, 0.0
  %vm222 = vcmp.ge.f32.partialorder %v184, 0.0
  %vm223 = vcmp.ge.f32.partialorder %v187, 0.0
  %vm224 = vcmp.ge.f32.partialorder %v189, 0.0
  %vm225 = vcmp.ge.f32.partialorder %v192, 0.0
  %vm226 = vcmp.ge.f32.partialorder %v194, 0.0
  %vm227 = vcmp.ge.f32.partialorder %v197, 0.0
  %vm228 = vcmp.ge.f32.partialorder %v199, 0.0
  %vm229 = vcmp.ge.f32.partialorder %v202, 0.0
  %vm230 = vcmp.ge.f32.partialorder %v204, 0.0
  %vm231 = vcmp.ge.f32.partialorder %v207, 0.0
  %vm232 = vcmp.ge.f32.partialorder %v209, 0.0
  %vm233 = vcmp.ge.f32.partialorder %v212, 0.0
  %vm234 = vcmp.ge.f32.partialorder %v214, 0.0
  %vm235 = vcmp.ge.f32.partialorder %v217, 0.0
  %vm236 = vcmp.ge.f32.partialorder %v219, 0.0
  %v237 = vmul.f32 %v182, 0.2
  %v238 = vmul.f32 %v184, 0.2
  %v239 = vmul.f32 %v187, 0.2
  %v240 = vmul.f32 %v189, 0.2
  %v241 = vmul.f32 %v192, 0.2
  %v242 = vmul.f32 %v194, 0.2
  %v243 = vmul.f32 %v197, 0.2
  %v244 = vmul.f32 %v199, 0.2
  %v245 = vmul.f32 %v202, 0.2
  %v246 = vmul.f32 %v204, 0.2
  %v247 = vmul.f32 %v207, 0.2
  %v248 = vmul.f32 %v209, 0.2
  %v249 = vmul.f32 %v212, 0.2
  %v250 = vmul.f32 %v214, 0.2
  %v251 = vmul.f32 %v217, 0.2
  %v252 = vmul.f32 %v219, 0.2
  %v253 = vsel %vm221, %v182, %v237
  %v254 = vsel %vm222, %v184, %v238
  %v255 = vsel %vm223, %v187, %v239
  %v256 = vsel %vm224, %v189, %v240
  %v257 = vsel %vm225, %v192, %v241
  %v258 = vsel %vm226, %v194, %v242
  %v259 = vsel %vm227, %v197, %v243
  %v260 = vsel %vm228, %v199, %v244
  %v261 = vsel %vm229, %v202, %v245
  %v262 = vsel %vm230, %v204, %v246
  %v263 = vsel %vm231, %v207, %v247
  %v264 = vsel %vm232, %v209, %v248
  %v265 = vsel %vm233, %v212, %v249
  %v266 = vsel %vm234, %v214, %v250
  %v267 = vsel %vm235, %v217, %v251
  %v268 = vsel %vm236, %v219, %v252
  %v269 = vpack.c.bf16 %v254, %v253
  %v270 = vpack.c.bf16 %v256, %v255
  %v271 = vpack.c.bf16 %v258, %v257
  %v272 = vpack.c.bf16 %v260, %v259
  %v273 = vpack.c.bf16 %v262, %v261
  %v274 = vpack.c.bf16 %v264, %v263
  %v275 = vpack.c.bf16 %v266, %v265
  %v276 = vpack.c.bf16 %v268, %v267
  %v277 = vld [vmem:[%s3] sm:$0xf]
  %v278 = vld [vmem:[%s3 + $0x4] sm:$0xf]
  %v279 = vld [vmem:[%s3 + $0x8] sm:$0xf]
  %v280 = vld [vmem:[%s3 + $0xc] sm:$0xf]
  %v285 = vunpack.c.l.b16 %v277
  %v286 = vunpack.c.l.b16 %v278
  %v287 = vunpack.c.l.b16 %v279
  %v288 = vunpack.c.l.b16 %v280
  %v289 = vpack.c.b16 %v286, %v285
  %v290 = vpack.c.b16 %v288, %v287
  %293 = vmatpush.bf16.msra.mxu0 %v276
  %294 = vmatpush.bf16.msra.mxu0 %v275
  %295 = vmatpush.bf16.msra.mxu0 %v274
  %296 = vmatpush.bf16.msra.mxu0 %v273
  %297 = vmatpush.bf16.msra.mxu0 %v272
  %298 = vmatpush.bf16.msra.mxu0 %v271
  %299 = vmatpush.bf16.msra.mxu0 %v270
  %300 = vmatpush.bf16.msra.mxu0 %v269
  %301 = vmatmul.bf16.gmra.mxu0 %v289
  %v302 = vpop.f32.mrf.mxu0
  %v303 = vadd.f32 0.0, %v302
  %v304 = vpop.f32.mrf.mxu0
  %v305 = vadd.f32 0.0, %v304
  %306 = vmatmul.bf16.gmra.mxu0 %v290
  %v307 = vpop.f32.mrf.mxu0
  %v308 = vadd.f32 0.0, %v307
  %v309 = vpop.f32.mrf.mxu0
  %v310 = vadd.f32 0.0, %v309
  %311 = vdwg.mxu0
  %s312 = scalar_lea.vmem %s3, 16
  %v313 = vld [vmem:[%s312] sm:$0xf]
  %v314 = vld [vmem:[%s312 + $0x4] sm:$0xf]
  %v315 = vld [vmem:[%s312 + $0x8] sm:$0xf]
  %v316 = vld [vmem:[%s312 + $0xc] sm:$0xf]
  %v321 = vunpack.c.l.b16 %v313
  %v322 = vunpack.c.l.b16 %v314
  %v323 = vunpack.c.l.b16 %v315
  %v324 = vunpack.c.l.b16 %v316
  %v325 = vpack.c.b16 %v322, %v321
  %v326 = vpack.c.b16 %v324, %v323
  %329 = vmatpush.bf16.msra.mxu0 %v276
  %330 = vmatpush.bf16.msra.mxu0 %v275
  %331 = vmatpush.bf16.msra.mxu0 %v274
  %332 = vmatpush.bf16.msra.mxu0 %v273
  %333 = vmatpush.bf16.msra.mxu0 %v272
  %334 = vmatpush.bf16.msra.mxu0 %v271
  %335 = vmatpush.bf16.msra.mxu0 %v270
  %336 = vmatpush.bf16.msra.mxu0 %v269
  %337 = vmatmul.bf16.gmra.mxu0 %v325
  %v338 = vpop.f32.mrf.mxu0
  %v339 = vadd.f32 0.0, %v338
  %v340 = vpop.f32.mrf.mxu0
  %v341 = vadd.f32 0.0, %v340
  %342 = vmatmul.bf16.gmra.mxu0 %v326
  %v343 = vpop.f32.mrf.mxu0
  %v344 = vadd.f32 0.0, %v343
  %v345 = vpop.f32.mrf.mxu0
  %v346 = vadd.f32 0.0, %v345
  %347 = vdwg.mxu0
  %s348 = scalar_lea.vmem %s3, 32
  %v349 = vld [vmem:[%s348] sm:$0xf]
  %v350 = vld [vmem:[%s348 + $0x4] sm:$0xf]
  %v351 = vld [vmem:[%s348 + $0x8] sm:$0xf]
  %v352 = vld [vmem:[%s348 + $0xc] sm:$0xf]
  %v357 = vunpack.c.l.b16 %v349
  %v358 = vunpack.c.l.b16 %v350
  %v359 = vunpack.c.l.b16 %v351
  %v360 = vunpack.c.l.b16 %v352
  %v361 = vpack.c.b16 %v358, %v357
  %v362 = vpack.c.b16 %v360, %v359
  %365 = vmatpush.bf16.msra.mxu0 %v276
  %366 = vmatpush.bf16.msra.mxu0 %v275
  %367 = vmatpush.bf16.msra.mxu0 %v274
  %368 = vmatpush.bf16.msra.mxu0 %v273
  %369 = vmatpush.bf16.msra.mxu0 %v272
  %370 = vmatpush.bf16.msra.mxu0 %v271
  %371 = vmatpush.bf16.msra.mxu0 %v270
  %372 = vmatpush.bf16.msra.mxu0 %v269
  %373 = vmatmul.bf16.gmra.mxu0 %v361
  %v374 = vpop.f32.mrf.mxu0
  %v375 = vadd.f32 0.0, %v374
  %v376 = vpop.f32.mrf.mxu0
  %v377 = vadd.f32 0.0, %v376
  %378 = vmatmul.bf16.gmra.mxu0 %v362
  %v379 = vpop.f32.mrf.mxu0
  %v380 = vadd.f32 0.0, %v379
  %v381 = vpop.f32.mrf.mxu0
  %v382 = vadd.f32 0.0, %v381
  %383 = vdwg.mxu0
  %s384 = scalar_lea.vmem %s3, 48
  %v385 = vld [vmem:[%s384] sm:$0xf]
  %v386 = vld [vmem:[%s384 + $0x4] sm:$0xf]
  %v387 = vld [vmem:[%s384 + $0x8] sm:$0xf]
  %v388 = vld [vmem:[%s384 + $0xc] sm:$0xf]
  %v393 = vunpack.c.l.b16 %v385
  %v394 = vunpack.c.l.b16 %v386
  %v395 = vunpack.c.l.b16 %v387
  %v396 = vunpack.c.l.b16 %v388
  %v397 = vpack.c.b16 %v394, %v393
  %v398 = vpack.c.b16 %v396, %v395
  %401 = vmatpush.bf16.msra.mxu0 %v276
  %402 = vmatpush.bf16.msra.mxu0 %v275
  %403 = vmatpush.bf16.msra.mxu0 %v274
  %404 = vmatpush.bf16.msra.mxu0 %v273
  %405 = vmatpush.bf16.msra.mxu0 %v272
  %406 = vmatpush.bf16.msra.mxu0 %v271
  %407 = vmatpush.bf16.msra.mxu0 %v270
  %408 = vmatpush.bf16.msra.mxu0 %v269
  %409 = vmatmul.bf16.gmra.mxu0 %v397
  %v410 = vpop.f32.mrf.mxu0
  %v411 = vadd.f32 0.0, %v410
  %v412 = vpop.f32.mrf.mxu0
  %v413 = vadd.f32 0.0, %v412
  %414 = vmatmul.bf16.gmra.mxu0 %v398
  %v415 = vpop.f32.mrf.mxu0
  %v416 = vadd.f32 0.0, %v415
  %v417 = vpop.f32.mrf.mxu0
  %v418 = vadd.f32 0.0, %v417
  %419 = vdwg.mxu0
  %s420 = scalar_lea.vmem %s3, 64
  %v421 = vld [vmem:[%s420] sm:$0xf]
  %v422 = vld [vmem:[%s420 + $0x4] sm:$0xf]
  %v423 = vld [vmem:[%s420 + $0x8] sm:$0xf]
  %v424 = vld [vmem:[%s420 + $0xc] sm:$0xf]
  %v429 = vunpack.c.l.b16 %v421
  %v430 = vunpack.c.l.b16 %v422
  %v431 = vunpack.c.l.b16 %v423
  %v432 = vunpack.c.l.b16 %v424
  %v433 = vpack.c.b16 %v430, %v429
  %v434 = vpack.c.b16 %v432, %v431
  %437 = vmatpush.bf16.msra.mxu0 %v276
  %438 = vmatpush.bf16.msra.mxu0 %v275
  %439 = vmatpush.bf16.msra.mxu0 %v274
  %440 = vmatpush.bf16.msra.mxu0 %v273
  %441 = vmatpush.bf16.msra.mxu0 %v272
  %442 = vmatpush.bf16.msra.mxu0 %v271
  %443 = vmatpush.bf16.msra.mxu0 %v270
  %444 = vmatpush.bf16.msra.mxu0 %v269
  %445 = vmatmul.bf16.gmra.mxu0 %v433
  %v446 = vpop.f32.mrf.mxu0
  %v447 = vadd.f32 0.0, %v446
  %v448 = vpop.f32.mrf.mxu0
  %v449 = vadd.f32 0.0, %v448
  %450 = vmatmul.bf16.gmra.mxu0 %v434
  %v451 = vpop.f32.mrf.mxu0
  %v452 = vadd.f32 0.0, %v451
  %v453 = vpop.f32.mrf.mxu0
  %v454 = vadd.f32 0.0, %v453
  %455 = vdwg.mxu0
  %s456 = scalar_lea.vmem %s3, 80
  %v457 = vld [vmem:[%s456] sm:$0xf]
  %v458 = vld [vmem:[%s456 + $0x4] sm:$0xf]
  %v459 = vld [vmem:[%s456 + $0x8] sm:$0xf]
  %v460 = vld [vmem:[%s456 + $0xc] sm:$0xf]
  %v465 = vunpack.c.l.b16 %v457
  %v466 = vunpack.c.l.b16 %v458
  %v467 = vunpack.c.l.b16 %v459
  %v468 = vunpack.c.l.b16 %v460
  %v469 = vpack.c.b16 %v466, %v465
  %v470 = vpack.c.b16 %v468, %v467
  %473 = vmatpush.bf16.msra.mxu0 %v276
  %474 = vmatpush.bf16.msra.mxu0 %v275
  %475 = vmatpush.bf16.msra.mxu0 %v274
  %476 = vmatpush.bf16.msra.mxu0 %v273
  %477 = vmatpush.bf16.msra.mxu0 %v272
  %478 = vmatpush.bf16.msra.mxu0 %v271
  %479 = vmatpush.bf16.msra.mxu0 %v270
  %480 = vmatpush.bf16.msra.mxu0 %v269
  %481 = vmatmul.bf16.gmra.mxu0 %v469
  %v482 = vpop.f32.mrf.mxu0
  %v483 = vadd.f32 0.0, %v482
  %v484 = vpop.f32.mrf.mxu0
  %v485 = vadd.f32 0.0, %v484
  %486 = vmatmul.bf16.gmra.mxu0 %v470
  %v487 = vpop.f32.mrf.mxu0
  %v488 = vadd.f32 0.0, %v487
  %v489 = vpop.f32.mrf.mxu0
  %v490 = vadd.f32 0.0, %v489
  %491 = vdwg.mxu0
  %s492 = scalar_lea.vmem %s3, 96
  %v493 = vld [vmem:[%s492] sm:$0xf]
  %v494 = vld [vmem:[%s492 + $0x4] sm:$0xf]
  %v495 = vld [vmem:[%s492 + $0x8] sm:$0xf]
  %v496 = vld [vmem:[%s492 + $0xc] sm:$0xf]
  %v501 = vunpack.c.l.b16 %v493
  %v502 = vunpack.c.l.b16 %v494
  %v503 = vunpack.c.l.b16 %v495
  %v504 = vunpack.c.l.b16 %v496
  %v505 = vpack.c.b16 %v502, %v501
  %v506 = vpack.c.b16 %v504, %v503
  %509 = vmatpush.bf16.msra.mxu0 %v276
  %510 = vmatpush.bf16.msra.mxu0 %v275
  %511 = vmatpush.bf16.msra.mxu0 %v274
  %512 = vmatpush.bf16.msra.mxu0 %v273
  %513 = vmatpush.bf16.msra.mxu0 %v272
  %514 = vmatpush.bf16.msra.mxu0 %v271
  %515 = vmatpush.bf16.msra.mxu0 %v270
  %516 = vmatpush.bf16.msra.mxu0 %v269
  %517 = vmatmul.bf16.gmra.mxu0 %v505
  %v518 = vpop.f32.mrf.mxu0
  %v519 = vadd.f32 0.0, %v518
  %v520 = vpop.f32.mrf.mxu0
  %v521 = vadd.f32 0.0, %v520
  %522 = vmatmul.bf16.gmra.mxu0 %v506
  %v523 = vpop.f32.mrf.mxu0
  %v524 = vadd.f32 0.0, %v523
  %v525 = vpop.f32.mrf.mxu0
  %v526 = vadd.f32 0.0, %v525
  %527 = vdwg.mxu0
  %s528 = scalar_lea.vmem %s3, 112
  %v529 = vld [vmem:[%s528] sm:$0xf]
  %v530 = vld [vmem:[%s528 + $0x4] sm:$0xf]
  %v531 = vld [vmem:[%s528 + $0x8] sm:$0xf]
  %v532 = vld [vmem:[%s528 + $0xc] sm:$0xf]
  %v537 = vunpack.c.l.b16 %v529
  %v538 = vunpack.c.l.b16 %v530
  %v539 = vunpack.c.l.b16 %v531
  %v540 = vunpack.c.l.b16 %v532
  %v541 = vpack.c.b16 %v538, %v537
  %v542 = vpack.c.b16 %v540, %v539
  %545 = vmatpush.bf16.msra.mxu0 %v276
  %546 = vmatpush.bf16.msra.mxu0 %v275
  %547 = vmatpush.bf16.msra.mxu0 %v274
  %548 = vmatpush.bf16.msra.mxu0 %v273
  %549 = vmatpush.bf16.msra.mxu0 %v272
  %550 = vmatpush.bf16.msra.mxu0 %v271
  %551 = vmatpush.bf16.msra.mxu0 %v270
  %552 = vmatpush.bf16.msra.mxu0 %v269
  %553 = vmatmul.bf16.gmra.mxu0 %v541
  %v554 = vpop.f32.mrf.mxu0
  %v555 = vadd.f32 0.0, %v554
  %v556 = vpop.f32.mrf.mxu0
  %v557 = vadd.f32 0.0, %v556
  %558 = vmatmul.bf16.gmra.mxu0 %v542
  %v559 = vpop.f32.mrf.mxu0
  %v560 = vadd.f32 0.0, %v559
  %v561 = vpop.f32.mrf.mxu0
  %v562 = vadd.f32 0.0, %v561
  %563 = vdwg.mxu0
  %s564 = scalar_lea.vmem %s3, 128
  %v565 = vld [vmem:[%s564] sm:$0xf]
  %v566 = vld [vmem:[%s564 + $0x4] sm:$0xf]
  %v567 = vld [vmem:[%s564 + $0x8] sm:$0xf]
  %v568 = vld [vmem:[%s564 + $0xc] sm:$0xf]
  %v573 = vunpack.c.l.b16 %v565
  %v574 = vunpack.c.l.b16 %v566
  %v575 = vunpack.c.l.b16 %v567
  %v576 = vunpack.c.l.b16 %v568
  %v577 = vpack.c.b16 %v574, %v573
  %v578 = vpack.c.b16 %v576, %v575
  %581 = vmatpush.bf16.msra.mxu0 %v276
  %582 = vmatpush.bf16.msra.mxu0 %v275
  %583 = vmatpush.bf16.msra.mxu0 %v274
  %584 = vmatpush.bf16.msra.mxu0 %v273
  %585 = vmatpush.bf16.msra.mxu0 %v272
  %586 = vmatpush.bf16.msra.mxu0 %v271
  %587 = vmatpush.bf16.msra.mxu0 %v270
  %588 = vmatpush.bf16.msra.mxu0 %v269
  %589 = vmatmul.bf16.gmra.mxu0 %v577
  %v590 = vpop.f32.mrf.mxu0
  %v591 = vadd.f32 0.0, %v590
  %v592 = vpop.f32.mrf.mxu0
  %v593 = vadd.f32 0.0, %v592
  %594 = vmatmul.bf16.gmra.mxu0 %v578
  %v595 = vpop.f32.mrf.mxu0
  %v596 = vadd.f32 0.0, %v595
  %v597 = vpop.f32.mrf.mxu0
  %v598 = vadd.f32 0.0, %v597
  %599 = vdwg.mxu0
  %s600 = scalar_lea.vmem %s3, 144
  %v601 = vld [vmem:[%s600] sm:$0xf]
  %v602 = vld [vmem:[%s600 + $0x4] sm:$0xf]
  %v603 = vld [vmem:[%s600 + $0x8] sm:$0xf]
  %v604 = vld [vmem:[%s600 + $0xc] sm:$0xf]
  %v609 = vunpack.c.l.b16 %v601
  %v610 = vunpack.c.l.b16 %v602
  %v611 = vunpack.c.l.b16 %v603
  %v612 = vunpack.c.l.b16 %v604
  %v613 = vpack.c.b16 %v610, %v609
  %v614 = vpack.c.b16 %v612, %v611
  %617 = vmatpush.bf16.msra.mxu0 %v276
  %618 = vmatpush.bf16.msra.mxu0 %v275
  %619 = vmatpush.bf16.msra.mxu0 %v274
  %620 = vmatpush.bf16.msra.mxu0 %v273
  %621 = vmatpush.bf16.msra.mxu0 %v272
  %622 = vmatpush.bf16.msra.mxu0 %v271
  %623 = vmatpush.bf16.msra.mxu0 %v270
  %624 = vmatpush.bf16.msra.mxu0 %v269
  %625 = vmatmul.bf16.gmra.mxu0 %v613
  %v626 = vpop.f32.mrf.mxu0
  %v627 = vadd.f32 0.0, %v626
  %v628 = vpop.f32.mrf.mxu0
  %v629 = vadd.f32 0.0, %v628
  %630 = vmatmul.bf16.gmra.mxu0 %v614
  %v631 = vpop.f32.mrf.mxu0
  %v632 = vadd.f32 0.0, %v631
  %v633 = vpop.f32.mrf.mxu0
  %v634 = vadd.f32 0.0, %v633
  %635 = vdwg.mxu0
  %s636 = scalar_lea.vmem %s3, 160
  %v637 = vld [vmem:[%s636] sm:$0xf]
  %v638 = vld [vmem:[%s636 + $0x4] sm:$0xf]
  %v639 = vld [vmem:[%s636 + $0x8] sm:$0xf]
  %v640 = vld [vmem:[%s636 + $0xc] sm:$0xf]
  %v645 = vunpack.c.l.b16 %v637
  %v646 = vunpack.c.l.b16 %v638
  %v647 = vunpack.c.l.b16 %v639
  %v648 = vunpack.c.l.b16 %v640
  %v649 = vpack.c.b16 %v646, %v645
  %v650 = vpack.c.b16 %v648, %v647
  %653 = vmatpush.bf16.msra.mxu0 %v276
  %654 = vmatpush.bf16.msra.mxu0 %v275
  %655 = vmatpush.bf16.msra.mxu0 %v274
  %656 = vmatpush.bf16.msra.mxu0 %v273
  %657 = vmatpush.bf16.msra.mxu0 %v272
  %658 = vmatpush.bf16.msra.mxu0 %v271
  %659 = vmatpush.bf16.msra.mxu0 %v270
  %660 = vmatpush.bf16.msra.mxu0 %v269
  %661 = vmatmul.bf16.gmra.mxu0 %v649
  %v662 = vpop.f32.mrf.mxu0
  %v663 = vadd.f32 0.0, %v662
  %v664 = vpop.f32.mrf.mxu0
  %v665 = vadd.f32 0.0, %v664
  %666 = vmatmul.bf16.gmra.mxu0 %v650
  %v667 = vpop.f32.mrf.mxu0
  %v668 = vadd.f32 0.0, %v667
  %v669 = vpop.f32.mrf.mxu0
  %v670 = vadd.f32 0.0, %v669
  %671 = vdwg.mxu0
  %s672 = scalar_lea.vmem %s3, 176
  %v673 = vld [vmem:[%s672] sm:$0xf]
  %v674 = vld [vmem:[%s672 + $0x4] sm:$0xf]
  %v675 = vld [vmem:[%s672 + $0x8] sm:$0xf]
  %v676 = vld [vmem:[%s672 + $0xc] sm:$0xf]
  %v681 = vunpack.c.l.b16 %v673
  %v682 = vunpack.c.l.b16 %v674
  %v683 = vunpack.c.l.b16 %v675
  %v684 = vunpack.c.l.b16 %v676
  %v685 = vpack.c.b16 %v682, %v681
  %v686 = vpack.c.b16 %v684, %v683
  %689 = vmatpush.bf16.msra.mxu0 %v276
  %690 = vmatpush.bf16.msra.mxu0 %v275
  %691 = vmatpush.bf16.msra.mxu0 %v274
  %692 = vmatpush.bf16.msra.mxu0 %v273
  %693 = vmatpush.bf16.msra.mxu0 %v272
  %694 = vmatpush.bf16.msra.mxu0 %v271
  %695 = vmatpush.bf16.msra.mxu0 %v270
  %696 = vmatpush.bf16.msra.mxu0 %v269
  %697 = vmatmul.bf16.gmra.mxu0 %v685
  %v698 = vpop.f32.mrf.mxu0
  %v699 = vadd.f32 0.0, %v698
  %v700 = vpop.f32.mrf.mxu0
  %v701 = vadd.f32 0.0, %v700
  %702 = vmatmul.bf16.gmra.mxu0 %v686
  %v703 = vpop.f32.mrf.mxu0
  %v704 = vadd.f32 0.0, %v703
  %v705 = vpop.f32.mrf.mxu0
  %v706 = vadd.f32 0.0, %v705
  %707 = vdwg.mxu0
  %s708 = scalar_lea.vmem %s3, 192
  %v709 = vld [vmem:[%s708] sm:$0xf]
  %v710 = vld [vmem:[%s708 + $0x4] sm:$0xf]
  %v711 = vld [vmem:[%s708 + $0x8] sm:$0xf]
  %v712 = vld [vmem:[%s708 + $0xc] sm:$0xf]
  %v717 = vunpack.c.l.b16 %v709
  %v718 = vunpack.c.l.b16 %v710
  %v719 = vunpack.c.l.b16 %v711
  %v720 = vunpack.c.l.b16 %v712
  %v721 = vpack.c.b16 %v718, %v717
  %v722 = vpack.c.b16 %v720, %v719
  %725 = vmatpush.bf16.msra.mxu0 %v276
  %726 = vmatpush.bf16.msra.mxu0 %v275
  %727 = vmatpush.bf16.msra.mxu0 %v274
  %728 = vmatpush.bf16.msra.mxu0 %v273
  %729 = vmatpush.bf16.msra.mxu0 %v272
  %730 = vmatpush.bf16.msra.mxu0 %v271
  %731 = vmatpush.bf16.msra.mxu0 %v270
  %732 = vmatpush.bf16.msra.mxu0 %v269
  %733 = vmatmul.bf16.gmra.mxu0 %v721
  %v734 = vpop.f32.mrf.mxu0
  %v735 = vadd.f32 0.0, %v734
  %v736 = vpop.f32.mrf.mxu0
  %v737 = vadd.f32 0.0, %v736
  %738 = vmatmul.bf16.gmra.mxu0 %v722
  %v739 = vpop.f32.mrf.mxu0
  %v740 = vadd.f32 0.0, %v739
  %v741 = vpop.f32.mrf.mxu0
  %v742 = vadd.f32 0.0, %v741
  %743 = vdwg.mxu0
  %s744 = scalar_lea.vmem %s3, 208
  %v745 = vld [vmem:[%s744] sm:$0xf]
  %v746 = vld [vmem:[%s744 + $0x4] sm:$0xf]
  %v747 = vld [vmem:[%s744 + $0x8] sm:$0xf]
  %v748 = vld [vmem:[%s744 + $0xc] sm:$0xf]
  %v753 = vunpack.c.l.b16 %v745
  %v754 = vunpack.c.l.b16 %v746
  %v755 = vunpack.c.l.b16 %v747
  %v756 = vunpack.c.l.b16 %v748
  %v757 = vpack.c.b16 %v754, %v753
  %v758 = vpack.c.b16 %v756, %v755
  %761 = vmatpush.bf16.msra.mxu0 %v276
  %762 = vmatpush.bf16.msra.mxu0 %v275
  %763 = vmatpush.bf16.msra.mxu0 %v274
  %764 = vmatpush.bf16.msra.mxu0 %v273
  %765 = vmatpush.bf16.msra.mxu0 %v272
  %766 = vmatpush.bf16.msra.mxu0 %v271
  %767 = vmatpush.bf16.msra.mxu0 %v270
  %768 = vmatpush.bf16.msra.mxu0 %v269
  %769 = vmatmul.bf16.gmra.mxu0 %v757
  %v770 = vpop.f32.mrf.mxu0
  %v771 = vadd.f32 0.0, %v770
  %v772 = vpop.f32.mrf.mxu0
  %v773 = vadd.f32 0.0, %v772
  %774 = vmatmul.bf16.gmra.mxu0 %v758
  %v775 = vpop.f32.mrf.mxu0
  %v776 = vadd.f32 0.0, %v775
  %v777 = vpop.f32.mrf.mxu0
  %v778 = vadd.f32 0.0, %v777
  %779 = vdwg.mxu0
  %s780 = scalar_lea.vmem %s3, 224
  %v781 = vld [vmem:[%s780] sm:$0xf]
  %v782 = vld [vmem:[%s780 + $0x4] sm:$0xf]
  %v783 = vld [vmem:[%s780 + $0x8] sm:$0xf]
  %v784 = vld [vmem:[%s780 + $0xc] sm:$0xf]
  %v789 = vunpack.c.l.b16 %v781
  %v790 = vunpack.c.l.b16 %v782
  %v791 = vunpack.c.l.b16 %v783
  %v792 = vunpack.c.l.b16 %v784
  %v793 = vpack.c.b16 %v790, %v789
  %v794 = vpack.c.b16 %v792, %v791
  %797 = vmatpush.bf16.msra.mxu0 %v276
  %798 = vmatpush.bf16.msra.mxu0 %v275
  %799 = vmatpush.bf16.msra.mxu0 %v274
  %800 = vmatpush.bf16.msra.mxu0 %v273
  %801 = vmatpush.bf16.msra.mxu0 %v272
  %802 = vmatpush.bf16.msra.mxu0 %v271
  %803 = vmatpush.bf16.msra.mxu0 %v270
  %804 = vmatpush.bf16.msra.mxu0 %v269
  %805 = vmatmul.bf16.gmra.mxu0 %v793
  %v806 = vpop.f32.mrf.mxu0
  %v807 = vadd.f32 0.0, %v806
  %v808 = vpop.f32.mrf.mxu0
  %v809 = vadd.f32 0.0, %v808
  %810 = vmatmul.bf16.gmra.mxu0 %v794
  %v811 = vpop.f32.mrf.mxu0
  %v812 = vadd.f32 0.0, %v811
  %v813 = vpop.f32.mrf.mxu0
  %v814 = vadd.f32 0.0, %v813
  %815 = vdwg.mxu0
  %s816 = scalar_lea.vmem %s3, 240
  %v817 = vld [vmem:[%s816] sm:$0xf]
  %v818 = vld [vmem:[%s816 + $0x4] sm:$0xf]
  %v819 = vld [vmem:[%s816 + $0x8] sm:$0xf]
  %v820 = vld [vmem:[%s816 + $0xc] sm:$0xf]
  %v825 = vunpack.c.l.b16 %v817
  %v826 = vunpack.c.l.b16 %v818
  %v827 = vunpack.c.l.b16 %v819
  %v828 = vunpack.c.l.b16 %v820
  %v829 = vpack.c.b16 %v826, %v825
  %v830 = vpack.c.b16 %v828, %v827
  %833 = vmatpush.bf16.msra.mxu0 %v276
  %834 = vmatpush.bf16.msra.mxu0 %v275
  %835 = vmatpush.bf16.msra.mxu0 %v274
  %836 = vmatpush.bf16.msra.mxu0 %v273
  %837 = vmatpush.bf16.msra.mxu0 %v272
  %838 = vmatpush.bf16.msra.mxu0 %v271
  %839 = vmatpush.bf16.msra.mxu0 %v270
  %840 = vmatpush.bf16.msra.mxu0 %v269
  %841 = vmatmul.bf16.gmra.mxu0 %v829
  %v842 = vpop.f32.mrf.mxu0
  %v843 = vadd.f32 0.0, %v842
  %v844 = vpop.f32.mrf.mxu0
  %v845 = vadd.f32 0.0, %v844
  %846 = vmatmul.bf16.gmra.mxu0 %v830
  %v847 = vpop.f32.mrf.mxu0
  %v848 = vadd.f32 0.0, %v847
  %v849 = vpop.f32.mrf.mxu0
  %v850 = vadd.f32 0.0, %v849
  %851 = vdwg.mxu0
  %856 = vrot.lane.b32.xlu0 %v339, 16
  %v857 = vpop.permute.xlu0 %856
  %858 = vrot.lane.b32.xlu0 %v341, 16
  %v859 = vpop.permute.xlu0 %858
  %860 = vrot.lane.b32.xlu0 %v344, 16
  %v861 = vpop.permute.xlu0 %860
  %862 = vrot.lane.b32.xlu0 %v346, 16
  %v863 = vpop.permute.xlu0 %862
  %872 = vrot.lane.b32.xlu0 %v375, 32
  %v873 = vpop.permute.xlu0 %872
  %874 = vrot.lane.b32.xlu0 %v377, 32
  %v875 = vpop.permute.xlu0 %874
  %876 = vrot.lane.b32.xlu0 %v380, 32
  %v877 = vpop.permute.xlu0 %876
  %878 = vrot.lane.b32.xlu0 %v382, 32
  %v879 = vpop.permute.xlu0 %878
  %888 = vrot.lane.b32.xlu0 %v411, 48
  %v889 = vpop.permute.xlu0 %888
  %890 = vrot.lane.b32.xlu0 %v413, 48
  %v891 = vpop.permute.xlu0 %890
  %892 = vrot.lane.b32.xlu0 %v416, 48
  %v893 = vpop.permute.xlu0 %892
  %894 = vrot.lane.b32.xlu0 %v418, 48
  %v895 = vpop.permute.xlu0 %894
  %904 = vrot.lane.b32.xlu0 %v447, 64
  %v905 = vpop.permute.xlu0 %904
  %906 = vrot.lane.b32.xlu0 %v449, 64
  %v907 = vpop.permute.xlu0 %906
  %908 = vrot.lane.b32.xlu0 %v452, 64
  %v909 = vpop.permute.xlu0 %908
  %910 = vrot.lane.b32.xlu0 %v454, 64
  %v911 = vpop.permute.xlu0 %910
  %920 = vrot.lane.b32.xlu0 %v483, 80
  %v921 = vpop.permute.xlu0 %920
  %922 = vrot.lane.b32.xlu0 %v485, 80
  %v923 = vpop.permute.xlu0 %922
  %924 = vrot.lane.b32.xlu0 %v488, 80
  %v925 = vpop.permute.xlu0 %924
  %926 = vrot.lane.b32.xlu0 %v490, 80
  %v927 = vpop.permute.xlu0 %926
  %936 = vrot.lane.b32.xlu0 %v519, 96
  %v937 = vpop.permute.xlu0 %936
  %938 = vrot.lane.b32.xlu0 %v521, 96
  %v939 = vpop.permute.xlu0 %938
  %940 = vrot.lane.b32.xlu0 %v524, 96
  %v941 = vpop.permute.xlu0 %940
  %942 = vrot.lane.b32.xlu0 %v526, 96
  %v943 = vpop.permute.xlu0 %942
  %952 = vrot.lane.b32.xlu0 %v555, 112
  %v953 = vpop.permute.xlu0 %952
  %954 = vrot.lane.b32.xlu0 %v557, 112
  %v955 = vpop.permute.xlu0 %954
  %956 = vrot.lane.b32.xlu0 %v560, 112
  %v957 = vpop.permute.xlu0 %956
  %958 = vrot.lane.b32.xlu0 %v562, 112
  %v959 = vpop.permute.xlu0 %958
  %968 = vrot.lane.b32.xlu0 %v627, 16
  %v969 = vpop.permute.xlu0 %968
  %970 = vrot.lane.b32.xlu0 %v629, 16
  %v971 = vpop.permute.xlu0 %970
  %972 = vrot.lane.b32.xlu0 %v632, 16
  %v973 = vpop.permute.xlu0 %972
  %974 = vrot.lane.b32.xlu0 %v634, 16
  %v975 = vpop.permute.xlu0 %974
  %984 = vrot.lane.b32.xlu0 %v663, 32
  %v985 = vpop.permute.xlu0 %984
  %986 = vrot.lane.b32.xlu0 %v665, 32
  %v987 = vpop.permute.xlu0 %986
  %988 = vrot.lane.b32.xlu0 %v668, 32
  %v989 = vpop.permute.xlu0 %988
  %990 = vrot.lane.b32.xlu0 %v670, 32
  %v991 = vpop.permute.xlu0 %990
  %1000 = vrot.lane.b32.xlu0 %v699, 48
  %v1001 = vpop.permute.xlu0 %1000
  %1002 = vrot.lane.b32.xlu0 %v701, 48
  %v1003 = vpop.permute.xlu0 %1002
  %1004 = vrot.lane.b32.xlu0 %v704, 48
  %v1005 = vpop.permute.xlu0 %1004
  %1006 = vrot.lane.b32.xlu0 %v706, 48
  %v1007 = vpop.permute.xlu0 %1006
  %1016 = vrot.lane.b32.xlu0 %v735, 64
  %v1017 = vpop.permute.xlu0 %1016
  %1018 = vrot.lane.b32.xlu0 %v737, 64
  %v1019 = vpop.permute.xlu0 %1018
  %1020 = vrot.lane.b32.xlu0 %v740, 64
  %v1021 = vpop.permute.xlu0 %1020
  %1022 = vrot.lane.b32.xlu0 %v742, 64
  %v1023 = vpop.permute.xlu0 %1022
  %1032 = vrot.lane.b32.xlu0 %v771, 80
  %v1033 = vpop.permute.xlu0 %1032
  %1034 = vrot.lane.b32.xlu0 %v773, 80
  %v1035 = vpop.permute.xlu0 %1034
  %1036 = vrot.lane.b32.xlu0 %v776, 80
  %v1037 = vpop.permute.xlu0 %1036
  %1038 = vrot.lane.b32.xlu0 %v778, 80
  %v1039 = vpop.permute.xlu0 %1038
  %1048 = vrot.lane.b32.xlu0 %v807, 96
  %v1049 = vpop.permute.xlu0 %1048
  %1050 = vrot.lane.b32.xlu0 %v809, 96
  %v1051 = vpop.permute.xlu0 %1050
  %1052 = vrot.lane.b32.xlu0 %v812, 96
  %v1053 = vpop.permute.xlu0 %1052
  %1054 = vrot.lane.b32.xlu0 %v814, 96
  %v1055 = vpop.permute.xlu0 %1054
  %1064 = vrot.lane.b32.xlu0 %v843, 112
  %v1065 = vpop.permute.xlu0 %1064
  %1066 = vrot.lane.b32.xlu0 %v845, 112
  %v1067 = vpop.permute.xlu0 %1066
  %1068 = vrot.lane.b32.xlu0 %v848, 112
  %v1069 = vpop.permute.xlu0 %1068
  %1070 = vrot.lane.b32.xlu0 %v850, 112
  %v1071 = vpop.permute.xlu0 %1070
  %vm1076 = vcmask 130048
  %v1077 = vsel %vm1076, %v303, %v857
  %v1078 = vsel %vm1076, %v305, %v859
  %v1079 = vsel %vm1076, %v308, %v861
  %v1080 = vsel %vm1076, %v310, %v863
  %vm1081 = vcmask 261120
  %v1082 = vsel %vm1081, %v1077, %v873
  %v1083 = vsel %vm1081, %v1078, %v875
  %v1084 = vsel %vm1081, %v1079, %v877
  %v1085 = vsel %vm1081, %v1080, %v879
  %v1086 = vsel %vm147, %v1082, %v889
  %v1087 = vsel %vm147, %v1083, %v891
  %v1088 = vsel %vm147, %v1084, %v893
  %v1089 = vsel %vm147, %v1085, %v895
  %vm1090 = vcmask 523264
  %v1091 = vsel %vm1090, %v1086, %v905
  %v1092 = vsel %vm1090, %v1087, %v907
  %v1093 = vsel %vm1090, %v1088, %v909
  %v1094 = vsel %vm1090, %v1089, %v911
  %vm1095 = vcmask 654336
  %v1096 = vsel %vm1095, %v1091, %v921
  %v1097 = vsel %vm1095, %v1092, %v923
  %v1098 = vsel %vm1095, %v1093, %v925
  %v1099 = vsel %vm1095, %v1094, %v927
  %vm1100 = vcmask 785408
  %v1101 = vsel %vm1100, %v1096, %v937
  %v1102 = vsel %vm1100, %v1097, %v939
  %v1103 = vsel %vm1100, %v1098, %v941
  %v1104 = vsel %vm1100, %v1099, %v943
  %vm1105 = vcmask 916480
  %v1106 = vsel %vm1105, %v1101, %v953
  %v1107 = vsel %vm1105, %v1102, %v955
  %v1108 = vsel %vm1105, %v1103, %v957
  %v1109 = vsel %vm1105, %v1104, %v959
  %v1110 = vsel %vm1076, %v591, %v969
  %v1111 = vsel %vm1076, %v593, %v971
  %v1112 = vsel %vm1076, %v596, %v973
  %v1113 = vsel %vm1076, %v598, %v975
  %v1114 = vsel %vm1081, %v1110, %v985
  %v1115 = vsel %vm1081, %v1111, %v987
  %v1116 = vsel %vm1081, %v1112, %v989
  %v1117 = vsel %vm1081, %v1113, %v991
  %v1118 = vsel %vm147, %v1114, %v1001
  %v1119 = vsel %vm147, %v1115, %v1003
  %v1120 = vsel %vm147, %v1116, %v1005
  %v1121 = vsel %vm147, %v1117, %v1007
  %v1122 = vsel %vm1090, %v1118, %v1017
  %v1123 = vsel %vm1090, %v1119, %v1019
  %v1124 = vsel %vm1090, %v1120, %v1021
  %v1125 = vsel %vm1090, %v1121, %v1023
  %v1126 = vsel %vm1095, %v1122, %v1033
  %v1127 = vsel %vm1095, %v1123, %v1035
  %v1128 = vsel %vm1095, %v1124, %v1037
  %v1129 = vsel %vm1095, %v1125, %v1039
  %v1130 = vsel %vm1100, %v1126, %v1049
  %v1131 = vsel %vm1100, %v1127, %v1051
  %v1132 = vsel %vm1100, %v1128, %v1053
  %v1133 = vsel %vm1100, %v1129, %v1055
  %v1134 = vsel %vm1105, %v1130, %v1065
  %v1135 = vsel %vm1105, %v1131, %v1067
  %v1136 = vsel %vm1105, %v1132, %v1069
  %v1137 = vsel %vm1105, %v1133, %v1071
  %v1138 = vpack.c.bf16 %v1107, %v1106
  %v1139 = vpack.c.bf16 %v1135, %v1134
  %v1140 = vpack.c.bf16 %v1109, %v1108
  %v1141 = vpack.c.bf16 %v1137, %v1136
  %v1142 = vld [vmem:[%s4] sm:$0xf]
  %v1143 = vld [vmem:[%s4 + $0x4] sm:$0xf]
  %v1144 = vld [vmem:[%s4 + $0x8] sm:$0xf]
  %v1145 = vld [vmem:[%s4 + $0xc] sm:$0xf]
  %v1146 = vld [vmem:[%s4 + $0x10] sm:$0xf]
  %v1147 = vld [vmem:[%s4 + $0x14] sm:$0xf]
  %v1148 = vld [vmem:[%s4 + $0x18] sm:$0xf]
  %v1149 = vld [vmem:[%s4 + $0x1c] sm:$0xf]
  %v1150 = vld [vmem:[%s4 + $0x20] sm:$0xf]
  %v1151 = vld [vmem:[%s4 + $0x24] sm:$0xf]
  %v1152 = vld [vmem:[%s4 + $0x28] sm:$0xf]
  %v1153 = vld [vmem:[%s4 + $0x2c] sm:$0xf]
  %v1154 = vld [vmem:[%s4 + $0x30] sm:$0xf]
  %v1155 = vld [vmem:[%s4 + $0x34] sm:$0xf]
  %v1156 = vld [vmem:[%s4 + $0x38] sm:$0xf]
  %v1157 = vld [vmem:[%s4 + $0x3c] sm:$0xf]
  %v1158 = vld [vmem:[%s4 + $0x40] sm:$0xf]
  %v1159 = vld [vmem:[%s4 + $0x44] sm:$0xf]
  %v1160 = vld [vmem:[%s4 + $0x48] sm:$0xf]
  %v1161 = vld [vmem:[%s4 + $0x4c] sm:$0xf]
  %v1162 = vld [vmem:[%s4 + $0x50] sm:$0xf]
  %v1163 = vld [vmem:[%s4 + $0x54] sm:$0xf]
  %v1164 = vld [vmem:[%s4 + $0x58] sm:$0xf]
  %v1165 = vld [vmem:[%s4 + $0x5c] sm:$0xf]
  %v1166 = vld [vmem:[%s4 + $0x60] sm:$0xf]
  %v1167 = vld [vmem:[%s4 + $0x64] sm:$0xf]
  %v1168 = vld [vmem:[%s4 + $0x68] sm:$0xf]
  %v1169 = vld [vmem:[%s4 + $0x6c] sm:$0xf]
  %v1170 = vld [vmem:[%s4 + $0x70] sm:$0xf]
  %v1171 = vld [vmem:[%s4 + $0x74] sm:$0xf]
  %v1172 = vld [vmem:[%s4 + $0x78] sm:$0xf]
  %v1173 = vld [vmem:[%s4 + $0x7c] sm:$0xf]
  %v1174 = vld [vmem:[%s5] sm:$0x1]
  %v1176 = vperm.slane %v1174, 0
  %v1210 = vunpack.c.l.b16 %v1142
  %v1211 = vunpack.c.l.b16 %v1143
  %v1212 = vunpack.c.l.b16 %v1144
  %v1213 = vunpack.c.l.b16 %v1145
  %v1214 = vunpack.c.l.b16 %v1146
  %v1215 = vunpack.c.l.b16 %v1147
  %v1216 = vunpack.c.l.b16 %v1148
  %v1217 = vunpack.c.l.b16 %v1149
  %v1218 = vunpack.c.l.b16 %v1150
  %v1219 = vunpack.c.l.b16 %v1151
  %v1220 = vunpack.c.l.b16 %v1152
  %v1221 = vunpack.c.l.b16 %v1153
  %v1222 = vunpack.c.l.b16 %v1154
  %v1223 = vunpack.c.l.b16 %v1155
  %v1224 = vunpack.c.l.b16 %v1156
  %v1225 = vunpack.c.l.b16 %v1157
  %v1226 = vunpack.c.l.b16 %v1158
  %v1227 = vunpack.c.l.b16 %v1159
  %v1228 = vunpack.c.l.b16 %v1160
  %v1229 = vunpack.c.l.b16 %v1161
  %v1230 = vunpack.c.l.b16 %v1162
  %v1231 = vunpack.c.l.b16 %v1163
  %v1232 = vunpack.c.l.b16 %v1164
  %v1233 = vunpack.c.l.b16 %v1165
  %v1234 = vunpack.c.l.b16 %v1166
  %v1235 = vunpack.c.l.b16 %v1167
  %v1236 = vunpack.c.l.b16 %v1168
  %v1237 = vunpack.c.l.b16 %v1169
  %v1238 = vunpack.c.l.b16 %v1170
  %v1239 = vunpack.c.l.b16 %v1171
  %v1240 = vunpack.c.l.b16 %v1172
  %v1241 = vunpack.c.l.b16 %v1173
  %v1242 = vpack.c.b16 %v1211, %v1210
  %v1243 = vpack.c.b16 %v1213, %v1212
  %v1244 = vpack.c.b16 %v1215, %v1214
  %v1245 = vpack.c.b16 %v1217, %v1216
  %v1246 = vpack.c.b16 %v1219, %v1218
  %v1247 = vpack.c.b16 %v1221, %v1220
  %v1248 = vpack.c.b16 %v1223, %v1222
  %v1249 = vpack.c.b16 %v1225, %v1224
  %v1250 = vpack.c.b16 %v1227, %v1226
  %v1251 = vpack.c.b16 %v1229, %v1228
  %v1252 = vpack.c.b16 %v1231, %v1230
  %v1253 = vpack.c.b16 %v1233, %v1232
  %v1254 = vpack.c.b16 %v1235, %v1234
  %v1255 = vpack.c.b16 %v1237, %v1236
  %v1256 = vpack.c.b16 %v1239, %v1238
  %v1257 = vpack.c.b16 %v1241, %v1240
  %1274 = vmatpush.bf16.msra.mxu0 %v1249
  %1275 = vmatpush.bf16.msra.mxu0 %v1248
  %1276 = vmatpush.bf16.msra.mxu0 %v1247
  %1277 = vmatpush.bf16.msra.mxu0 %v1246
  %1278 = vmatpush.bf16.msra.mxu0 %v1245
  %1279 = vmatpush.bf16.msra.mxu0 %v1244
  %1280 = vmatpush.bf16.msra.mxu0 %v1243
  %1281 = vmatpush.bf16.msra.mxu0 %v1242
  %1282 = vmatmul.bf16.gmra.mxu0 %v1138
  %v1283 = vpop.f32.mrf.mxu0
  %v1284 = vadd.f32 %v1176, %v1283
  %v1285 = vpop.f32.mrf.mxu0
  %v1286 = vadd.f32 %v1176, %v1285
  %1287 = vmatmul.bf16.gmra.mxu0 %v1140
  %v1288 = vpop.f32.mrf.mxu0
  %v1289 = vadd.f32 %v1176, %v1288
  %v1290 = vpop.f32.mrf.mxu0
  %v1291 = vadd.f32 %v1176, %v1290
  %1292 = vdwg.mxu0
  %1293 = vmatpush.bf16.msra.mxu0 %v1257
  %1294 = vmatpush.bf16.msra.mxu0 %v1256
  %1295 = vmatpush.bf16.msra.mxu0 %v1255
  %1296 = vmatpush.bf16.msra.mxu0 %v1254
  %1297 = vmatpush.bf16.msra.mxu0 %v1253
  %1298 = vmatpush.bf16.msra.mxu0 %v1252
  %1299 = vmatpush.bf16.msra.mxu0 %v1251
  %1300 = vmatpush.bf16.msra.mxu0 %v1250
  %1301 = vmatmul.bf16.gmra.mxu0 %v1139
  %v1302 = vpop.f32.mrf.mxu0
  %v1303 = vadd.f32 %v1284, %v1302
  %v1304 = vpop.f32.mrf.mxu0
  %v1305 = vadd.f32 %v1286, %v1304
  %1306 = vmatmul.bf16.gmra.mxu0 %v1141
  %v1307 = vpop.f32.mrf.mxu0
  %v1308 = vadd.f32 %v1289, %v1307
  %v1309 = vpop.f32.mrf.mxu0
  %v1310 = vadd.f32 %v1291, %v1309
  %1311 = vdwg.mxu0
  %vm1312 = vcmp.ge.f32.partialorder %v1303, 0.0
  %vm1313 = vcmp.ge.f32.partialorder %v1305, 0.0
  %vm1314 = vcmp.ge.f32.partialorder %v1308, 0.0
  %vm1315 = vcmp.ge.f32.partialorder %v1310, 0.0
  %v1316 = vmul.f32 %v1303, 0.2
  %v1317 = vmul.f32 %v1305, 0.2
  %v1318 = vmul.f32 %v1308, 0.2
  %v1319 = vmul.f32 %v1310, 0.2
  %v1320 = vsel %vm1312, %v1303, %v1316
  %v1321 = vsel %vm1313, %v1305, %v1317
  %v1322 = vsel %vm1314, %v1308, %v1318
  %v1323 = vsel %vm1315, %v1310, %v1319
  %v1324 = vpack.c.bf16 %v1321, %v1320
  %v1325 = vpack.c.bf16 %v1323, %v1322
  %v1326 = vld [vmem:[%s6] sm:$0xf]
  %v1328 = vsel %vm1081, %v1326, 0
  %1330 = vmatpush.bf16.msra.mxu0 0
  %1331 = vmatpush.bf16.msra.mxu0 0
  %1332 = vmatpush.bf16.msra.mxu0 0
  %1333 = vmatpush.bf16.msra.mxu0 0
  %1334 = vmatpush.bf16.msra.mxu0 0
  %1335 = vmatpush.bf16.msra.mxu0 0
  %1336 = vmatpush.bf16.msra.mxu0 %v1325
  %1337 = vmatpush.bf16.msra.mxu0 %v1324
  %1338 = vmatmul.bf16.gmra.mxu0 %v1328
  %v1339 = vpop.f32.mrf.mxu0
  %v1340 = vadd.f32 0.0, %v1339
  %v1341 = vpop.f32.mrf.mxu0
  %1342 = vdwg.mxu0
  %s1343 = scalar_lea.vmem %s6, 4
  %v1344 = vld [vmem:[%s1343] sm:$0xf]
  %v1346 = vsel %vm1081, %v1344, 0
  %1348 = vmatpush.bf16.msra.mxu0 0
  %1349 = vmatpush.bf16.msra.mxu0 0
  %1350 = vmatpush.bf16.msra.mxu0 0
  %1351 = vmatpush.bf16.msra.mxu0 0
  %1352 = vmatpush.bf16.msra.mxu0 0
  %1353 = vmatpush.bf16.msra.mxu0 0
  %1354 = vmatpush.bf16.msra.mxu0 %v1325
  %1355 = vmatpush.bf16.msra.mxu0 %v1324
  %1356 = vmatmul.bf16.gmra.mxu0 %v1346
  %v1357 = vpop.f32.mrf.mxu0
  %v1358 = vadd.f32 0.0, %v1357
  %v1359 = vpop.f32.mrf.mxu0
  %1360 = vdwg.mxu0
  %s1361 = scalar_lea.vmem %s6, 8
  %v1362 = vld [vmem:[%s1361] sm:$0xf]
  %v1364 = vsel %vm1081, %v1362, 0
  %1366 = vmatpush.bf16.msra.mxu0 0
  %1367 = vmatpush.bf16.msra.mxu0 0
  %1368 = vmatpush.bf16.msra.mxu0 0
  %1369 = vmatpush.bf16.msra.mxu0 0
  %1370 = vmatpush.bf16.msra.mxu0 0
  %1371 = vmatpush.bf16.msra.mxu0 0
  %1372 = vmatpush.bf16.msra.mxu0 %v1325
  %1373 = vmatpush.bf16.msra.mxu0 %v1324
  %1374 = vmatmul.bf16.gmra.mxu0 %v1364
  %v1375 = vpop.f32.mrf.mxu0
  %v1376 = vadd.f32 0.0, %v1375
  %v1377 = vpop.f32.mrf.mxu0
  %1378 = vdwg.mxu0
  %s1379 = scalar_lea.vmem %s6, 12
  %v1380 = vld [vmem:[%s1379] sm:$0xf]
  %v1382 = vsel %vm1081, %v1380, 0
  %1384 = vmatpush.bf16.msra.mxu0 0
  %1385 = vmatpush.bf16.msra.mxu0 0
  %1386 = vmatpush.bf16.msra.mxu0 0
  %1387 = vmatpush.bf16.msra.mxu0 0
  %1388 = vmatpush.bf16.msra.mxu0 0
  %1389 = vmatpush.bf16.msra.mxu0 0
  %1390 = vmatpush.bf16.msra.mxu0 %v1325
  %1391 = vmatpush.bf16.msra.mxu0 %v1324
  %1392 = vmatmul.bf16.gmra.mxu0 %v1382
  %v1393 = vpop.f32.mrf.mxu0
  %v1394 = vadd.f32 0.0, %v1393
  %v1395 = vpop.f32.mrf.mxu0
  %1396 = vdwg.mxu0
  %s1397 = scalar_lea.vmem %s6, 16
  %v1398 = vld [vmem:[%s1397] sm:$0xf]
  %v1400 = vsel %vm1081, %v1398, 0
  %1402 = vmatpush.bf16.msra.mxu0 0
  %1403 = vmatpush.bf16.msra.mxu0 0
  %1404 = vmatpush.bf16.msra.mxu0 0
  %1405 = vmatpush.bf16.msra.mxu0 0
  %1406 = vmatpush.bf16.msra.mxu0 0
  %1407 = vmatpush.bf16.msra.mxu0 0
  %1408 = vmatpush.bf16.msra.mxu0 %v1325
  %1409 = vmatpush.bf16.msra.mxu0 %v1324
  %1410 = vmatmul.bf16.gmra.mxu0 %v1400
  %v1411 = vpop.f32.mrf.mxu0
  %v1412 = vadd.f32 0.0, %v1411
  %v1413 = vpop.f32.mrf.mxu0
  %1414 = vdwg.mxu0
  %s1415 = scalar_lea.vmem %s6, 20
  %v1416 = vld [vmem:[%s1415] sm:$0xf]
  %v1418 = vsel %vm1081, %v1416, 0
  %1420 = vmatpush.bf16.msra.mxu0 0
  %1421 = vmatpush.bf16.msra.mxu0 0
  %1422 = vmatpush.bf16.msra.mxu0 0
  %1423 = vmatpush.bf16.msra.mxu0 0
  %1424 = vmatpush.bf16.msra.mxu0 0
  %1425 = vmatpush.bf16.msra.mxu0 0
  %1426 = vmatpush.bf16.msra.mxu0 %v1325
  %1427 = vmatpush.bf16.msra.mxu0 %v1324
  %1428 = vmatmul.bf16.gmra.mxu0 %v1418
  %v1429 = vpop.f32.mrf.mxu0
  %v1430 = vadd.f32 0.0, %v1429
  %v1431 = vpop.f32.mrf.mxu0
  %1432 = vdwg.mxu0
  %s1433 = scalar_lea.vmem %s6, 24
  %v1434 = vld [vmem:[%s1433] sm:$0xf]
  %v1436 = vsel %vm1081, %v1434, 0
  %1438 = vmatpush.bf16.msra.mxu0 0
  %1439 = vmatpush.bf16.msra.mxu0 0
  %1440 = vmatpush.bf16.msra.mxu0 0
  %1441 = vmatpush.bf16.msra.mxu0 0
  %1442 = vmatpush.bf16.msra.mxu0 0
  %1443 = vmatpush.bf16.msra.mxu0 0
  %1444 = vmatpush.bf16.msra.mxu0 %v1325
  %1445 = vmatpush.bf16.msra.mxu0 %v1324
  %1446 = vmatmul.bf16.gmra.mxu0 %v1436
  %v1447 = vpop.f32.mrf.mxu0
  %v1448 = vadd.f32 0.0, %v1447
  %v1449 = vpop.f32.mrf.mxu0
  %1450 = vdwg.mxu0
  %s1451 = scalar_lea.vmem %s6, 28
  %v1452 = vld [vmem:[%s1451] sm:$0xf]
  %v1454 = vsel %vm1081, %v1452, 0
  %1456 = vmatpush.bf16.msra.mxu0 0
  %1457 = vmatpush.bf16.msra.mxu0 0
  %1458 = vmatpush.bf16.msra.mxu0 0
  %1459 = vmatpush.bf16.msra.mxu0 0
  %1460 = vmatpush.bf16.msra.mxu0 0
  %1461 = vmatpush.bf16.msra.mxu0 0
  %1462 = vmatpush.bf16.msra.mxu0 %v1325
  %1463 = vmatpush.bf16.msra.mxu0 %v1324
  %1464 = vmatmul.bf16.gmra.mxu0 %v1454
  %v1465 = vpop.f32.mrf.mxu0
  %v1466 = vadd.f32 0.0, %v1465
  %v1467 = vpop.f32.mrf.mxu0
  %1468 = vdwg.mxu0
  %s1469 = scalar_lea.vmem %s6, 32
  %v1470 = vld [vmem:[%s1469] sm:$0xf]
  %v1472 = vsel %vm1081, %v1470, 0
  %1474 = vmatpush.bf16.msra.mxu0 0
  %1475 = vmatpush.bf16.msra.mxu0 0
  %1476 = vmatpush.bf16.msra.mxu0 0
  %1477 = vmatpush.bf16.msra.mxu0 0
  %1478 = vmatpush.bf16.msra.mxu0 0
  %1479 = vmatpush.bf16.msra.mxu0 0
  %1480 = vmatpush.bf16.msra.mxu0 %v1325
  %1481 = vmatpush.bf16.msra.mxu0 %v1324
  %1482 = vmatmul.bf16.gmra.mxu0 %v1472
  %v1483 = vpop.f32.mrf.mxu0
  %v1484 = vadd.f32 0.0, %v1483
  %v1485 = vpop.f32.mrf.mxu0
  %1486 = vdwg.mxu0
  %s1487 = scalar_lea.vmem %s6, 36
  %v1488 = vld [vmem:[%s1487] sm:$0xf]
  %v1490 = vsel %vm1081, %v1488, 0
  %1492 = vmatpush.bf16.msra.mxu0 0
  %1493 = vmatpush.bf16.msra.mxu0 0
  %1494 = vmatpush.bf16.msra.mxu0 0
  %1495 = vmatpush.bf16.msra.mxu0 0
  %1496 = vmatpush.bf16.msra.mxu0 0
  %1497 = vmatpush.bf16.msra.mxu0 0
  %1498 = vmatpush.bf16.msra.mxu0 %v1325
  %1499 = vmatpush.bf16.msra.mxu0 %v1324
  %1500 = vmatmul.bf16.gmra.mxu0 %v1490
  %v1501 = vpop.f32.mrf.mxu0
  %v1502 = vadd.f32 0.0, %v1501
  %v1503 = vpop.f32.mrf.mxu0
  %1504 = vdwg.mxu0
  %s1505 = scalar_lea.vmem %s6, 40
  %v1506 = vld [vmem:[%s1505] sm:$0xf]
  %v1508 = vsel %vm1081, %v1506, 0
  %1510 = vmatpush.bf16.msra.mxu0 0
  %1511 = vmatpush.bf16.msra.mxu0 0
  %1512 = vmatpush.bf16.msra.mxu0 0
  %1513 = vmatpush.bf16.msra.mxu0 0
  %1514 = vmatpush.bf16.msra.mxu0 0
  %1515 = vmatpush.bf16.msra.mxu0 0
  %1516 = vmatpush.bf16.msra.mxu0 %v1325
  %1517 = vmatpush.bf16.msra.mxu0 %v1324
  %1518 = vmatmul.bf16.gmra.mxu0 %v1508
  %v1519 = vpop.f32.mrf.mxu0
  %v1520 = vadd.f32 0.0, %v1519
  %v1521 = vpop.f32.mrf.mxu0
  %1522 = vdwg.mxu0
  %s1523 = scalar_lea.vmem %s6, 44
  %v1524 = vld [vmem:[%s1523] sm:$0xf]
  %v1526 = vsel %vm1081, %v1524, 0
  %1528 = vmatpush.bf16.msra.mxu0 0
  %1529 = vmatpush.bf16.msra.mxu0 0
  %1530 = vmatpush.bf16.msra.mxu0 0
  %1531 = vmatpush.bf16.msra.mxu0 0
  %1532 = vmatpush.bf16.msra.mxu0 0
  %1533 = vmatpush.bf16.msra.mxu0 0
  %1534 = vmatpush.bf16.msra.mxu0 %v1325
  %1535 = vmatpush.bf16.msra.mxu0 %v1324
  %1536 = vmatmul.bf16.gmra.mxu0 %v1526
  %v1537 = vpop.f32.mrf.mxu0
  %v1538 = vadd.f32 0.0, %v1537
  %v1539 = vpop.f32.mrf.mxu0
  %1540 = vdwg.mxu0
  %s1541 = scalar_lea.vmem %s6, 48
  %v1542 = vld [vmem:[%s1541] sm:$0xf]
  %v1544 = vsel %vm1081, %v1542, 0
  %1546 = vmatpush.bf16.msra.mxu0 0
  %1547 = vmatpush.bf16.msra.mxu0 0
  %1548 = vmatpush.bf16.msra.mxu0 0
  %1549 = vmatpush.bf16.msra.mxu0 0
  %1550 = vmatpush.bf16.msra.mxu0 0
  %1551 = vmatpush.bf16.msra.mxu0 0
  %1552 = vmatpush.bf16.msra.mxu0 %v1325
  %1553 = vmatpush.bf16.msra.mxu0 %v1324
  %1554 = vmatmul.bf16.gmra.mxu0 %v1544
  %v1555 = vpop.f32.mrf.mxu0
  %v1556 = vadd.f32 0.0, %v1555
  %v1557 = vpop.f32.mrf.mxu0
  %1558 = vdwg.mxu0
  %s1559 = scalar_lea.vmem %s6, 52
  %v1560 = vld [vmem:[%s1559] sm:$0xf]
  %v1562 = vsel %vm1081, %v1560, 0
  %1564 = vmatpush.bf16.msra.mxu0 0
  %1565 = vmatpush.bf16.msra.mxu0 0
  %1566 = vmatpush.bf16.msra.mxu0 0
  %1567 = vmatpush.bf16.msra.mxu0 0
  %1568 = vmatpush.bf16.msra.mxu0 0
  %1569 = vmatpush.bf16.msra.mxu0 0
  %1570 = vmatpush.bf16.msra.mxu0 %v1325
  %1571 = vmatpush.bf16.msra.mxu0 %v1324
  %1572 = vmatmul.bf16.gmra.mxu0 %v1562
  %v1573 = vpop.f32.mrf.mxu0
  %v1574 = vadd.f32 0.0, %v1573
  %v1575 = vpop.f32.mrf.mxu0
  %1576 = vdwg.mxu0
  %s1577 = scalar_lea.vmem %s6, 56
  %v1578 = vld [vmem:[%s1577] sm:$0xf]
  %v1580 = vsel %vm1081, %v1578, 0
  %1582 = vmatpush.bf16.msra.mxu0 0
  %1583 = vmatpush.bf16.msra.mxu0 0
  %1584 = vmatpush.bf16.msra.mxu0 0
  %1585 = vmatpush.bf16.msra.mxu0 0
  %1586 = vmatpush.bf16.msra.mxu0 0
  %1587 = vmatpush.bf16.msra.mxu0 0
  %1588 = vmatpush.bf16.msra.mxu0 %v1325
  %1589 = vmatpush.bf16.msra.mxu0 %v1324
  %1590 = vmatmul.bf16.gmra.mxu0 %v1580
  %v1591 = vpop.f32.mrf.mxu0
  %v1592 = vadd.f32 0.0, %v1591
  %v1593 = vpop.f32.mrf.mxu0
  %1594 = vdwg.mxu0
  %s1595 = scalar_lea.vmem %s6, 60
  %v1596 = vld [vmem:[%s1595] sm:$0xf]
  %v1598 = vsel %vm1081, %v1596, 0
  %1600 = vmatpush.bf16.msra.mxu0 0
  %1601 = vmatpush.bf16.msra.mxu0 0
  %1602 = vmatpush.bf16.msra.mxu0 0
  %1603 = vmatpush.bf16.msra.mxu0 0
  %1604 = vmatpush.bf16.msra.mxu0 0
  %1605 = vmatpush.bf16.msra.mxu0 0
  %1606 = vmatpush.bf16.msra.mxu0 %v1325
  %1607 = vmatpush.bf16.msra.mxu0 %v1324
  %1608 = vmatmul.bf16.gmra.mxu0 %v1598
  %v1609 = vpop.f32.mrf.mxu0
  %v1610 = vadd.f32 0.0, %v1609
  %v1611 = vpop.f32.mrf.mxu0
  %1612 = vdwg.mxu0
  %1614 = vrot.lane.b32.xlu0 %v1358, 32
  %v1615 = vpop.permute.xlu0 %1614
  %1618 = vrot.lane.b32.xlu0 %v1376, 64
  %v1619 = vpop.permute.xlu0 %1618
  %1622 = vrot.lane.b32.xlu0 %v1394, 96
  %v1623 = vpop.permute.xlu0 %1622
  %1626 = vrot.lane.b32.xlu0 %v1430, 32
  %v1627 = vpop.permute.xlu0 %1626
  %1630 = vrot.lane.b32.xlu0 %v1448, 64
  %v1631 = vpop.permute.xlu0 %1630
  %1634 = vrot.lane.b32.xlu0 %v1466, 96
  %v1635 = vpop.permute.xlu0 %1634
  %1638 = vrot.lane.b32.xlu0 %v1502, 32
  %v1639 = vpop.permute.xlu0 %1638
  %1642 = vrot.lane.b32.xlu0 %v1520, 64
  %v1643 = vpop.permute.xlu0 %1642
  %1646 = vrot.lane.b32.xlu0 %v1538, 96
  %v1647 = vpop.permute.xlu0 %1646
  %1650 = vrot.lane.b32.xlu0 %v1574, 32
  %v1651 = vpop.permute.xlu0 %1650
  %1654 = vrot.lane.b32.xlu0 %v1592, 64
  %v1655 = vpop.permute.xlu0 %1654
  %1658 = vrot.lane.b32.xlu0 %v1610, 96
  %v1659 = vpop.permute.xlu0 %1658
  %v1661 = vsel %vm1081, %v1340, %v1615
  %v1662 = vsel %vm1090, %v1661, %v1619
  %v1663 = vsel %vm1100, %v1662, %v1623
  %v1664 = vsel %vm1081, %v1412, %v1627
  %v1665 = vsel %vm1090, %v1664, %v1631
  %v1666 = vsel %vm1100, %v1665, %v1635
  %v1667 = vsel %vm1081, %v1484, %v1639
  %v1668 = vsel %vm1090, %v1667, %v1643
  %v1669 = vsel %vm1100, %v1668, %v1647
  %v1670 = vsel %vm1081, %v1556, %v1651
  %v1671 = vsel %vm1090, %v1670, %v1655
  %v1672 = vsel %vm1100, %v1671, %v1659
  %v1673 = vpack.c.bf16 %v1663, %v1663
  %v1674 = vpack.c.bf16 %v1666, %v1666
  %v1675 = vpack.c.bf16 %v1669, %v1669
  %v1676 = vpack.c.bf16 %v1672, %v1672
  %v1677 = vld [vmem:[%s7] sm:$0xf]
  %v1678 = vld [vmem:[%s7 + $0x4] sm:$0xf]
  %v1679 = vld [vmem:[%s7 + $0x8] sm:$0xf]
  %v1680 = vld [vmem:[%s7 + $0xc] sm:$0xf]
  %v1681 = vld [vmem:[%s7 + $0x10] sm:$0xf]
  %v1682 = vld [vmem:[%s7 + $0x14] sm:$0xf]
  %v1683 = vld [vmem:[%s7 + $0x18] sm:$0xf]
  %v1684 = vld [vmem:[%s7 + $0x1c] sm:$0xf]
  %v1685 = vld [vmem:[%s7 + $0x20] sm:$0xf]
  %v1686 = vld [vmem:[%s7 + $0x24] sm:$0xf]
  %v1687 = vld [vmem:[%s7 + $0x28] sm:$0xf]
  %v1688 = vld [vmem:[%s7 + $0x2c] sm:$0xf]
  %v1689 = vld [vmem:[%s7 + $0x30] sm:$0xf]
  %v1690 = vld [vmem:[%s7 + $0x34] sm:$0xf]
  %v1691 = vld [vmem:[%s7 + $0x38] sm:$0xf]
  %v1692 = vld [vmem:[%s7 + $0x3c] sm:$0xf]
  %v1693 = vld [vmem:[%s7 + $0x40] sm:$0xf]
  %v1694 = vld [vmem:[%s7 + $0x44] sm:$0xf]
  %v1695 = vld [vmem:[%s7 + $0x48] sm:$0xf]
  %v1696 = vld [vmem:[%s7 + $0x4c] sm:$0xf]
  %v1697 = vld [vmem:[%s7 + $0x50] sm:$0xf]
  %v1698 = vld [vmem:[%s7 + $0x54] sm:$0xf]
  %v1699 = vld [vmem:[%s7 + $0x58] sm:$0xf]
  %v1700 = vld [vmem:[%s7 + $0x5c] sm:$0xf]
  %v1701 = vld [vmem:[%s7 + $0x60] sm:$0xf]
  %v1702 = vld [vmem:[%s7 + $0x64] sm:$0xf]
  %v1703 = vld [vmem:[%s7 + $0x68] sm:$0xf]
  %v1704 = vld [vmem:[%s7 + $0x6c] sm:$0xf]
  %v1705 = vld [vmem:[%s7 + $0x70] sm:$0xf]
  %v1706 = vld [vmem:[%s7 + $0x74] sm:$0xf]
  %v1707 = vld [vmem:[%s7 + $0x78] sm:$0xf]
  %v1708 = vld [vmem:[%s7 + $0x7c] sm:$0xf]
  %v1709 = vld [vmem:[%s7 + $0x80] sm:$0xf]
  %v1710 = vld [vmem:[%s7 + $0x84] sm:$0xf]
  %v1711 = vld [vmem:[%s7 + $0x88] sm:$0xf]
  %v1712 = vld [vmem:[%s7 + $0x8c] sm:$0xf]
  %v1713 = vld [vmem:[%s7 + $0x90] sm:$0xf]
  %v1714 = vld [vmem:[%s7 + $0x94] sm:$0xf]
  %v1715 = vld [vmem:[%s7 + $0x98] sm:$0xf]
  %v1716 = vld [vmem:[%s7 + $0x9c] sm:$0xf]
  %v1717 = vld [vmem:[%s7 + $0xa0] sm:$0xf]
  %v1718 = vld [vmem:[%s7 + $0xa4] sm:$0xf]
  %v1719 = vld [vmem:[%s7 + $0xa8] sm:$0xf]
  %v1720 = vld [vmem:[%s7 + $0xac] sm:$0xf]
  %v1721 = vld [vmem:[%s7 + $0xb0] sm:$0xf]
  %v1722 = vld [vmem:[%s7 + $0xb4] sm:$0xf]
  %v1723 = vld [vmem:[%s7 + $0xb8] sm:$0xf]
  %v1724 = vld [vmem:[%s7 + $0xbc] sm:$0xf]
  %v1725 = vld [vmem:[%s7 + $0xc0] sm:$0xf]
  %v1726 = vld [vmem:[%s7 + $0xc4] sm:$0xf]
  %v1727 = vld [vmem:[%s7 + $0xc8] sm:$0xf]
  %v1728 = vld [vmem:[%s7 + $0xcc] sm:$0xf]
  %v1729 = vld [vmem:[%s7 + $0xd0] sm:$0xf]
  %v1730 = vld [vmem:[%s7 + $0xd4] sm:$0xf]
  %v1731 = vld [vmem:[%s7 + $0xd8] sm:$0xf]
  %v1732 = vld [vmem:[%s7 + $0xdc] sm:$0xf]
  %v1733 = vld [vmem:[%s7 + $0xe0] sm:$0xf]
  %v1734 = vld [vmem:[%s7 + $0xe4] sm:$0xf]
  %v1735 = vld [vmem:[%s7 + $0xe8] sm:$0xf]
  %v1736 = vld [vmem:[%s7 + $0xec] sm:$0xf]
  %v1737 = vld [vmem:[%s7 + $0xf0] sm:$0xf]
  %v1738 = vld [vmem:[%s7 + $0xf4] sm:$0xf]
  %v1739 = vld [vmem:[%s7 + $0xf8] sm:$0xf]
  %v1740 = vld [vmem:[%s7 + $0xfc] sm:$0xf]
  %v1741 = vld [vmem:[%s8] sm:$0x1]
  %v1743 = vperm.slane %v1741, 0
  %v1809 = vunpack.c.l.b16 %v1677
  %v1810 = vunpack.c.l.b16 %v1678
  %v1811 = vunpack.c.l.b16 %v1679
  %v1812 = vunpack.c.l.b16 %v1680
  %v1813 = vunpack.c.l.b16 %v1681
  %v1814 = vunpack.c.l.b16 %v1682
  %v1815 = vunpack.c.l.b16 %v1683
  %v1816 = vunpack.c.l.b16 %v1684
  %v1817 = vunpack.c.l.b16 %v1685
  %v1818 = vunpack.c.l.b16 %v1686
  %v1819 = vunpack.c.l.b16 %v1687
  %v1820 = vunpack.c.l.b16 %v1688
  %v1821 = vunpack.c.l.b16 %v1689
  %v1822 = vunpack.c.l.b16 %v1690
  %v1823 = vunpack.c.l.b16 %v1691
  %v1824 = vunpack.c.l.b16 %v1692
  %v1825 = vunpack.c.l.b16 %v1693
  %v1826 = vunpack.c.l.b16 %v1694
  %v1827 = vunpack.c.l.b16 %v1695
  %v1828 = vunpack.c.l.b16 %v1696
  %v1829 = vunpack.c.l.b16 %v1697
  %v1830 = vunpack.c.l.b16 %v1698
  %v1831 = vunpack.c.l.b16 %v1699
  %v1832 = vunpack.c.l.b16 %v1700
  %v1833 = vunpack.c.l.b16 %v1701
  %v1834 = vunpack.c.l.b16 %v1702
  %v1835 = vunpack.c.l.b16 %v1703
  %v1836 = vunpack.c.l.b16 %v1704
  %v1837 = vunpack.c.l.b16 %v1705
  %v1838 = vunpack.c.l.b16 %v1706
  %v1839 = vunpack.c.l.b16 %v1707
  %v1840 = vunpack.c.l.b16 %v1708
  %v1841 = vunpack.c.l.b16 %v1709
  %v1842 = vunpack.c.l.b16 %v1710
  %v1843 = vunpack.c.l.b16 %v1711
  %v1844 = vunpack.c.l.b16 %v1712
  %v1845 = vunpack.c.l.b16 %v1713
  %v1846 = vunpack.c.l.b16 %v1714
  %v1847 = vunpack.c.l.b16 %v1715
  %v1848 = vunpack.c.l.b16 %v1716
  %v1849 = vunpack.c.l.b16 %v1717
  %v1850 = vunpack.c.l.b16 %v1718
  %v1851 = vunpack.c.l.b16 %v1719
  %v1852 = vunpack.c.l.b16 %v1720
  %v1853 = vunpack.c.l.b16 %v1721
  %v1854 = vunpack.c.l.b16 %v1722
  %v1855 = vunpack.c.l.b16 %v1723
  %v1856 = vunpack.c.l.b16 %v1724
  %v1857 = vunpack.c.l.b16 %v1725
  %v1858 = vunpack.c.l.b16 %v1726
  %v1859 = vunpack.c.l.b16 %v1727
  %v1860 = vunpack.c.l.b16 %v1728
  %v1861 = vunpack.c.l.b16 %v1729
  %v1862 = vunpack.c.l.b16 %v1730
  %v1863 = vunpack.c.l.b16 %v1731
  %v1864 = vunpack.c.l.b16 %v1732
  %v1865 = vunpack.c.l.b16 %v1733
  %v1866 = vunpack.c.l.b16 %v1734
  %v1867 = vunpack.c.l.b16 %v1735
  %v1868 = vunpack.c.l.b16 %v1736
  %v1869 = vunpack.c.l.b16 %v1737
  %v1870 = vunpack.c.l.b16 %v1738
  %v1871 = vunpack.c.l.b16 %v1739
  %v1872 = vunpack.c.l.b16 %v1740
  %v1873 = vpack.c.b16 %v1810, %v1809
  %v1874 = vpack.c.b16 %v1812, %v1811
  %v1875 = vpack.c.b16 %v1814, %v1813
  %v1876 = vpack.c.b16 %v1816, %v1815
  %v1877 = vpack.c.b16 %v1818, %v1817
  %v1878 = vpack.c.b16 %v1820, %v1819
  %v1879 = vpack.c.b16 %v1822, %v1821
  %v1880 = vpack.c.b16 %v1824, %v1823
  %v1881 = vpack.c.b16 %v1826, %v1825
  %v1882 = vpack.c.b16 %v1828, %v1827
  %v1883 = vpack.c.b16 %v1830, %v1829
  %v1884 = vpack.c.b16 %v1832, %v1831
  %v1885 = vpack.c.b16 %v1834, %v1833
  %v1886 = vpack.c.b16 %v1836, %v1835
  %v1887 = vpack.c.b16 %v1838, %v1837
  %v1888 = vpack.c.b16 %v1840, %v1839
  %v1889 = vpack.c.b16 %v1842, %v1841
  %v1890 = vpack.c.b16 %v1844, %v1843
  %v1891 = vpack.c.b16 %v1846, %v1845
  %v1892 = vpack.c.b16 %v1848, %v1847
  %v1893 = vpack.c.b16 %v1850, %v1849
  %v1894 = vpack.c.b16 %v1852, %v1851
  %v1895 = vpack.c.b16 %v1854, %v1853
  %v1896 = vpack.c.b16 %v1856, %v1855
  %v1897 = vpack.c.b16 %v1858, %v1857
  %v1898 = vpack.c.b16 %v1860, %v1859
  %v1899 = vpack.c.b16 %v1862, %v1861
  %v1900 = vpack.c.b16 %v1864, %v1863
  %v1901 = vpack.c.b16 %v1866, %v1865
  %v1902 = vpack.c.b16 %v1868, %v1867
  %v1903 = vpack.c.b16 %v1870, %v1869
  %v1904 = vpack.c.b16 %v1872, %v1871
  %1937 = vmatpush.bf16.msra.mxu0 %v1880
  %1938 = vmatpush.bf16.msra.mxu0 %v1879
  %1939 = vmatpush.bf16.msra.mxu0 %v1878
  %1940 = vmatpush.bf16.msra.mxu0 %v1877
  %1941 = vmatpush.bf16.msra.mxu0 %v1876
  %1942 = vmatpush.bf16.msra.mxu0 %v1875
  %1943 = vmatpush.bf16.msra.mxu0 %v1874
  %1944 = vmatpush.bf16.msra.mxu0 %v1873
  %1945 = vmatmul.bf16.gmra.mxu0 %v1673
  %v1946 = vpop.f32.mrf.mxu0
  %v1947 = vadd.f32 %v1743, %v1946
  %v1948 = vpop.f32.mrf.mxu0
  %1949 = vdwg.mxu0
  %1950 = vmatpush.bf16.msra.mxu0 %v1888
  %1951 = vmatpush.bf16.msra.mxu0 %v1887
  %1952 = vmatpush.bf16.msra.mxu0 %v1886
  %1953 = vmatpush.bf16.msra.mxu0 %v1885
  %1954 = vmatpush.bf16.msra.mxu0 %v1884
  %1955 = vmatpush.bf16.msra.mxu0 %v1883
  %1956 = vmatpush.bf16.msra.mxu0 %v1882
  %1957 = vmatpush.bf16.msra.mxu0 %v1881
  %1958 = vmatmul.bf16.gmra.mxu0 %v1674
  %v1959 = vpop.f32.mrf.mxu0
  %v1960 = vadd.f32 %v1947, %v1959
  %v1961 = vpop.f32.mrf.mxu0
  %1962 = vdwg.mxu0
  %1963 = vmatpush.bf16.msra.mxu0 %v1896
  %1964 = vmatpush.bf16.msra.mxu0 %v1895
  %1965 = vmatpush.bf16.msra.mxu0 %v1894
  %1966 = vmatpush.bf16.msra.mxu0 %v1893
  %1967 = vmatpush.bf16.msra.mxu0 %v1892
  %1968 = vmatpush.bf16.msra.mxu0 %v1891
  %1969 = vmatpush.bf16.msra.mxu0 %v1890
  %1970 = vmatpush.bf16.msra.mxu0 %v1889
  %1971 = vmatmul.bf16.gmra.mxu0 %v1675
  %v1972 = vpop.f32.mrf.mxu0
  %v1973 = vadd.f32 %v1960, %v1972
  %v1974 = vpop.f32.mrf.mxu0
  %1975 = vdwg.mxu0
  %1976 = vmatpush.bf16.msra.mxu0 %v1904
  %1977 = vmatpush.bf16.msra.mxu0 %v1903
  %1978 = vmatpush.bf16.msra.mxu0 %v1902
  %1979 = vmatpush.bf16.msra.mxu0 %v1901
  %1980 = vmatpush.bf16.msra.mxu0 %v1900
  %1981 = vmatpush.bf16.msra.mxu0 %v1899
  %1982 = vmatpush.bf16.msra.mxu0 %v1898
  %1983 = vmatpush.bf16.msra.mxu0 %v1897
  %1984 = vmatmul.bf16.gmra.mxu0 %v1676
  %v1985 = vpop.f32.mrf.mxu0
  %v1986 = vadd.f32 %v1973, %v1985
  %v1987 = vpop.f32.mrf.mxu0
  %1988 = vdwg.mxu0
  %vm1989 = vcmp.ge.f32.partialorder %v1986, 0.0
  %v1990 = vmul.f32 %v1986, 0.2
  %v1991 = vsel %vm1989, %v1986, %v1990
  %v1992 = vpack.c.bf16 %v1991, %v1991
  %v1993 = vld [vmem:[%s9] sm:$0x1]
  %vm1994 = vcmask 64512
  %v1996 = vsel %vm1994, %v1993, 0
  %vm1998 = vcmask 1043456
  %v2000 = vsel %vm1998, %v1992, 0
  %2002 = vmatpush.bf16.msra.mxu0 0
  %2003 = vmatpush.bf16.msra.mxu0 0
  %2004 = vmatpush.bf16.msra.mxu0 0
  %2005 = vmatpush.bf16.msra.mxu0 0
  %2006 = vmatpush.bf16.msra.mxu0 0
  %2007 = vmatpush.bf16.msra.mxu0 0
  %2008 = vmatpush.bf16.msra.mxu0 0
  %2009 = vmatpush.bf16.msra.mxu0 %v2000
  %2010 = vmatmul.bf16.gmra.mxu0 %v1996
  %v2011 = vpop.f32.mrf.mxu0
  %v2012 = vadd.f32 0.0, %v2011
  %v2013 = vpop.f32.mrf.mxu0
  %2014 = vdwg.mxu0
  %s2015 = scalar_lea.vmem %s9, 1
  %v2016 = vld [vmem:[%s2015] sm:$0x1]
  %v2018 = vsel %vm1994, %v2016, 0
  %2020 = vmatpush.bf16.msra.mxu0 0
  %2021 = vmatpush.bf16.msra.mxu0 0
  %2022 = vmatpush.bf16.msra.mxu0 0
  %2023 = vmatpush.bf16.msra.mxu0 0
  %2024 = vmatpush.bf16.msra.mxu0 0
  %2025 = vmatpush.bf16.msra.mxu0 0
  %2026 = vmatpush.bf16.msra.mxu0 0
  %2027 = vmatpush.bf16.msra.mxu0 %v2000
  %2028 = vmatmul.bf16.gmra.mxu0 %v2018
  %v2029 = vpop.f32.mrf.mxu0
  %v2030 = vadd.f32 0.0, %v2029
  %v2031 = vpop.f32.mrf.mxu0
  %2032 = vdwg.mxu0
  %s2033 = scalar_lea.vmem %s9, 2
  %v2034 = vld [vmem:[%s2033] sm:$0x1]
  %v2036 = vsel %vm1994, %v2034, 0
  %2038 = vmatpush.bf16.msra.mxu0 0
  %2039 = vmatpush.bf16.msra.mxu0 0
  %2040 = vmatpush.bf16.msra.mxu0 0
  %2041 = vmatpush.bf16.msra.mxu0 0
  %2042 = vmatpush.bf16.msra.mxu0 0
  %2043 = vmatpush.bf16.msra.mxu0 0
  %2044 = vmatpush.bf16.msra.mxu0 0
  %2045 = vmatpush.bf16.msra.mxu0 %v2000
  %2046 = vmatmul.bf16.gmra.mxu0 %v2036
  %v2047 = vpop.f32.mrf.mxu0
  %v2048 = vadd.f32 0.0, %v2047
  %v2049 = vpop.f32.mrf.mxu0
  %2050 = vdwg.mxu0
  %s2051 = scalar_lea.vmem %s9, 3
  %v2052 = vld [vmem:[%s2051] sm:$0x1]
  %v2054 = vsel %vm1994, %v2052, 0
  %2056 = vmatpush.bf16.msra.mxu0 0
  %2057 = vmatpush.bf16.msra.mxu0 0
  %2058 = vmatpush.bf16.msra.mxu0 0
  %2059 = vmatpush.bf16.msra.mxu0 0
  %2060 = vmatpush.bf16.msra.mxu0 0
  %2061 = vmatpush.bf16.msra.mxu0 0
  %2062 = vmatpush.bf16.msra.mxu0 0
  %2063 = vmatpush.bf16.msra.mxu0 %v2000
  %2064 = vmatmul.bf16.gmra.mxu0 %v2054
  %v2065 = vpop.f32.mrf.mxu0
  %v2066 = vadd.f32 0.0, %v2065
  %v2067 = vpop.f32.mrf.mxu0
  %2068 = vdwg.mxu0
  %s2069 = scalar_lea.vmem %s9, 4
  %v2070 = vld [vmem:[%s2069] sm:$0x1]
  %v2072 = vsel %vm1994, %v2070, 0
  %2074 = vmatpush.bf16.msra.mxu0 0
  %2075 = vmatpush.bf16.msra.mxu0 0
  %2076 = vmatpush.bf16.msra.mxu0 0
  %2077 = vmatpush.bf16.msra.mxu0 0
  %2078 = vmatpush.bf16.msra.mxu0 0
  %2079 = vmatpush.bf16.msra.mxu0 0
  %2080 = vmatpush.bf16.msra.mxu0 0
  %2081 = vmatpush.bf16.msra.mxu0 %v2000
  %2082 = vmatmul.bf16.gmra.mxu0 %v2072
  %v2083 = vpop.f32.mrf.mxu0
  %v2084 = vadd.f32 0.0, %v2083
  %v2085 = vpop.f32.mrf.mxu0
  %2086 = vdwg.mxu0
  %s2087 = scalar_lea.vmem %s9, 5
  %v2088 = vld [vmem:[%s2087] sm:$0x1]
  %v2090 = vsel %vm1994, %v2088, 0
  %2092 = vmatpush.bf16.msra.mxu0 0
  %2093 = vmatpush.bf16.msra.mxu0 0
  %2094 = vmatpush.bf16.msra.mxu0 0
  %2095 = vmatpush.bf16.msra.mxu0 0
  %2096 = vmatpush.bf16.msra.mxu0 0
  %2097 = vmatpush.bf16.msra.mxu0 0
  %2098 = vmatpush.bf16.msra.mxu0 0
  %2099 = vmatpush.bf16.msra.mxu0 %v2000
  %2100 = vmatmul.bf16.gmra.mxu0 %v2090
  %v2101 = vpop.f32.mrf.mxu0
  %v2102 = vadd.f32 0.0, %v2101
  %v2103 = vpop.f32.mrf.mxu0
  %2104 = vdwg.mxu0
  %s2105 = scalar_lea.vmem %s9, 6
  %v2106 = vld [vmem:[%s2105] sm:$0x1]
  %v2108 = vsel %vm1994, %v2106, 0
  %2110 = vmatpush.bf16.msra.mxu0 0
  %2111 = vmatpush.bf16.msra.mxu0 0
  %2112 = vmatpush.bf16.msra.mxu0 0
  %2113 = vmatpush.bf16.msra.mxu0 0
  %2114 = vmatpush.bf16.msra.mxu0 0
  %2115 = vmatpush.bf16.msra.mxu0 0
  %2116 = vmatpush.bf16.msra.mxu0 0
  %2117 = vmatpush.bf16.msra.mxu0 %v2000
  %2118 = vmatmul.bf16.gmra.mxu0 %v2108
  %v2119 = vpop.f32.mrf.mxu0
  %v2120 = vadd.f32 0.0, %v2119
  %v2121 = vpop.f32.mrf.mxu0
  %2122 = vdwg.mxu0
  %s2123 = scalar_lea.vmem %s9, 7
  %v2124 = vld [vmem:[%s2123] sm:$0x1]
  %v2126 = vsel %vm1994, %v2124, 0
  %2128 = vmatpush.bf16.msra.mxu0 0
  %2129 = vmatpush.bf16.msra.mxu0 0
  %2130 = vmatpush.bf16.msra.mxu0 0
  %2131 = vmatpush.bf16.msra.mxu0 0
  %2132 = vmatpush.bf16.msra.mxu0 0
  %2133 = vmatpush.bf16.msra.mxu0 0
  %2134 = vmatpush.bf16.msra.mxu0 0
  %2135 = vmatpush.bf16.msra.mxu0 %v2000
  %2136 = vmatmul.bf16.gmra.mxu0 %v2126
  %v2137 = vpop.f32.mrf.mxu0
  %v2138 = vadd.f32 0.0, %v2137
  %v2139 = vpop.f32.mrf.mxu0
  %2140 = vdwg.mxu0
  %s2141 = scalar_lea.vmem %s9, 8
  %v2142 = vld [vmem:[%s2141] sm:$0x1]
  %v2144 = vsel %vm1994, %v2142, 0
  %2146 = vmatpush.bf16.msra.mxu0 0
  %2147 = vmatpush.bf16.msra.mxu0 0
  %2148 = vmatpush.bf16.msra.mxu0 0
  %2149 = vmatpush.bf16.msra.mxu0 0
  %2150 = vmatpush.bf16.msra.mxu0 0
  %2151 = vmatpush.bf16.msra.mxu0 0
  %2152 = vmatpush.bf16.msra.mxu0 0
  %2153 = vmatpush.bf16.msra.mxu0 %v2000
  %2154 = vmatmul.bf16.gmra.mxu0 %v2144
  %v2155 = vpop.f32.mrf.mxu0
  %v2156 = vadd.f32 0.0, %v2155
  %v2157 = vpop.f32.mrf.mxu0
  %2158 = vdwg.mxu0
  %s2159 = scalar_lea.vmem %s9, 9
  %v2160 = vld [vmem:[%s2159] sm:$0x1]
  %v2162 = vsel %vm1994, %v2160, 0
  %2164 = vmatpush.bf16.msra.mxu0 0
  %2165 = vmatpush.bf16.msra.mxu0 0
  %2166 = vmatpush.bf16.msra.mxu0 0
  %2167 = vmatpush.bf16.msra.mxu0 0
  %2168 = vmatpush.bf16.msra.mxu0 0
  %2169 = vmatpush.bf16.msra.mxu0 0
  %2170 = vmatpush.bf16.msra.mxu0 0
  %2171 = vmatpush.bf16.msra.mxu0 %v2000
  %2172 = vmatmul.bf16.gmra.mxu0 %v2162
  %v2173 = vpop.f32.mrf.mxu0
  %v2174 = vadd.f32 0.0, %v2173
  %v2175 = vpop.f32.mrf.mxu0
  %2176 = vdwg.mxu0
  %s2177 = scalar_lea.vmem %s9, 10
  %v2178 = vld [vmem:[%s2177] sm:$0x1]
  %v2180 = vsel %vm1994, %v2178, 0
  %2182 = vmatpush.bf16.msra.mxu0 0
  %2183 = vmatpush.bf16.msra.mxu0 0
  %2184 = vmatpush.bf16.msra.mxu0 0
  %2185 = vmatpush.bf16.msra.mxu0 0
  %2186 = vmatpush.bf16.msra.mxu0 0
  %2187 = vmatpush.bf16.msra.mxu0 0
  %2188 = vmatpush.bf16.msra.mxu0 0
  %2189 = vmatpush.bf16.msra.mxu0 %v2000
  %2190 = vmatmul.bf16.gmra.mxu0 %v2180
  %v2191 = vpop.f32.mrf.mxu0
  %v2192 = vadd.f32 0.0, %v2191
  %v2193 = vpop.f32.mrf.mxu0
  %2194 = vdwg.mxu0
  %s2195 = scalar_lea.vmem %s9, 11
  %v2196 = vld [vmem:[%s2195] sm:$0x1]
  %v2198 = vsel %vm1994, %v2196, 0
  %2200 = vmatpush.bf16.msra.mxu0 0
  %2201 = vmatpush.bf16.msra.mxu0 0
  %2202 = vmatpush.bf16.msra.mxu0 0
  %2203 = vmatpush.bf16.msra.mxu0 0
  %2204 = vmatpush.bf16.msra.mxu0 0
  %2205 = vmatpush.bf16.msra.mxu0 0
  %2206 = vmatpush.bf16.msra.mxu0 0
  %2207 = vmatpush.bf16.msra.mxu0 %v2000
  %2208 = vmatmul.bf16.gmra.mxu0 %v2198
  %v2209 = vpop.f32.mrf.mxu0
  %v2210 = vadd.f32 0.0, %v2209
  %v2211 = vpop.f32.mrf.mxu0
  %2212 = vdwg.mxu0
  %s2213 = scalar_lea.vmem %s9, 12
  %v2214 = vld [vmem:[%s2213] sm:$0x1]
  %v2216 = vsel %vm1994, %v2214, 0
  %2218 = vmatpush.bf16.msra.mxu0 0
  %2219 = vmatpush.bf16.msra.mxu0 0
  %2220 = vmatpush.bf16.msra.mxu0 0
  %2221 = vmatpush.bf16.msra.mxu0 0
  %2222 = vmatpush.bf16.msra.mxu0 0
  %2223 = vmatpush.bf16.msra.mxu0 0
  %2224 = vmatpush.bf16.msra.mxu0 0
  %2225 = vmatpush.bf16.msra.mxu0 %v2000
  %2226 = vmatmul.bf16.gmra.mxu0 %v2216
  %v2227 = vpop.f32.mrf.mxu0
  %v2228 = vadd.f32 0.0, %v2227
  %v2229 = vpop.f32.mrf.mxu0
  %2230 = vdwg.mxu0
  %s2231 = scalar_lea.vmem %s9, 13
  %v2232 = vld [vmem:[%s2231] sm:$0x1]
  %v2234 = vsel %vm1994, %v2232, 0
  %2236 = vmatpush.bf16.msra.mxu0 0
  %2237 = vmatpush.bf16.msra.mxu0 0
  %2238 = vmatpush.bf16.msra.mxu0 0
  %2239 = vmatpush.bf16.msra.mxu0 0
  %2240 = vmatpush.bf16.msra.mxu0 0
  %2241 = vmatpush.bf16.msra.mxu0 0
  %2242 = vmatpush.bf16.msra.mxu0 0
  %2243 = vmatpush.bf16.msra.mxu0 %v2000
  %2244 = vmatmul.bf16.gmra.mxu0 %v2234
  %v2245 = vpop.f32.mrf.mxu0
  %v2246 = vadd.f32 0.0, %v2245
  %v2247 = vpop.f32.mrf.mxu0
  %2248 = vdwg.mxu0
  %s2249 = scalar_lea.vmem %s9, 14
  %v2250 = vld [vmem:[%s2249] sm:$0x1]
  %v2252 = vsel %vm1994, %v2250, 0
  %2254 = vmatpush.bf16.msra.mxu0 0
  %2255 = vmatpush.bf16.msra.mxu0 0
  %2256 = vmatpush.bf16.msra.mxu0 0
  %2257 = vmatpush.bf16.msra.mxu0 0
  %2258 = vmatpush.bf16.msra.mxu0 0
  %2259 = vmatpush.bf16.msra.mxu0 0
  %2260 = vmatpush.bf16.msra.mxu0 0
  %2261 = vmatpush.bf16.msra.mxu0 %v2000
  %2262 = vmatmul.bf16.gmra.mxu0 %v2252
  %v2263 = vpop.f32.mrf.mxu0
  %v2264 = vadd.f32 0.0, %v2263
  %v2265 = vpop.f32.mrf.mxu0
  %2266 = vdwg.mxu0
  %s2267 = scalar_lea.vmem %s9, 15
  %v2268 = vld [vmem:[%s2267] sm:$0x1]
  %v2270 = vsel %vm1994, %v2268, 0
  %2272 = vmatpush.bf16.msra.mxu0 0
  %2273 = vmatpush.bf16.msra.mxu0 0
  %2274 = vmatpush.bf16.msra.mxu0 0
  %2275 = vmatpush.bf16.msra.mxu0 0
  %2276 = vmatpush.bf16.msra.mxu0 0
  %2277 = vmatpush.bf16.msra.mxu0 0
  %2278 = vmatpush.bf16.msra.mxu0 0
  %2279 = vmatpush.bf16.msra.mxu0 %v2000
  %2280 = vmatmul.bf16.gmra.mxu0 %v2270
  %v2281 = vpop.f32.mrf.mxu0
  %v2282 = vadd.f32 0.0, %v2281
  %v2283 = vpop.f32.mrf.mxu0
  %2284 = vdwg.mxu0
  %2286 = vrot.lane.b32.xlu0 %v2030, 32
  %v2287 = vpop.permute.xlu0 %2286
  %2290 = vrot.lane.b32.xlu0 %v2048, 64
  %v2291 = vpop.permute.xlu0 %2290
  %2294 = vrot.lane.b32.xlu0 %v2066, 96
  %v2295 = vpop.permute.xlu0 %2294
  %2298 = vrot.lane.b32.xlu0 %v2102, 32
  %v2299 = vpop.permute.xlu0 %2298
  %2302 = vrot.lane.b32.xlu0 %v2120, 64
  %v2303 = vpop.permute.xlu0 %2302
  %2306 = vrot.lane.b32.xlu0 %v2138, 96
  %v2307 = vpop.permute.xlu0 %2306
  %2310 = vrot.lane.b32.xlu0 %v2174, 32
  %v2311 = vpop.permute.xlu0 %2310
  %2314 = vrot.lane.b32.xlu0 %v2192, 64
  %v2315 = vpop.permute.xlu0 %2314
  %2318 = vrot.lane.b32.xlu0 %v2210, 96
  %v2319 = vpop.permute.xlu0 %2318
  %2322 = vrot.lane.b32.xlu0 %v2246, 32
  %v2323 = vpop.permute.xlu0 %2322
  %2326 = vrot.lane.b32.xlu0 %v2264, 64
  %v2327 = vpop.permute.xlu0 %2326
  %2330 = vrot.lane.b32.xlu0 %v2282, 96
  %v2331 = vpop.permute.xlu0 %2330
  %v2333 = vsel %vm1081, %v2012, %v2287
  %v2334 = vsel %vm1090, %v2333, %v2291
  %v2335 = vsel %vm1100, %v2334, %v2295
  %v2336 = vsel %vm1081, %v2084, %v2299
  %v2337 = vsel %vm1090, %v2336, %v2303
  %v2338 = vsel %vm1100, %v2337, %v2307
  %v2339 = vsel %vm1081, %v2156, %v2311
  %v2340 = vsel %vm1090, %v2339, %v2315
  %v2341 = vsel %vm1100, %v2340, %v2319
  %v2342 = vsel %vm1081, %v2228, %v2323
  %v2343 = vsel %vm1090, %v2342, %v2327
  %v2344 = vsel %vm1100, %v2343, %v2331
  %v2345 = vpack.c.bf16 %v2335, %v2335
  %v2346 = vpack.c.bf16 %v2338, %v2338
  %v2347 = vpack.c.bf16 %v2341, %v2341
  %v2348 = vpack.c.bf16 %v2344, %v2344
  %v2349 = vld [vmem:[%s10] sm:$0xf]
  %v2350 = vld [vmem:[%s10 + $0x4] sm:$0xf]
  %v2351 = vld [vmem:[%s10 + $0x8] sm:$0xf]
  %v2352 = vld [vmem:[%s10 + $0xc] sm:$0xf]
  %v2353 = vld [vmem:[%s10 + $0x10] sm:$0xf]
  %v2354 = vld [vmem:[%s10 + $0x14] sm:$0xf]
  %v2355 = vld [vmem:[%s10 + $0x18] sm:$0xf]
  %v2356 = vld [vmem:[%s10 + $0x1c] sm:$0xf]
  %v2357 = vld [vmem:[%s10 + $0x20] sm:$0xf]
  %v2358 = vld [vmem:[%s10 + $0x24] sm:$0xf]
  %v2359 = vld [vmem:[%s10 + $0x28] sm:$0xf]
  %v2360 = vld [vmem:[%s10 + $0x2c] sm:$0xf]
  %v2361 = vld [vmem:[%s10 + $0x30] sm:$0xf]
  %v2362 = vld [vmem:[%s10 + $0x34] sm:$0xf]
  %v2363 = vld [vmem:[%s10 + $0x38] sm:$0xf]
  %v2364 = vld [vmem:[%s10 + $0x3c] sm:$0xf]
  %v2365 = vld [vmem:[%s10 + $0x40] sm:$0xf]
  %v2366 = vld [vmem:[%s10 + $0x44] sm:$0xf]
  %v2367 = vld [vmem:[%s10 + $0x48] sm:$0xf]
  %v2368 = vld [vmem:[%s10 + $0x4c] sm:$0xf]
  %v2369 = vld [vmem:[%s10 + $0x50] sm:$0xf]
  %v2370 = vld [vmem:[%s10 + $0x54] sm:$0xf]
  %v2371 = vld [vmem:[%s10 + $0x58] sm:$0xf]
  %v2372 = vld [vmem:[%s10 + $0x5c] sm:$0xf]
  %v2373 = vld [vmem:[%s10 + $0x60] sm:$0xf]
  %v2374 = vld [vmem:[%s10 + $0x64] sm:$0xf]
  %v2375 = vld [vmem:[%s10 + $0x68] sm:$0xf]
  %v2376 = vld [vmem:[%s10 + $0x6c] sm:$0xf]
  %v2377 = vld [vmem:[%s10 + $0x70] sm:$0xf]
  %v2378 = vld [vmem:[%s10 + $0x74] sm:$0xf]
  %v2379 = vld [vmem:[%s10 + $0x78] sm:$0xf]
  %v2380 = vld [vmem:[%s10 + $0x7c] sm:$0xf]
  %v2381 = vld [vmem:[%s10 + $0x80] sm:$0xf]
  %v2382 = vld [vmem:[%s10 + $0x84] sm:$0xf]
  %v2383 = vld [vmem:[%s10 + $0x88] sm:$0xf]
  %v2384 = vld [vmem:[%s10 + $0x8c] sm:$0xf]
  %v2385 = vld [vmem:[%s10 + $0x90] sm:$0xf]
  %v2386 = vld [vmem:[%s10 + $0x94] sm:$0xf]
  %v2387 = vld [vmem:[%s10 + $0x98] sm:$0xf]
  %v2388 = vld [vmem:[%s10 + $0x9c] sm:$0xf]
  %v2389 = vld [vmem:[%s10 + $0xa0] sm:$0xf]
  %v2390 = vld [vmem:[%s10 + $0xa4] sm:$0xf]
  %v2391 = vld [vmem:[%s10 + $0xa8] sm:$0xf]
  %v2392 = vld [vmem:[%s10 + $0xac] sm:$0xf]
  %v2393 = vld [vmem:[%s10 + $0xb0] sm:$0xf]
  %v2394 = vld [vmem:[%s10 + $0xb4] sm:$0xf]
  %v2395 = vld [vmem:[%s10 + $0xb8] sm:$0xf]
  %v2396 = vld [vmem:[%s10 + $0xbc] sm:$0xf]
  %v2397 = vld [vmem:[%s10 + $0xc0] sm:$0xf]
  %v2398 = vld [vmem:[%s10 + $0xc4] sm:$0xf]
  %v2399 = vld [vmem:[%s10 + $0xc8] sm:$0xf]
  %v2400 = vld [vmem:[%s10 + $0xcc] sm:$0xf]
  %v2401 = vld [vmem:[%s10 + $0xd0] sm:$0xf]
  %v2402 = vld [vmem:[%s10 + $0xd4] sm:$0xf]
  %v2403 = vld [vmem:[%s10 + $0xd8] sm:$0xf]
  %v2404 = vld [vmem:[%s10 + $0xdc] sm:$0xf]
  %v2405 = vld [vmem:[%s10 + $0xe0] sm:$0xf]
  %v2406 = vld [vmem:[%s10 + $0xe4] sm:$0xf]
  %v2407 = vld [vmem:[%s10 + $0xe8] sm:$0xf]
  %v2408 = vld [vmem:[%s10 + $0xec] sm:$0xf]
  %v2409 = vld [vmem:[%s10 + $0xf0] sm:$0xf]
  %v2410 = vld [vmem:[%s10 + $0xf4] sm:$0xf]
  %v2411 = vld [vmem:[%s10 + $0xf8] sm:$0xf]
  %v2412 = vld [vmem:[%s10 + $0xfc] sm:$0xf]
  %v2413 = vld [vmem:[%s11] sm:$0x1]
  %v2415 = vperm.slane %v2413, 0
  %v2481 = vunpack.c.l.b16 %v2349
  %v2482 = vunpack.c.l.b16 %v2350
  %v2483 = vunpack.c.l.b16 %v2351
  %v2484 = vunpack.c.l.b16 %v2352
  %v2485 = vunpack.c.l.b16 %v2353
  %v2486 = vunpack.c.l.b16 %v2354
  %v2487 = vunpack.c.l.b16 %v2355
  %v2488 = vunpack.c.l.b16 %v2356
  %v2489 = vunpack.c.l.b16 %v2357
  %v2490 = vunpack.c.l.b16 %v2358
  %v2491 = vunpack.c.l.b16 %v2359
  %v2492 = vunpack.c.l.b16 %v2360
  %v2493 = vunpack.c.l.b16 %v2361
  %v2494 = vunpack.c.l.b16 %v2362
  %v2495 = vunpack.c.l.b16 %v2363
  %v2496 = vunpack.c.l.b16 %v2364
  %v2497 = vunpack.c.l.b16 %v2365
  %v2498 = vunpack.c.l.b16 %v2366
  %v2499 = vunpack.c.l.b16 %v2367
  %v2500 = vunpack.c.l.b16 %v2368
  %v2501 = vunpack.c.l.b16 %v2369
  %v2502 = vunpack.c.l.b16 %v2370
  %v2503 = vunpack.c.l.b16 %v2371
  %v2504 = vunpack.c.l.b16 %v2372
  %v2505 = vunpack.c.l.b16 %v2373
  %v2506 = vunpack.c.l.b16 %v2374
  %v2507 = vunpack.c.l.b16 %v2375
  %v2508 = vunpack.c.l.b16 %v2376
  %v2509 = vunpack.c.l.b16 %v2377
  %v2510 = vunpack.c.l.b16 %v2378
  %v2511 = vunpack.c.l.b16 %v2379
  %v2512 = vunpack.c.l.b16 %v2380
  %v2513 = vunpack.c.l.b16 %v2381
  %v2514 = vunpack.c.l.b16 %v2382
  %v2515 = vunpack.c.l.b16 %v2383
  %v2516 = vunpack.c.l.b16 %v2384
  %v2517 = vunpack.c.l.b16 %v2385
  %v2518 = vunpack.c.l.b16 %v2386
  %v2519 = vunpack.c.l.b16 %v2387
  %v2520 = vunpack.c.l.b16 %v2388
  %v2521 = vunpack.c.l.b16 %v2389
  %v2522 = vunpack.c.l.b16 %v2390
  %v2523 = vunpack.c.l.b16 %v2391
  %v2524 = vunpack.c.l.b16 %v2392
  %v2525 = vunpack.c.l.b16 %v2393
  %v2526 = vunpack.c.l.b16 %v2394
  %v2527 = vunpack.c.l.b16 %v2395
  %v2528 = vunpack.c.l.b16 %v2396
  %v2529 = vunpack.c.l.b16 %v2397
  %v2530 = vunpack.c.l.b16 %v2398
  %v2531 = vunpack.c.l.b16 %v2399
  %v2532 = vunpack.c.l.b16 %v2400
  %v2533 = vunpack.c.l.b16 %v2401
  %v2534 = vunpack.c.l.b16 %v2402
  %v2535 = vunpack.c.l.b16 %v2403
  %v2536 = vunpack.c.l.b16 %v2404
  %v2537 = vunpack.c.l.b16 %v2405
  %v2538 = vunpack.c.l.b16 %v2406
  %v2539 = vunpack.c.l.b16 %v2407
  %v2540 = vunpack.c.l.b16 %v2408
  %v2541 = vunpack.c.l.b16 %v2409
  %v2542 = vunpack.c.l.b16 %v2410
  %v2543 = vunpack.c.l.b16 %v2411
  %v2544 = vunpack.c.l.b16 %v2412
  %v2545 = vpack.c.b16 %v2482, %v2481
  %v2546 = vpack.c.b16 %v2484, %v2483
  %v2547 = vpack.c.b16 %v2486, %v2485
  %v2548 = vpack.c.b16 %v2488, %v2487
  %v2549 = vpack.c.b16 %v2490, %v2489
  %v2550 = vpack.c.b16 %v2492, %v2491
  %v2551 = vpack.c.b16 %v2494, %v2493
  %v2552 = vpack.c.b16 %v2496, %v2495
  %v2553 = vpack.c.b16 %v2498, %v2497
  %v2554 = vpack.c.b16 %v2500, %v2499
  %v2555 = vpack.c.b16 %v2502, %v2501
  %v2556 = vpack.c.b16 %v2504, %v2503
  %v2557 = vpack.c.b16 %v2506, %v2505
  %v2558 = vpack.c.b16 %v2508, %v2507
  %v2559 = vpack.c.b16 %v2510, %v2509
  %v2560 = vpack.c.b16 %v2512, %v2511
  %v2561 = vpack.c.b16 %v2514, %v2513
  %v2562 = vpack.c.b16 %v2516, %v2515
  %v2563 = vpack.c.b16 %v2518, %v2517
  %v2564 = vpack.c.b16 %v2520, %v2519
  %v2565 = vpack.c.b16 %v2522, %v2521
  %v2566 = vpack.c.b16 %v2524, %v2523
  %v2567 = vpack.c.b16 %v2526, %v2525
  %v2568 = vpack.c.b16 %v2528, %v2527
  %v2569 = vpack.c.b16 %v2530, %v2529
  %v2570 = vpack.c.b16 %v2532, %v2531
  %v2571 = vpack.c.b16 %v2534, %v2533
  %v2572 = vpack.c.b16 %v2536, %v2535
  %v2573 = vpack.c.b16 %v2538, %v2537
  %v2574 = vpack.c.b16 %v2540, %v2539
  %v2575 = vpack.c.b16 %v2542, %v2541
  %v2576 = vpack.c.b16 %v2544, %v2543
  %2609 = vmatpush.bf16.msra.mxu0 %v2552
  %2610 = vmatpush.bf16.msra.mxu0 %v2551
  %2611 = vmatpush.bf16.msra.mxu0 %v2550
  %2612 = vmatpush.bf16.msra.mxu0 %v2549
  %2613 = vmatpush.bf16.msra.mxu0 %v2548
  %2614 = vmatpush.bf16.msra.mxu0 %v2547
  %2615 = vmatpush.bf16.msra.mxu0 %v2546
  %2616 = vmatpush.bf16.msra.mxu0 %v2545
  %2617 = vmatmul.bf16.gmra.mxu0 %v2345
  %v2618 = vpop.f32.mrf.mxu0
  %v2619 = vadd.f32 %v2415, %v2618
  %v2620 = vpop.f32.mrf.mxu0
  %2621 = vdwg.mxu0
  %2622 = vmatpush.bf16.msra.mxu0 %v2560
  %2623 = vmatpush.bf16.msra.mxu0 %v2559
  %2624 = vmatpush.bf16.msra.mxu0 %v2558
  %2625 = vmatpush.bf16.msra.mxu0 %v2557
  %2626 = vmatpush.bf16.msra.mxu0 %v2556
  %2627 = vmatpush.bf16.msra.mxu0 %v2555
  %2628 = vmatpush.bf16.msra.mxu0 %v2554
  %2629 = vmatpush.bf16.msra.mxu0 %v2553
  %2630 = vmatmul.bf16.gmra.mxu0 %v2346
  %v2631 = vpop.f32.mrf.mxu0
  %v2632 = vadd.f32 %v2619, %v2631
  %v2633 = vpop.f32.mrf.mxu0
  %2634 = vdwg.mxu0
  %2635 = vmatpush.bf16.msra.mxu0 %v2568
  %2636 = vmatpush.bf16.msra.mxu0 %v2567
  %2637 = vmatpush.bf16.msra.mxu0 %v2566
  %2638 = vmatpush.bf16.msra.mxu0 %v2565
  %2639 = vmatpush.bf16.msra.mxu0 %v2564
  %2640 = vmatpush.bf16.msra.mxu0 %v2563
  %2641 = vmatpush.bf16.msra.mxu0 %v2562
  %2642 = vmatpush.bf16.msra.mxu0 %v2561
  %2643 = vmatmul.bf16.gmra.mxu0 %v2347
  %v2644 = vpop.f32.mrf.mxu0
  %v2645 = vadd.f32 %v2632, %v2644
  %v2646 = vpop.f32.mrf.mxu0
  %2647 = vdwg.mxu0
  %2648 = vmatpush.bf16.msra.mxu0 %v2576
  %2649 = vmatpush.bf16.msra.mxu0 %v2575
  %2650 = vmatpush.bf16.msra.mxu0 %v2574
  %2651 = vmatpush.bf16.msra.mxu0 %v2573
  %2652 = vmatpush.bf16.msra.mxu0 %v2572
  %2653 = vmatpush.bf16.msra.mxu0 %v2571
  %2654 = vmatpush.bf16.msra.mxu0 %v2570
  %2655 = vmatpush.bf16.msra.mxu0 %v2569
  %2656 = vmatmul.bf16.gmra.mxu0 %v2348
  %v2657 = vpop.f32.mrf.mxu0
  %v2658 = vadd.f32 %v2645, %v2657
  %v2659 = vpop.f32.mrf.mxu0
  %2660 = vdwg.mxu0
  %vm2661 = vcmp.ge.f32.partialorder %v2658, 0.0
  %v2662 = vmul.f32 %v2658, 0.2
  %v2663 = vsel %vm2661, %v2658, %v2662
  %v2664 = vld [vmem:[%s14] sm:$0xff]
  %v2665 = vld [vmem:[%s14 + $0x8] sm:$0xf]
  %v2666 = vld [vmem:[%s14 + $0xc] sm:$0xff]
  %v2667 = vld [vmem:[%s14 + $0x14] sm:$0xf]
  %v2668 = vld [vmem:[%s14 + $0x18] sm:$0xff]
  %v2669 = vld [vmem:[%s14 + $0x20] sm:$0xf]
  %v2670 = vld [vmem:[%s14 + $0x24] sm:$0xff]
  %v2671 = vld [vmem:[%s14 + $0x2c] sm:$0xf]
  %v2672 = vld [vmem:[%s14 + $0x30] sm:$0xff]
  %v2673 = vld [vmem:[%s14 + $0x38] sm:$0xf]
  %v2674 = vld [vmem:[%s14 + $0x3c] sm:$0xff]
  %v2675 = vld [vmem:[%s14 + $0x44] sm:$0xf]
  %v2676 = vld [vmem:[%s14 + $0x48] sm:$0xff]
  %v2677 = vld [vmem:[%s14 + $0x50] sm:$0xf]
  %v2678 = vld [vmem:[%s14 + $0x54] sm:$0xff]
  %v2679 = vld [vmem:[%s14 + $0x5c] sm:$0xf]
  %v2680 = vld [vmem:[%s14 + $0x60] sm:$0xff]
  %v2681 = vld [vmem:[%s14 + $0x68] sm:$0xf]
  %v2682 = vld [vmem:[%s14 + $0x6c] sm:$0xff]
  %v2683 = vld [vmem:[%s14 + $0x74] sm:$0xf]
  %v2684 = vld [vmem:[%s14 + $0x78] sm:$0xff]
  %v2685 = vld [vmem:[%s14 + $0x80] sm:$0xf]
  %v2686 = vld [vmem:[%s14 + $0x84] sm:$0xff]
  %v2687 = vld [vmem:[%s14 + $0x8c] sm:$0xf]
  %v2688 = vld [vmem:[%s14 + $0x90] sm:$0xff]
  %v2689 = vld [vmem:[%s14 + $0x98] sm:$0xf]
  %v2690 = vld [vmem:[%s14 + $0x9c] sm:$0xff]
  %v2691 = vld [vmem:[%s14 + $0xa4] sm:$0xf]
  %v2692 = vld [vmem:[%s14 + $0xa8] sm:$0xff]
  %v2693 = vld [vmem:[%s14 + $0xb0] sm:$0xf]
  %v2694 = vld [vmem:[%s14 + $0xb4] sm:$0xff]
  %v2695 = vld [vmem:[%s14 + $0xbc] sm:$0xf]
  %v2696 = vld [vmem:[%s16] sm:$0x7]
  %v2697 = vld [vmem:[%s12] sm:$0xf]
  %v2698 = vld [vmem:[%s12 + $0x4] sm:$0xf]
  %v2699 = vld [vmem:[%s13] sm:$0xff]
  %v2700 = vld [vmem:[%s13 + $0x8] sm:$0xf]
  %v2701 = vld [vmem:[%s13 + $0xc] sm:$0xff]
  %v2702 = vld [vmem:[%s13 + $0x14] sm:$0xf]
  %v2703 = vld [vmem:[%s15] sm:$0x7]
  %v2705 = vperm.slane %v2703, 0
  %v2706 = vperm.slane %v2703, 1
  %v2707 = vperm.slane %v2703, 2
  %v2713 = vunpack.c.l.b16 %v2697
  %v2714 = vunpack.c.l.b16 %v2698
  %v2715 = vpack.c.b16 %v2714, %v2713
  %v2720 = vunpack.c.l.b16 %v2699
  %v2721 = vunpack.c.h.b16 %v2699
  %v2722 = vunpack.c.l.b16 %v2700
  %v2723 = vunpack.c.l.b16 %v2701
  %v2724 = vunpack.c.h.b16 %v2701
  %v2725 = vunpack.c.l.b16 %v2702
  %v2726 = vpack.c.b16 %v2723, %v2720
  %v2727 = vpack.c.b16 %v2724, %v2721
  %v2728 = vpack.c.b16 %v2725, %v2722
  %v2733 = vsel %vm1076, %v2715, 0
  %2735 = vmatpush.bf16.msra.mxu0 0
  %2736 = vmatpush.bf16.msra.mxu0 0
  %2737 = vmatpush.bf16.msra.mxu0 0
  %2738 = vmatpush.bf16.msra.mxu0 0
  %2739 = vmatpush.bf16.msra.mxu0 0
  %2740 = vmatpush.bf16.msra.mxu0 0
  %2741 = vmatpush.bf16.msra.mxu0 0
  %2742 = vmatpush.bf16.msra.mxu0 %v2726
  %2743 = vmatmul.bf16.gmra.mxu0 %v2733
  %v2744 = vpop.f32.mrf.mxu0
  %v2745 = vadd.f32 %v2705, %v2744
  %v2746 = vpop.f32.mrf.mxu0
  %v2747 = vadd.f32 %v2705, %v2746
  %2748 = vdwg.mxu0
  %2749 = vmatpush.bf16.msra.mxu0 0
  %2750 = vmatpush.bf16.msra.mxu0 0
  %2751 = vmatpush.bf16.msra.mxu0 0
  %2752 = vmatpush.bf16.msra.mxu0 0
  %2753 = vmatpush.bf16.msra.mxu0 0
  %2754 = vmatpush.bf16.msra.mxu0 0
  %2755 = vmatpush.bf16.msra.mxu0 0
  %2756 = vmatpush.bf16.msra.mxu0 %v2727
  %2757 = vmatmul.bf16.gmra.mxu0 %v2733
  %v2758 = vpop.f32.mrf.mxu0
  %v2759 = vadd.f32 %v2706, %v2758
  %v2760 = vpop.f32.mrf.mxu0
  %v2761 = vadd.f32 %v2706, %v2760
  %2762 = vdwg.mxu0
  %2763 = vmatpush.bf16.msra.mxu0 0
  %2764 = vmatpush.bf16.msra.mxu0 0
  %2765 = vmatpush.bf16.msra.mxu0 0
  %2766 = vmatpush.bf16.msra.mxu0 0
  %2767 = vmatpush.bf16.msra.mxu0 0
  %2768 = vmatpush.bf16.msra.mxu0 0
  %2769 = vmatpush.bf16.msra.mxu0 0
  %2770 = vmatpush.bf16.msra.mxu0 %v2728
  %2771 = vmatmul.bf16.gmra.mxu0 %v2733
  %v2772 = vpop.f32.mrf.mxu0
  %v2773 = vadd.f32 %v2707, %v2772
  %v2774 = vpop.f32.mrf.mxu0
  %v2775 = vadd.f32 %v2707, %v2774
  %2776 = vdwg.mxu0
  %v2778 = vperm.slane %v2696, 0
  %v2779 = vperm.slane %v2696, 1
  %v2780 = vperm.slane %v2696, 2
  %v2816 = vunpack.c.l.b16 %v2664
  %v2817 = vunpack.c.h.b16 %v2664
  %v2818 = vunpack.c.l.b16 %v2665
  %v2819 = vunpack.c.l.b16 %v2666
  %v2820 = vunpack.c.h.b16 %v2666
  %v2821 = vunpack.c.l.b16 %v2667
  %v2822 = vunpack.c.l.b16 %v2668
  %v2823 = vunpack.c.h.b16 %v2668
  %v2824 = vunpack.c.l.b16 %v2669
  %v2825 = vunpack.c.l.b16 %v2670
  %v2826 = vunpack.c.h.b16 %v2670
  %v2827 = vunpack.c.l.b16 %v2671
  %v2828 = vunpack.c.l.b16 %v2672
  %v2829 = vunpack.c.h.b16 %v2672
  %v2830 = vunpack.c.l.b16 %v2673
  %v2831 = vunpack.c.l.b16 %v2674
  %v2832 = vunpack.c.h.b16 %v2674
  %v2833 = vunpack.c.l.b16 %v2675
  %v2834 = vunpack.c.l.b16 %v2676
  %v2835 = vunpack.c.h.b16 %v2676
  %v2836 = vunpack.c.l.b16 %v2677
  %v2837 = vunpack.c.l.b16 %v2678
  %v2838 = vunpack.c.h.b16 %v2678
  %v2839 = vunpack.c.l.b16 %v2679
  %v2840 = vunpack.c.l.b16 %v2680
  %v2841 = vunpack.c.h.b16 %v2680
  %v2842 = vunpack.c.l.b16 %v2681
  %v2843 = vunpack.c.l.b16 %v2682
  %v2844 = vunpack.c.h.b16 %v2682
  %v2845 = vunpack.c.l.b16 %v2683
  %v2846 = vunpack.c.l.b16 %v2684
  %v2847 = vunpack.c.h.b16 %v2684
  %v2848 = vunpack.c.l.b16 %v2685
  %v2849 = vunpack.c.l.b16 %v2686
  %v2850 = vunpack.c.h.b16 %v2686
  %v2851 = vunpack.c.l.b16 %v2687
  %v2852 = vunpack.c.l.b16 %v2688
  %v2853 = vunpack.c.h.b16 %v2688
  %v2854 = vunpack.c.l.b16 %v2689
  %v2855 = vunpack.c.l.b16 %v2690
  %v2856 = vunpack.c.h.b16 %v2690
  %v2857 = vunpack.c.l.b16 %v2691
  %v2858 = vunpack.c.l.b16 %v2692
  %v2859 = vunpack.c.h.b16 %v2692
  %v2860 = vunpack.c.l.b16 %v2693
  %v2861 = vunpack.c.l.b16 %v2694
  %v2862 = vunpack.c.h.b16 %v2694
  %v2863 = vunpack.c.l.b16 %v2695
  %v2864 = vpack.c.b16 %v2819, %v2816
  %v2865 = vpack.c.b16 %v2820, %v2817
  %v2866 = vpack.c.b16 %v2821, %v2818
  %v2867 = vpack.c.b16 %v2825, %v2822
  %v2868 = vpack.c.b16 %v2826, %v2823
  %v2869 = vpack.c.b16 %v2827, %v2824
  %v2870 = vpack.c.b16 %v2831, %v2828
  %v2871 = vpack.c.b16 %v2832, %v2829
  %v2872 = vpack.c.b16 %v2833, %v2830
  %v2873 = vpack.c.b16 %v2837, %v2834
  %v2874 = vpack.c.b16 %v2838, %v2835
  %v2875 = vpack.c.b16 %v2839, %v2836
  %v2876 = vpack.c.b16 %v2843, %v2840
  %v2877 = vpack.c.b16 %v2844, %v2841
  %v2878 = vpack.c.b16 %v2845, %v2842
  %v2879 = vpack.c.b16 %v2849, %v2846
  %v2880 = vpack.c.b16 %v2850, %v2847
  %v2881 = vpack.c.b16 %v2851, %v2848
  %v2882 = vpack.c.b16 %v2855, %v2852
  %v2883 = vpack.c.b16 %v2856, %v2853
  %v2884 = vpack.c.b16 %v2857, %v2854
  %v2885 = vpack.c.b16 %v2861, %v2858
  %v2886 = vpack.c.b16 %v2862, %v2859
  %v2887 = vpack.c.b16 %v2863, %v2860
  %2912 = vmatpush.bf16.msra.mxu0 %v2885
  %2913 = vmatpush.bf16.msra.mxu0 %v2882
  %2914 = vmatpush.bf16.msra.mxu0 %v2879
  %2915 = vmatpush.bf16.msra.mxu0 %v2876
  %2916 = vmatpush.bf16.msra.mxu0 %v2873
  %2917 = vmatpush.bf16.msra.mxu0 %v2870
  %2918 = vmatpush.bf16.msra.mxu0 %v2867
  %2919 = vmatpush.bf16.msra.mxu0 %v2864
  %2920 = vmatmul.bf16.gmra.mxu0 0
  %v2921 = vpop.f32.mrf.mxu0
  %v2922 = vadd.f32 %v2778, %v2921
  %v2923 = vpop.f32.mrf.mxu0
  %2924 = vdwg.mxu0
  %2925 = vmatpush.bf16.msra.mxu0 %v2886
  %2926 = vmatpush.bf16.msra.mxu0 %v2883
  %2927 = vmatpush.bf16.msra.mxu0 %v2880
  %2928 = vmatpush.bf16.msra.mxu0 %v2877
  %2929 = vmatpush.bf16.msra.mxu0 %v2874
  %2930 = vmatpush.bf16.msra.mxu0 %v2871
  %2931 = vmatpush.bf16.msra.mxu0 %v2868
  %2932 = vmatpush.bf16.msra.mxu0 %v2865
  %2933 = vmatmul.bf16.gmra.mxu0 0
  %v2934 = vpop.f32.mrf.mxu0
  %v2935 = vadd.f32 %v2779, %v2934
  %v2936 = vpop.f32.mrf.mxu0
  %2937 = vdwg.mxu0
  %2938 = vmatpush.bf16.msra.mxu0 %v2887
  %2939 = vmatpush.bf16.msra.mxu0 %v2884
  %2940 = vmatpush.bf16.msra.mxu0 %v2881
  %2941 = vmatpush.bf16.msra.mxu0 %v2878
  %2942 = vmatpush.bf16.msra.mxu0 %v2875
  %2943 = vmatpush.bf16.msra.mxu0 %v2872
  %2944 = vmatpush.bf16.msra.mxu0 %v2869
  %2945 = vmatpush.bf16.msra.mxu0 %v2866
  %2946 = vmatmul.bf16.gmra.mxu0 0
  %v2947 = vpop.f32.mrf.mxu0
  %v2948 = vadd.f32 %v2780, %v2947
  %v2949 = vpop.f32.mrf.mxu0
  %2950 = vdwg.mxu0
  %v2951 = vadd.f32 %v2745, %v2922
  %v2952 = vxor.u32 %v2951, 2147483648
  %v2953 = vmul.f32 %v2952, 1.442695
  %v2954 = vpow.pop %v2953
  %v2955 = vadd.f32 %v2954, 1.0
  %v2956 = vrcp.pop %v2955
  %v2957 = vmul.f32 %v2955, %v2956
  %v2958 = vsub.f32 1.0, %v2957
  %v2959 = vmul.f32 %v2956, %v2958
  %v2960 = vadd.f32 %v2956, %v2959
  %vm2961 = vweird.f32 %v2955
  %vm2962 = vweird.f32 %v2956
  %vm2963 = vmor %vm2961, %vm2962
  %v2964 = vsel %vm2963, %v2956, %v2960
  %v2965 = vand.u32 2147483647, %v2955
  %vm2966 = vcmp.eq.f32.partialorder %v2965, 8.507059e+37
  %v2967 = vand.u32 %v2955, 2147483648
  %v2968 = vor.u32 1.1754944e-38, %v2967
  %v2969 = vsel %vm2966, %v2968, %v2964
  %v2970 = vmul.f32 1.0, %v2969
  %v2971 = vadd.f32 %v2759, %v2935
  %v2972 = vxor.u32 %v2971, 2147483648
  %v2973 = vmul.f32 %v2972, 1.442695
  %v2974 = vpow.pop %v2973
  %v2975 = vadd.f32 %v2974, 1.0
  %v2976 = vrcp.pop %v2975
  %v2977 = vmul.f32 %v2975, %v2976
  %v2978 = vsub.f32 1.0, %v2977
  %v2979 = vmul.f32 %v2976, %v2978
  %v2980 = vadd.f32 %v2976, %v2979
  %vm2981 = vweird.f32 %v2975
  %vm2982 = vweird.f32 %v2976
  %vm2983 = vmor %vm2981, %vm2982
  %v2984 = vsel %vm2983, %v2976, %v2980
  %v2985 = vand.u32 2147483647, %v2975
  %vm2986 = vcmp.eq.f32.partialorder %v2985, 8.507059e+37
  %v2987 = vand.u32 %v2975, 2147483648
  %v2988 = vor.u32 1.1754944e-38, %v2987
  %v2989 = vsel %vm2986, %v2988, %v2984
  %v2990 = vmul.f32 1.0, %v2989
  %v2991 = vmul.f32 %v2970, %v2948
  %v2992 = vadd.f32 %v2773, %v2991
  %v2993 = vtanh.pop %v2992
  %v2994 = vsub.f32 1.0, %v2990
  %v2995 = vmul.f32 %v2994, %v2993
  %v2996 = vmul.f32 %v2990, 0.0
  %v2997 = vadd.f32 %v2995, %v2996
  %v2998 = vpack.c.bf16 %v2997, %v2997
  %2999 = vmatpush.bf16.msra.mxu0 %v2885
  %3000 = vmatpush.bf16.msra.mxu0 %v2882
  %3001 = vmatpush.bf16.msra.mxu0 %v2879
  %3002 = vmatpush.bf16.msra.mxu0 %v2876
  %3003 = vmatpush.bf16.msra.mxu0 %v2873
  %3004 = vmatpush.bf16.msra.mxu0 %v2870
  %3005 = vmatpush.bf16.msra.mxu0 %v2867
  %3006 = vmatpush.bf16.msra.mxu0 %v2864
  %3007 = vmatmul.bf16.gmra.mxu0 %v2998
  %v3008 = vpop.f32.mrf.mxu0
  %v3009 = vadd.f32 %v2778, %v3008
  %v3010 = vpop.f32.mrf.mxu0
  %3011 = vdwg.mxu0
  %3012 = vmatpush.bf16.msra.mxu0 %v2886
  %3013 = vmatpush.bf16.msra.mxu0 %v2883
  %3014 = vmatpush.bf16.msra.mxu0 %v2880
  %3015 = vmatpush.bf16.msra.mxu0 %v2877
  %3016 = vmatpush.bf16.msra.mxu0 %v2874
  %3017 = vmatpush.bf16.msra.mxu0 %v2871
  %3018 = vmatpush.bf16.msra.mxu0 %v2868
  %3019 = vmatpush.bf16.msra.mxu0 %v2865
  %3020 = vmatmul.bf16.gmra.mxu0 %v2998
  %v3021 = vpop.f32.mrf.mxu0
  %v3022 = vadd.f32 %v2779, %v3021
  %v3023 = vpop.f32.mrf.mxu0
  %3024 = vdwg.mxu0
  %3025 = vmatpush.bf16.msra.mxu0 %v2887
  %3026 = vmatpush.bf16.msra.mxu0 %v2884
  %3027 = vmatpush.bf16.msra.mxu0 %v2881
  %3028 = vmatpush.bf16.msra.mxu0 %v2878
  %3029 = vmatpush.bf16.msra.mxu0 %v2875
  %3030 = vmatpush.bf16.msra.mxu0 %v2872
  %3031 = vmatpush.bf16.msra.mxu0 %v2869
  %3032 = vmatpush.bf16.msra.mxu0 %v2866
  %3033 = vmatmul.bf16.gmra.mxu0 %v2998
  %v3034 = vpop.f32.mrf.mxu0
  %v3035 = vadd.f32 %v2780, %v3034
  %v3036 = vpop.f32.mrf.mxu0
  %3037 = vdwg.mxu0
  %v3039 = vrot.slane %v3009, 6
  %v3041 = vadd.f32 %v2745, %v3039
  %v3042 = vxor.u32 %v3041, 2147483648
  %v3043 = vmul.f32 %v3042, 1.442695
  %v3044 = vpow.pop %v3043
  %v3045 = vadd.f32 %v3044, 1.0
  %v3046 = vrcp.pop %v3045
  %v3047 = vmul.f32 %v3045, %v3046
  %v3048 = vsub.f32 1.0, %v3047
  %v3049 = vmul.f32 %v3046, %v3048
  %v3050 = vadd.f32 %v3046, %v3049
  %vm3051 = vweird.f32 %v3045
  %vm3052 = vweird.f32 %v3046
  %vm3053 = vmor %vm3051, %vm3052
  %v3054 = vsel %vm3053, %v3046, %v3050
  %v3055 = vand.u32 2147483647, %v3045
  %vm3056 = vcmp.eq.f32.partialorder %v3055, 8.507059e+37
  %v3057 = vand.u32 %v3045, 2147483648
  %v3058 = vor.u32 1.1754944e-38, %v3057
  %v3059 = vsel %vm3056, %v3058, %v3054
  %v3060 = vmul.f32 1.0, %v3059
  %v3062 = vrot.slane %v3022, 6
  %v3064 = vadd.f32 %v2759, %v3062
  %v3065 = vxor.u32 %v3064, 2147483648
  %v3066 = vmul.f32 %v3065, 1.442695
  %v3067 = vpow.pop %v3066
  %v3068 = vadd.f32 %v3067, 1.0
  %v3069 = vrcp.pop %v3068
  %v3070 = vmul.f32 %v3068, %v3069
  %v3071 = vsub.f32 1.0, %v3070
  %v3072 = vmul.f32 %v3069, %v3071
  %v3073 = vadd.f32 %v3069, %v3072
  %vm3074 = vweird.f32 %v3068
  %vm3075 = vweird.f32 %v3069
  %vm3076 = vmor %vm3074, %vm3075
  %v3077 = vsel %vm3076, %v3069, %v3073
  %v3078 = vand.u32 2147483647, %v3068
  %vm3079 = vcmp.eq.f32.partialorder %v3078, 8.507059e+37
  %v3080 = vand.u32 %v3068, 2147483648
  %v3081 = vor.u32 1.1754944e-38, %v3080
  %v3082 = vsel %vm3079, %v3081, %v3077
  %v3083 = vmul.f32 1.0, %v3082
  %v3085 = vrot.slane %v3035, 6
  %v3087 = vmul.f32 %v3060, %v3085
  %v3088 = vadd.f32 %v2773, %v3087
  %v3089 = vtanh.pop %v3088
  %v3090 = vsub.f32 1.0, %v3083
  %v3091 = vmul.f32 %v3090, %v3089
  %v3093 = vrot.slane %v2997, 6
  %v3095 = vmul.f32 %v3083, %v3093
  %v3096 = vadd.f32 %v3091, %v3095
  %v3097 = vpack.c.bf16 %v3096, %v3096
  %v3099 = vrot.slane %v3097, 1
  %3101 = vmatpush.bf16.msra.mxu0 %v2885
  %3102 = vmatpush.bf16.msra.mxu0 %v2882
  %3103 = vmatpush.bf16.msra.mxu0 %v2879
  %3104 = vmatpush.bf16.msra.mxu0 %v2876
  %3105 = vmatpush.bf16.msra.mxu0 %v2873
  %3106 = vmatpush.bf16.msra.mxu0 %v2870
  %3107 = vmatpush.bf16.msra.mxu0 %v2867
  %3108 = vmatpush.bf16.msra.mxu0 %v2864
  %3109 = vmatmul.bf16.gmra.mxu0 %v3099
  %v3110 = vpop.f32.mrf.mxu0
  %v3111 = vadd.f32 %v2778, %v3110
  %v3112 = vpop.f32.mrf.mxu0
  %3113 = vdwg.mxu0
  %3114 = vmatpush.bf16.msra.mxu0 %v2886
  %3115 = vmatpush.bf16.msra.mxu0 %v2883
  %3116 = vmatpush.bf16.msra.mxu0 %v2880
  %3117 = vmatpush.bf16.msra.mxu0 %v2877
  %3118 = vmatpush.bf16.msra.mxu0 %v2874
  %3119 = vmatpush.bf16.msra.mxu0 %v2871
  %3120 = vmatpush.bf16.msra.mxu0 %v2868
  %3121 = vmatpush.bf16.msra.mxu0 %v2865
  %3122 = vmatmul.bf16.gmra.mxu0 %v3099
  %v3123 = vpop.f32.mrf.mxu0
  %v3124 = vadd.f32 %v2779, %v3123
  %v3125 = vpop.f32.mrf.mxu0
  %3126 = vdwg.mxu0
  %3127 = vmatpush.bf16.msra.mxu0 %v2887
  %3128 = vmatpush.bf16.msra.mxu0 %v2884
  %3129 = vmatpush.bf16.msra.mxu0 %v2881
  %3130 = vmatpush.bf16.msra.mxu0 %v2878
  %3131 = vmatpush.bf16.msra.mxu0 %v2875
  %3132 = vmatpush.bf16.msra.mxu0 %v2872
  %3133 = vmatpush.bf16.msra.mxu0 %v2869
  %3134 = vmatpush.bf16.msra.mxu0 %v2866
  %3135 = vmatmul.bf16.gmra.mxu0 %v3099
  %v3136 = vpop.f32.mrf.mxu0
  %v3137 = vadd.f32 %v2780, %v3136
  %v3138 = vpop.f32.mrf.mxu0
  %3139 = vdwg.mxu0
  %v3141 = vrot.slane %v3111, 4
  %v3143 = vadd.f32 %v2745, %v3141
  %v3144 = vxor.u32 %v3143, 2147483648
  %v3145 = vmul.f32 %v3144, 1.442695
  %v3146 = vpow.pop %v3145
  %v3147 = vadd.f32 %v3146, 1.0
  %v3148 = vrcp.pop %v3147
  %v3149 = vmul.f32 %v3147, %v3148
  %v3150 = vsub.f32 1.0, %v3149
  %v3151 = vmul.f32 %v3148, %v3150
  %v3152 = vadd.f32 %v3148, %v3151
  %vm3153 = vweird.f32 %v3147
  %vm3154 = vweird.f32 %v3148
  %vm3155 = vmor %vm3153, %vm3154
  %v3156 = vsel %vm3155, %v3148, %v3152
  %v3157 = vand.u32 2147483647, %v3147
  %vm3158 = vcmp.eq.f32.partialorder %v3157, 8.507059e+37
  %v3159 = vand.u32 %v3147, 2147483648
  %v3160 = vor.u32 1.1754944e-38, %v3159
  %v3161 = vsel %vm3158, %v3160, %v3156
  %v3162 = vmul.f32 1.0, %v3161
  %v3164 = vrot.slane %v3124, 4
  %v3166 = vadd.f32 %v2759, %v3164
  %v3167 = vxor.u32 %v3166, 2147483648
  %v3168 = vmul.f32 %v3167, 1.442695
  %v3169 = vpow.pop %v3168
  %v3170 = vadd.f32 %v3169, 1.0
  %v3171 = vrcp.pop %v3170
  %v3172 = vmul.f32 %v3170, %v3171
  %v3173 = vsub.f32 1.0, %v3172
  %v3174 = vmul.f32 %v3171, %v3173
  %v3175 = vadd.f32 %v3171, %v3174
  %vm3176 = vweird.f32 %v3170
  %vm3177 = vweird.f32 %v3171
  %vm3178 = vmor %vm3176, %vm3177
  %v3179 = vsel %vm3178, %v3171, %v3175
  %v3180 = vand.u32 2147483647, %v3170
  %vm3181 = vcmp.eq.f32.partialorder %v3180, 8.507059e+37
  %v3182 = vand.u32 %v3170, 2147483648
  %v3183 = vor.u32 1.1754944e-38, %v3182
  %v3184 = vsel %vm3181, %v3183, %v3179
  %v3185 = vmul.f32 1.0, %v3184
  %v3187 = vrot.slane %v3137, 4
  %v3189 = vmul.f32 %v3162, %v3187
  %v3190 = vadd.f32 %v2773, %v3189
  %v3191 = vtanh.pop %v3190
  %v3192 = vsub.f32 1.0, %v3185
  %v3193 = vmul.f32 %v3192, %v3191
  %v3195 = vrot.slane %v3096, 6
  %v3197 = vmul.f32 %v3185, %v3195
  %v3198 = vadd.f32 %v3193, %v3197
  %v3199 = vpack.c.bf16 %v3198, %v3198
  %v3201 = vrot.slane %v3199, 2
  %3203 = vmatpush.bf16.msra.mxu0 %v2885
  %3204 = vmatpush.bf16.msra.mxu0 %v2882
  %3205 = vmatpush.bf16.msra.mxu0 %v2879
  %3206 = vmatpush.bf16.msra.mxu0 %v2876
  %3207 = vmatpush.bf16.msra.mxu0 %v2873
  %3208 = vmatpush.bf16.msra.mxu0 %v2870
  %3209 = vmatpush.bf16.msra.mxu0 %v2867
  %3210 = vmatpush.bf16.msra.mxu0 %v2864
  %3211 = vmatmul.bf16.gmra.mxu0 %v3201
  %v3212 = vpop.f32.mrf.mxu0
  %v3213 = vadd.f32 %v2778, %v3212
  %v3214 = vpop.f32.mrf.mxu0
  %3215 = vdwg.mxu0
  %3216 = vmatpush.bf16.msra.mxu0 %v2886
  %3217 = vmatpush.bf16.msra.mxu0 %v2883
  %3218 = vmatpush.bf16.msra.mxu0 %v2880
  %3219 = vmatpush.bf16.msra.mxu0 %v2877
  %3220 = vmatpush.bf16.msra.mxu0 %v2874
  %3221 = vmatpush.bf16.msra.mxu0 %v2871
  %3222 = vmatpush.bf16.msra.mxu0 %v2868
  %3223 = vmatpush.bf16.msra.mxu0 %v2865
  %3224 = vmatmul.bf16.gmra.mxu0 %v3201
  %v3225 = vpop.f32.mrf.mxu0
  %v3226 = vadd.f32 %v2779, %v3225
  %v3227 = vpop.f32.mrf.mxu0
  %3228 = vdwg.mxu0
  %3229 = vmatpush.bf16.msra.mxu0 %v2887
  %3230 = vmatpush.bf16.msra.mxu0 %v2884
  %3231 = vmatpush.bf16.msra.mxu0 %v2881
  %3232 = vmatpush.bf16.msra.mxu0 %v2878
  %3233 = vmatpush.bf16.msra.mxu0 %v2875
  %3234 = vmatpush.bf16.msra.mxu0 %v2872
  %3235 = vmatpush.bf16.msra.mxu0 %v2869
  %3236 = vmatpush.bf16.msra.mxu0 %v2866
  %3237 = vmatmul.bf16.gmra.mxu0 %v3201
  %v3238 = vpop.f32.mrf.mxu0
  %v3239 = vadd.f32 %v2780, %v3238
  %v3240 = vpop.f32.mrf.mxu0
  %3241 = vdwg.mxu0
  %v3243 = vrot.slane %v3213, 2
  %v3245 = vadd.f32 %v2745, %v3243
  %v3246 = vxor.u32 %v3245, 2147483648
  %v3247 = vmul.f32 %v3246, 1.442695
  %v3248 = vpow.pop %v3247
  %v3249 = vadd.f32 %v3248, 1.0
  %v3250 = vrcp.pop %v3249
  %v3251 = vmul.f32 %v3249, %v3250
  %v3252 = vsub.f32 1.0, %v3251
  %v3253 = vmul.f32 %v3250, %v3252
  %v3254 = vadd.f32 %v3250, %v3253
  %vm3255 = vweird.f32 %v3249
  %vm3256 = vweird.f32 %v3250
  %vm3257 = vmor %vm3255, %vm3256
  %v3258 = vsel %vm3257, %v3250, %v3254
  %v3259 = vand.u32 2147483647, %v3249
  %vm3260 = vcmp.eq.f32.partialorder %v3259, 8.507059e+37
  %v3261 = vand.u32 %v3249, 2147483648
  %v3262 = vor.u32 1.1754944e-38, %v3261
  %v3263 = vsel %vm3260, %v3262, %v3258
  %v3264 = vmul.f32 1.0, %v3263
  %v3266 = vrot.slane %v3226, 2
  %v3268 = vadd.f32 %v2759, %v3266
  %v3269 = vxor.u32 %v3268, 2147483648
  %v3270 = vmul.f32 %v3269, 1.442695
  %v3271 = vpow.pop %v3270
  %v3272 = vadd.f32 %v3271, 1.0
  %v3273 = vrcp.pop %v3272
  %v3274 = vmul.f32 %v3272, %v3273
  %v3275 = vsub.f32 1.0, %v3274
  %v3276 = vmul.f32 %v3273, %v3275
  %v3277 = vadd.f32 %v3273, %v3276
  %vm3278 = vweird.f32 %v3272
  %vm3279 = vweird.f32 %v3273
  %vm3280 = vmor %vm3278, %vm3279
  %v3281 = vsel %vm3280, %v3273, %v3277
  %v3282 = vand.u32 2147483647, %v3272
  %vm3283 = vcmp.eq.f32.partialorder %v3282, 8.507059e+37
  %v3284 = vand.u32 %v3272, 2147483648
  %v3285 = vor.u32 1.1754944e-38, %v3284
  %v3286 = vsel %vm3283, %v3285, %v3281
  %v3287 = vmul.f32 1.0, %v3286
  %v3289 = vrot.slane %v3239, 2
  %v3291 = vmul.f32 %v3264, %v3289
  %v3292 = vadd.f32 %v2773, %v3291
  %v3293 = vtanh.pop %v3292
  %v3294 = vsub.f32 1.0, %v3287
  %v3295 = vmul.f32 %v3294, %v3293
  %v3297 = vrot.slane %v3198, 6
  %v3299 = vmul.f32 %v3287, %v3297
  %v3300 = vadd.f32 %v3295, %v3299
  %v3301 = vpack.c.bf16 %v3300, %v3300
  %v3303 = vrot.slane %v3301, 3
  %3305 = vmatpush.bf16.msra.mxu0 %v2885
  %3306 = vmatpush.bf16.msra.mxu0 %v2882
  %3307 = vmatpush.bf16.msra.mxu0 %v2879
  %3308 = vmatpush.bf16.msra.mxu0 %v2876
  %3309 = vmatpush.bf16.msra.mxu0 %v2873
  %3310 = vmatpush.bf16.msra.mxu0 %v2870
  %3311 = vmatpush.bf16.msra.mxu0 %v2867
  %3312 = vmatpush.bf16.msra.mxu0 %v2864
  %3313 = vmatmul.bf16.gmra.mxu0 %v3303
  %v3314 = vpop.f32.mrf.mxu0
  %v3315 = vadd.f32 %v2778, %v3314
  %v3316 = vpop.f32.mrf.mxu0
  %3317 = vdwg.mxu0
  %3318 = vmatpush.bf16.msra.mxu0 %v2886
  %3319 = vmatpush.bf16.msra.mxu0 %v2883
  %3320 = vmatpush.bf16.msra.mxu0 %v2880
  %3321 = vmatpush.bf16.msra.mxu0 %v2877
  %3322 = vmatpush.bf16.msra.mxu0 %v2874
  %3323 = vmatpush.bf16.msra.mxu0 %v2871
  %3324 = vmatpush.bf16.msra.mxu0 %v2868
  %3325 = vmatpush.bf16.msra.mxu0 %v2865
  %3326 = vmatmul.bf16.gmra.mxu0 %v3303
  %v3327 = vpop.f32.mrf.mxu0
  %v3328 = vadd.f32 %v2779, %v3327
  %v3329 = vpop.f32.mrf.mxu0
  %3330 = vdwg.mxu0
  %3331 = vmatpush.bf16.msra.mxu0 %v2887
  %3332 = vmatpush.bf16.msra.mxu0 %v2884
  %3333 = vmatpush.bf16.msra.mxu0 %v2881
  %3334 = vmatpush.bf16.msra.mxu0 %v2878
  %3335 = vmatpush.bf16.msra.mxu0 %v2875
  %3336 = vmatpush.bf16.msra.mxu0 %v2872
  %3337 = vmatpush.bf16.msra.mxu0 %v2869
  %3338 = vmatpush.bf16.msra.mxu0 %v2866
  %3339 = vmatmul.bf16.gmra.mxu0 %v3303
  %v3340 = vpop.f32.mrf.mxu0
  %v3341 = vadd.f32 %v2780, %v3340
  %v3342 = vpop.f32.mrf.mxu0
  %3343 = vdwg.mxu0
  %v3344 = vadd.f32 %v2747, %v3315
  %v3345 = vxor.u32 %v3344, 2147483648
  %v3346 = vmul.f32 %v3345, 1.442695
  %v3347 = vpow.pop %v3346
  %v3348 = vadd.f32 %v3347, 1.0
  %v3349 = vrcp.pop %v3348
  %v3350 = vmul.f32 %v3348, %v3349
  %v3351 = vsub.f32 1.0, %v3350
  %v3352 = vmul.f32 %v3349, %v3351
  %v3353 = vadd.f32 %v3349, %v3352
  %vm3354 = vweird.f32 %v3348
  %vm3355 = vweird.f32 %v3349
  %vm3356 = vmor %vm3354, %vm3355
  %v3357 = vsel %vm3356, %v3349, %v3353
  %v3358 = vand.u32 2147483647, %v3348
  %vm3359 = vcmp.eq.f32.partialorder %v3358, 8.507059e+37
  %v3360 = vand.u32 %v3348, 2147483648
  %v3361 = vor.u32 1.1754944e-38, %v3360
  %v3362 = vsel %vm3359, %v3361, %v3357
  %v3363 = vmul.f32 1.0, %v3362
  %v3364 = vadd.f32 %v2761, %v3328
  %v3365 = vxor.u32 %v3364, 2147483648
  %v3366 = vmul.f32 %v3365, 1.442695
  %v3367 = vpow.pop %v3366
  %v3368 = vadd.f32 %v3367, 1.0
  %v3369 = vrcp.pop %v3368
  %v3370 = vmul.f32 %v3368, %v3369
  %v3371 = vsub.f32 1.0, %v3370
  %v3372 = vmul.f32 %v3369, %v3371
  %v3373 = vadd.f32 %v3369, %v3372
  %vm3374 = vweird.f32 %v3368
  %vm3375 = vweird.f32 %v3369
  %vm3376 = vmor %vm3374, %vm3375
  %v3377 = vsel %vm3376, %v3369, %v3373
  %v3378 = vand.u32 2147483647, %v3368
  %vm3379 = vcmp.eq.f32.partialorder %v3378, 8.507059e+37
  %v3380 = vand.u32 %v3368, 2147483648
  %v3381 = vor.u32 1.1754944e-38, %v3380
  %v3382 = vsel %vm3379, %v3381, %v3377
  %v3383 = vmul.f32 1.0, %v3382
  %v3384 = vmul.f32 %v3363, %v3341
  %v3385 = vadd.f32 %v2775, %v3384
  %v3386 = vtanh.pop %v3385
  %v3387 = vsub.f32 1.0, %v3383
  %v3388 = vmul.f32 %v3387, %v3386
  %v3390 = vrot.slane %v3300, 6
  %v3392 = vmul.f32 %v3383, %v3390
  %v3393 = vadd.f32 %v3388, %v3392
  %v3394 = vpack.c.bf16 %v3393, %v3393
  %3395 = vmatpush.bf16.msra.mxu0 %v2885
  %3396 = vmatpush.bf16.msra.mxu0 %v2882
  %3397 = vmatpush.bf16.msra.mxu0 %v2879
  %3398 = vmatpush.bf16.msra.mxu0 %v2876
  %3399 = vmatpush.bf16.msra.mxu0 %v2873
  %3400 = vmatpush.bf16.msra.mxu0 %v2870
  %3401 = vmatpush.bf16.msra.mxu0 %v2867
  %3402 = vmatpush.bf16.msra.mxu0 %v2864
  %3403 = vmatmul.bf16.gmra.mxu0 %v3394
  %v3404 = vpop.f32.mrf.mxu0
  %v3405 = vadd.f32 %v2778, %v3404
  %v3406 = vpop.f32.mrf.mxu0
  %3407 = vdwg.mxu0
  %3408 = vmatpush.bf16.msra.mxu0 %v2886
  %3409 = vmatpush.bf16.msra.mxu0 %v2883
  %3410 = vmatpush.bf16.msra.mxu0 %v2880
  %3411 = vmatpush.bf16.msra.mxu0 %v2877
  %3412 = vmatpush.bf16.msra.mxu0 %v2874
  %3413 = vmatpush.bf16.msra.mxu0 %v2871
  %3414 = vmatpush.bf16.msra.mxu0 %v2868
  %3415 = vmatpush.bf16.msra.mxu0 %v2865
  %3416 = vmatmul.bf16.gmra.mxu0 %v3394
  %v3417 = vpop.f32.mrf.mxu0
  %v3418 = vadd.f32 %v2779, %v3417
  %v3419 = vpop.f32.mrf.mxu0
  %3420 = vdwg.mxu0
  %3421 = vmatpush.bf16.msra.mxu0 %v2887
  %3422 = vmatpush.bf16.msra.mxu0 %v2884
  %3423 = vmatpush.bf16.msra.mxu0 %v2881
  %3424 = vmatpush.bf16.msra.mxu0 %v2878
  %3425 = vmatpush.bf16.msra.mxu0 %v2875
  %3426 = vmatpush.bf16.msra.mxu0 %v2872
  %3427 = vmatpush.bf16.msra.mxu0 %v2869
  %3428 = vmatpush.bf16.msra.mxu0 %v2866
  %3429 = vmatmul.bf16.gmra.mxu0 %v3394
  %v3430 = vpop.f32.mrf.mxu0
  %v3431 = vadd.f32 %v2780, %v3430
  %v3432 = vpop.f32.mrf.mxu0
  %3433 = vdwg.mxu0
  %v3435 = vrot.slane %v3405, 6
  %v3437 = vadd.f32 %v2747, %v3435
  %v3438 = vxor.u32 %v3437, 2147483648
  %v3439 = vmul.f32 %v3438, 1.442695
  %v3440 = vpow.pop %v3439
  %v3441 = vadd.f32 %v3440, 1.0
  %v3442 = vrcp.pop %v3441
  %v3443 = vmul.f32 %v3441, %v3442
  %v3444 = vsub.f32 1.0, %v3443
  %v3445 = vmul.f32 %v3442, %v3444
  %v3446 = vadd.f32 %v3442, %v3445
  %vm3447 = vweird.f32 %v3441
  %vm3448 = vweird.f32 %v3442
  %vm3449 = vmor %vm3447, %vm3448
  %v3450 = vsel %vm3449, %v3442, %v3446
  %v3451 = vand.u32 2147483647, %v3441
  %vm3452 = vcmp.eq.f32.partialorder %v3451, 8.507059e+37
  %v3453 = vand.u32 %v3441, 2147483648
  %v3454 = vor.u32 1.1754944e-38, %v3453
  %v3455 = vsel %vm3452, %v3454, %v3450
  %v3456 = vmul.f32 1.0, %v3455
  %v3458 = vrot.slane %v3418, 6
  %v3460 = vadd.f32 %v2761, %v3458
  %v3461 = vxor.u32 %v3460, 2147483648
  %v3462 = vmul.f32 %v3461, 1.442695
  %v3463 = vpow.pop %v3462
  %v3464 = vadd.f32 %v3463, 1.0
  %v3465 = vrcp.pop %v3464
  %v3466 = vmul.f32 %v3464, %v3465
  %v3467 = vsub.f32 1.0, %v3466
  %v3468 = vmul.f32 %v3465, %v3467
  %v3469 = vadd.f32 %v3465, %v3468
  %vm3470 = vweird.f32 %v3464
  %vm3471 = vweird.f32 %v3465
  %vm3472 = vmor %vm3470, %vm3471
  %v3473 = vsel %vm3472, %v3465, %v3469
  %v3474 = vand.u32 2147483647, %v3464
  %vm3475 = vcmp.eq.f32.partialorder %v3474, 8.507059e+37
  %v3476 = vand.u32 %v3464, 2147483648
  %v3477 = vor.u32 1.1754944e-38, %v3476
  %v3478 = vsel %vm3475, %v3477, %v3473
  %v3479 = vmul.f32 1.0, %v3478
  %v3481 = vrot.slane %v3431, 6
  %v3483 = vmul.f32 %v3456, %v3481
  %v3484 = vadd.f32 %v2775, %v3483
  %v3485 = vtanh.pop %v3484
  %v3486 = vsub.f32 1.0, %v3479
  %v3487 = vmul.f32 %v3486, %v3485
  %v3489 = vrot.slane %v3393, 6
  %v3491 = vmul.f32 %v3479, %v3489
  %v3492 = vadd.f32 %v3487, %v3491
  %v3493 = vpack.c.bf16 %v3492, %v3492
  %v3495 = vrot.slane %v3493, 1
  %3497 = vmatpush.bf16.msra.mxu0 %v2885
  %3498 = vmatpush.bf16.msra.mxu0 %v2882
  %3499 = vmatpush.bf16.msra.mxu0 %v2879
  %3500 = vmatpush.bf16.msra.mxu0 %v2876
  %3501 = vmatpush.bf16.msra.mxu0 %v2873
  %3502 = vmatpush.bf16.msra.mxu0 %v2870
  %3503 = vmatpush.bf16.msra.mxu0 %v2867
  %3504 = vmatpush.bf16.msra.mxu0 %v2864
  %3505 = vmatmul.bf16.gmra.mxu0 %v3495
  %v3506 = vpop.f32.mrf.mxu0
  %v3507 = vadd.f32 %v2778, %v3506
  %v3508 = vpop.f32.mrf.mxu0
  %3509 = vdwg.mxu0
  %3510 = vmatpush.bf16.msra.mxu0 %v2886
  %3511 = vmatpush.bf16.msra.mxu0 %v2883
  %3512 = vmatpush.bf16.msra.mxu0 %v2880
  %3513 = vmatpush.bf16.msra.mxu0 %v2877
  %3514 = vmatpush.bf16.msra.mxu0 %v2874
  %3515 = vmatpush.bf16.msra.mxu0 %v2871
  %3516 = vmatpush.bf16.msra.mxu0 %v2868
  %3517 = vmatpush.bf16.msra.mxu0 %v2865
  %3518 = vmatmul.bf16.gmra.mxu0 %v3495
  %v3519 = vpop.f32.mrf.mxu0
  %v3520 = vadd.f32 %v2779, %v3519
  %v3521 = vpop.f32.mrf.mxu0
  %3522 = vdwg.mxu0
  %3523 = vmatpush.bf16.msra.mxu0 %v2887
  %3524 = vmatpush.bf16.msra.mxu0 %v2884
  %3525 = vmatpush.bf16.msra.mxu0 %v2881
  %3526 = vmatpush.bf16.msra.mxu0 %v2878
  %3527 = vmatpush.bf16.msra.mxu0 %v2875
  %3528 = vmatpush.bf16.msra.mxu0 %v2872
  %3529 = vmatpush.bf16.msra.mxu0 %v2869
  %3530 = vmatpush.bf16.msra.mxu0 %v2866
  %3531 = vmatmul.bf16.gmra.mxu0 %v3495
  %v3532 = vpop.f32.mrf.mxu0
  %v3533 = vadd.f32 %v2780, %v3532
  %v3534 = vpop.f32.mrf.mxu0
  %3535 = vdwg.mxu0
  %v3537 = vrot.slane %v3507, 4
  %v3539 = vadd.f32 %v2747, %v3537
  %v3540 = vxor.u32 %v3539, 2147483648
  %v3541 = vmul.f32 %v3540, 1.442695
  %v3542 = vpow.pop %v3541
  %v3543 = vadd.f32 %v3542, 1.0
  %v3544 = vrcp.pop %v3543
  %v3545 = vmul.f32 %v3543, %v3544
  %v3546 = vsub.f32 1.0, %v3545
  %v3547 = vmul.f32 %v3544, %v3546
  %v3548 = vadd.f32 %v3544, %v3547
  %vm3549 = vweird.f32 %v3543
  %vm3550 = vweird.f32 %v3544
  %vm3551 = vmor %vm3549, %vm3550
  %v3552 = vsel %vm3551, %v3544, %v3548
  %v3553 = vand.u32 2147483647, %v3543
  %vm3554 = vcmp.eq.f32.partialorder %v3553, 8.507059e+37
  %v3555 = vand.u32 %v3543, 2147483648
  %v3556 = vor.u32 1.1754944e-38, %v3555
  %v3557 = vsel %vm3554, %v3556, %v3552
  %v3558 = vmul.f32 1.0, %v3557
  %v3560 = vrot.slane %v3520, 4
  %v3562 = vadd.f32 %v2761, %v3560
  %v3563 = vxor.u32 %v3562, 2147483648
  %v3564 = vmul.f32 %v3563, 1.442695
  %v3565 = vpow.pop %v3564
  %v3566 = vadd.f32 %v3565, 1.0
  %v3567 = vrcp.pop %v3566
  %v3568 = vmul.f32 %v3566, %v3567
  %v3569 = vsub.f32 1.0, %v3568
  %v3570 = vmul.f32 %v3567, %v3569
  %v3571 = vadd.f32 %v3567, %v3570
  %vm3572 = vweird.f32 %v3566
  %vm3573 = vweird.f32 %v3567
  %vm3574 = vmor %vm3572, %vm3573
  %v3575 = vsel %vm3574, %v3567, %v3571
  %v3576 = vand.u32 2147483647, %v3566
  %vm3577 = vcmp.eq.f32.partialorder %v3576, 8.507059e+37
  %v3578 = vand.u32 %v3566, 2147483648
  %v3579 = vor.u32 1.1754944e-38, %v3578
  %v3580 = vsel %vm3577, %v3579, %v3575
  %v3581 = vmul.f32 1.0, %v3580
  %v3583 = vrot.slane %v3533, 4
  %v3585 = vmul.f32 %v3558, %v3583
  %v3586 = vadd.f32 %v2775, %v3585
  %v3587 = vtanh.pop %v3586
  %v3588 = vsub.f32 1.0, %v3581
  %v3589 = vmul.f32 %v3588, %v3587
  %v3591 = vrot.slane %v3492, 6
  %v3593 = vmul.f32 %v3581, %v3591
  %v3594 = vadd.f32 %v3589, %v3593
  %v3595 = vpack.c.bf16 %v3594, %v3594
  %v3597 = vrot.slane %v3595, 2
  %3599 = vmatpush.bf16.msra.mxu0 %v2885
  %3600 = vmatpush.bf16.msra.mxu0 %v2882
  %3601 = vmatpush.bf16.msra.mxu0 %v2879
  %3602 = vmatpush.bf16.msra.mxu0 %v2876
  %3603 = vmatpush.bf16.msra.mxu0 %v2873
  %3604 = vmatpush.bf16.msra.mxu0 %v2870
  %3605 = vmatpush.bf16.msra.mxu0 %v2867
  %3606 = vmatpush.bf16.msra.mxu0 %v2864
  %3607 = vmatmul.bf16.gmra.mxu0 %v3597
  %v3608 = vpop.f32.mrf.mxu0
  %v3609 = vadd.f32 %v2778, %v3608
  %v3610 = vpop.f32.mrf.mxu0
  %3611 = vdwg.mxu0
  %3612 = vmatpush.bf16.msra.mxu0 %v2886
  %3613 = vmatpush.bf16.msra.mxu0 %v2883
  %3614 = vmatpush.bf16.msra.mxu0 %v2880
  %3615 = vmatpush.bf16.msra.mxu0 %v2877
  %3616 = vmatpush.bf16.msra.mxu0 %v2874
  %3617 = vmatpush.bf16.msra.mxu0 %v2871
  %3618 = vmatpush.bf16.msra.mxu0 %v2868
  %3619 = vmatpush.bf16.msra.mxu0 %v2865
  %3620 = vmatmul.bf16.gmra.mxu0 %v3597
  %v3621 = vpop.f32.mrf.mxu0
  %v3622 = vadd.f32 %v2779, %v3621
  %v3623 = vpop.f32.mrf.mxu0
  %3624 = vdwg.mxu0
  %3625 = vmatpush.bf16.msra.mxu0 %v2887
  %3626 = vmatpush.bf16.msra.mxu0 %v2884
  %3627 = vmatpush.bf16.msra.mxu0 %v2881
  %3628 = vmatpush.bf16.msra.mxu0 %v2878
  %3629 = vmatpush.bf16.msra.mxu0 %v2875
  %3630 = vmatpush.bf16.msra.mxu0 %v2872
  %3631 = vmatpush.bf16.msra.mxu0 %v2869
  %3632 = vmatpush.bf16.msra.mxu0 %v2866
  %3633 = vmatmul.bf16.gmra.mxu0 %v3597
  %v3634 = vpop.f32.mrf.mxu0
  %v3635 = vadd.f32 %v2780, %v3634
  %v3636 = vpop.f32.mrf.mxu0
  %3637 = vdwg.mxu0
  %v3639 = vrot.slane %v3609, 2
  %v3641 = vadd.f32 %v2747, %v3639
  %v3642 = vxor.u32 %v3641, 2147483648
  %v3643 = vmul.f32 %v3642, 1.442695
  %v3644 = vpow.pop %v3643
  %v3645 = vadd.f32 %v3644, 1.0
  %v3646 = vrcp.pop %v3645
  %v3647 = vmul.f32 %v3645, %v3646
  %v3648 = vsub.f32 1.0, %v3647
  %v3649 = vmul.f32 %v3646, %v3648
  %v3650 = vadd.f32 %v3646, %v3649
  %vm3651 = vweird.f32 %v3645
  %vm3652 = vweird.f32 %v3646
  %vm3653 = vmor %vm3651, %vm3652
  %v3654 = vsel %vm3653, %v3646, %v3650
  %v3655 = vand.u32 2147483647, %v3645
  %vm3656 = vcmp.eq.f32.partialorder %v3655, 8.507059e+37
  %v3657 = vand.u32 %v3645, 2147483648
  %v3658 = vor.u32 1.1754944e-38, %v3657
  %v3659 = vsel %vm3656, %v3658, %v3654
  %v3660 = vmul.f32 1.0, %v3659
  %v3662 = vrot.slane %v3622, 2
  %v3664 = vadd.f32 %v2761, %v3662
  %v3665 = vxor.u32 %v3664, 2147483648
  %v3666 = vmul.f32 %v3665, 1.442695
  %v3667 = vpow.pop %v3666
  %v3668 = vadd.f32 %v3667, 1.0
  %v3669 = vrcp.pop %v3668
  %v3670 = vmul.f32 %v3668, %v3669
  %v3671 = vsub.f32 1.0, %v3670
  %v3672 = vmul.f32 %v3669, %v3671
  %v3673 = vadd.f32 %v3669, %v3672
  %vm3674 = vweird.f32 %v3668
  %vm3675 = vweird.f32 %v3669
  %vm3676 = vmor %vm3674, %vm3675
  %v3677 = vsel %vm3676, %v3669, %v3673
  %v3678 = vand.u32 2147483647, %v3668
  %vm3679 = vcmp.eq.f32.partialorder %v3678, 8.507059e+37
  %v3680 = vand.u32 %v3668, 2147483648
  %v3681 = vor.u32 1.1754944e-38, %v3680
  %v3682 = vsel %vm3679, %v3681, %v3677
  %v3683 = vmul.f32 1.0, %v3682
  %v3685 = vrot.slane %v3635, 2
  %v3687 = vmul.f32 %v3660, %v3685
  %v3688 = vadd.f32 %v2775, %v3687
  %v3689 = vtanh.pop %v3688
  %v3690 = vsub.f32 1.0, %v3683
  %v3691 = vmul.f32 %v3690, %v3689
  %v3693 = vrot.slane %v3594, 6
  %v3695 = vmul.f32 %v3683, %v3693
  %v3696 = vadd.f32 %v3691, %v3695
  %v3697 = vld [vmem:[%s17] sm:$0x1]
  %v3699 = vperm.slane %v3697, 0
  %v3701 = vmul.f32 %v2663, %v3699
  %vm3702 = vcmask 254976
  %v3703 = vsel %vm3702, %v3701, 0.0
  %3704 = vadd.xlane.f32.xlu0 %v3703
  %v3705 = vpop.xlane.xlu0 %3704
  %v3706 = vld [vmem:[%s18] sm:$0x1]
  %v3708 = vperm.slane %v3706, 0
  %v3710 = vmul.f32 %v3696, %v3708
  %vm3711 = vcmask 1047558
  %v3712 = vsel %vm3711, %v3710, 0.0
  %3713 = vadd.xlane.f32.xlu0 %v3712
  %v3714 = vpop.xlane.xlu0 %3713
  %v3716 = vrot.slane %v3714, 6
  %v3718 = vadd.f32 %v3705, %v3716
  %v3719 = vxor.u32 %v3718, 2147483648
  %v3720 = vmul.f32 %v3719, 1.442695
  %v3721 = vpow.pop %v3720
  %v3722 = vadd.f32 %v3721, 1.0
  %v3723 = vrcp.pop %v3722
  %v3724 = vmul.f32 %v3722, %v3723
  %v3725 = vsub.f32 1.0, %v3724
  %v3726 = vmul.f32 %v3723, %v3725
  %v3727 = vadd.f32 %v3723, %v3726
  %vm3728 = vweird.f32 %v3722
  %vm3729 = vweird.f32 %v3723
  %vm3730 = vmor %vm3728, %vm3729
  %v3731 = vsel %vm3730, %v3723, %v3727
  %v3732 = vand.u32 2147483647, %v3722
  %vm3733 = vcmp.eq.f32.partialorder %v3732, 8.507059e+37
  %v3734 = vand.u32 %v3722, 2147483648
  %v3735 = vor.u32 1.1754944e-38, %v3734
  %v3736 = vsel %vm3733, %v3735, %v3731
  %v3737 = vmul.f32 1.0, %v3736
  %vm3738 = vcmask 1024
  %3739 = vst.msk [vmem:[%s19] sm:$0x3] %vm3738, %v3737
  // Predicated region
  $region78: #{fake_sentence_discriminator.1} parent=0 // pred_check
    _
  $region79: #{fake_sentence_discriminator.1} parent=0 // pred_check_branch
    %3741 = sbr.rel (0) target = $region81
  $region80: #{fake_sentence_discriminator.1} parent=0 // pred_region
    _
  $region81: #{fake_sentence_discriminator.1} parent=0 // pred_fallthru
    _
  // Predicated region
  $region82: #{fake_sentence_discriminator.1} parent=0 // pred_check
    _
  $region83: #{fake_sentence_discriminator.1} parent=0 // pred_check_branch
    %3743 = sbr.rel (0) target = $region85
  $region84: #{fake_sentence_discriminator.1} parent=0 // pred_region
    _
  $region85: #{fake_sentence_discriminator.1} parent=0 // pred_fallthru
    _

</llo_original>
